<compile_context>
chip_gen: v7x
topology: tpu7x:2x2x1
jax: 0.10.0
libtpu: 0.0.40
codegen_flags: <defaults>
</compile_context>

<pallas_src>
import functools

import jax
import jax.numpy as jnp
from jax import lax
from jax.experimental import pallas as pl
from jax.experimental.pallas import tpu as pltpu

BN_EPS = 1e-5
MXU_DTYPE = jnp.bfloat16      # MXU operand dtype (accumulation stays f32)
LANE = 128


def _round_up(a, b):
    return (a + b - 1) // b * b


# --------------------------------------------------------------------------------------
# Fused [optional MaxPool | optional previous-layer BN+ReLU] -> Conv3d(3x3x3, pad=1)
# kernel.  One grid step per batch element.
# --------------------------------------------------------------------------------------
def _conv_kernel(pool, in_act, cin, kpad, offsets, halo, mb,
                 x_ref, w_ref, b_ref, isc_ref, ish_ref, mask_ref,
                 y_ref, stats_ref, xproc_ref, pmat_ref):
    # x_ref    : (1, cin, P, mb)   f32   P=8 pooling candidates (conv1) or P=1 (conv2)
    # w_ref    : (cout, kpad)      bf16  taps folded onto the contraction axis
    # b_ref    : (cout, 1)         f32   conv bias
    # isc/ish  : (cin, 1)          f32   previous layer's BN scale / shift (if in_act)
    # mask_ref : (1, mb)           f32   1.0 at interior (valid) positions of padded volume
    # y_ref    : (1, cout, mb)     f32   conv output (+bias), unnormalized, lane-dense
    # stats_ref: (cout, 2)         f32   resident accumulator: [:,0]=sum, [:,1]=sum(x^2)
    # xproc_ref: (cin, mb+2*halo)  bf16  processed input with zeroed halo margins
    # pmat_ref : (kpad, mb)        bf16  im2col matrix for this batch element
    n = pl.program_id(0)

    @pl.when(n == 0)
    def _init():
        stats_ref[...] = jnp.zeros_like(stats_ref)

    # ---- prologue: fused MaxPool3d(2) / fused BN+ReLU of the previous conv ----
    x = x_ref[0]                                   # (cin, P, mb) f32
    if pool:
        x = jnp.max(x, axis=1)                     # MaxPool3d(2) over the 8 candidates
    else:
        x = x[:, 0, :]
    if in_act:                                     # previous layer's BatchNorm + ReLU
        x = jnp.maximum(x * isc_ref[...] + ish_ref[...], 0.0)
    mask = mask_ref[...]                           # (1, mb)
    x = jnp.where(mask > 0.0, x, 0.0)              # enforce conv zero padding

    xproc_ref[...] = jnp.zeros_like(xproc_ref)     # zero halo margins
    xproc_ref[:, halo:halo + mb] = x.astype(MXU_DTYPE)

    # ---- im2col: 27 static lane-shifted copies -> one deep contraction ----
    k_real = len(offsets) * cin
    for t, off in enumerate(offsets):
        pmat_ref[t * cin:(t + 1) * cin, :] = xproc_ref[:, halo + off:halo + off + mb]
    if kpad > k_real:
        pmat_ref[k_real:, :] = jnp.zeros((kpad - k_real, mb), MXU_DTYPE)

    # ---- single MXU matmul: (cout, kpad) @ (kpad, mb) -> lane-dense (cout, mb) ----
    y = jnp.dot(w_ref[...], pmat_ref[...], preferred_element_type=jnp.float32)
    y = y + b_ref[...]
    y_ref[0] = y

    # ---- one-pass BatchNorm statistics over valid positions (global across the grid) ----
    ym = jnp.where(mask > 0.0, y, 0.0)
    stats_ref[:, 0:1] += jnp.sum(ym, axis=1, keepdims=True)
    stats_ref[:, 1:2] += jnp.sum(ym * ym, axis=1, keepdims=True)


def _conv_layer(x4, w_mat, bias, in_scale, in_shift, mask, *, pool, in_act,
                offsets, halo, mb):
    n_batch, cin, p_cand, _ = x4.shape
    cout, kpad = w_mat.shape
    kernel = functools.partial(_conv_kernel, pool, in_act, cin, kpad,
                               tuple(offsets), halo, mb)
    y, stats = pl.pallas_call(
        kernel,
        grid=(n_batch,),
        in_specs=[
            pl.BlockSpec((1, cin, p_cand, mb), lambda n: (n, 0, 0, 0)),
            pl.BlockSpec((cout, kpad), lambda n: (0, 0)),
            pl.BlockSpec((cout, 1), lambda n: (0, 0)),
            pl.BlockSpec((cin, 1), lambda n: (0, 0)),
            pl.BlockSpec((cin, 1), lambda n: (0, 0)),
            pl.BlockSpec((1, mb), lambda n: (0, 0)),
        ],
        out_specs=[
            pl.BlockSpec((1, cout, mb), lambda n: (n, 0, 0)),
            pl.BlockSpec((cout, 2), lambda n: (0, 0)),
        ],
        out_shape=[
            jax.ShapeDtypeStruct((n_batch, cout, mb), jnp.float32),
            jax.ShapeDtypeStruct((cout, 2), jnp.float32),
        ],
        scratch_shapes=[
            pltpu.VMEM((cin, mb + 2 * halo), MXU_DTYPE),
            pltpu.VMEM((kpad, mb), MXU_DTYPE),
        ],
        # BN statistics accumulate across batch steps -> this grid axis must be sequential.
        compiler_params=pltpu.CompilerParams(dimension_semantics=("arbitrary",)),
    )(x4, w_mat, bias, in_scale, in_shift, mask)
    return y, stats


# ------------------------------ final BatchNorm + ReLU --------------------------------
def _bn_relu_kernel(y_ref, sc_ref, sh_ref, o_ref):
    o_ref[0] = jnp.maximum(y_ref[0] * sc_ref[...] + sh_ref[...], 0.0)


def _bn_relu(y, scale, shift):
    n_batch, cout, mb = y.shape
    return pl.pallas_call(
        _bn_relu_kernel,
        grid=(n_batch,),
        in_specs=[
            pl.BlockSpec((1, cout, mb), lambda n: (n, 0, 0)),
            pl.BlockSpec((cout, 1), lambda n: (0, 0)),
            pl.BlockSpec((cout, 1), lambda n: (0, 0)),
        ],
        out_specs=pl.BlockSpec((1, cout, mb), lambda n: (n, 0, 0)),
        out_shape=jax.ShapeDtypeStruct((n_batch, cout, mb), jnp.float32),
        compiler_params=pltpu.CompilerParams(dimension_semantics=("parallel",)),
    )(y, scale, shift)


# ----------------------------------- glue helpers --------------------------------------
def _bn_scale_shift(stats, gamma, beta, count):
    # per-channel training-mode BN (biased variance) from the kernel's sum / sumsq
    mean = stats[:, 0] / count
    var = jnp.maximum(stats[:, 1] / count - mean * mean, 0.0)
    scale = gamma * lax.rsqrt(var + BN_EPS)
    shift = beta - mean * scale
    return scale[:, None].astype(jnp.float32), shift[:, None].astype(jnp.float32)


def _prep_weight(w, kpad):
    # w: (3, 3, 3, cin, cout) -> (cout, kpad), K ordered (kd, kh, kw, ci), zero-padded K rows
    cin, cout = w.shape[3], w.shape[4]
    wm = w.reshape(27 * cin, cout)
    wm = jnp.pad(wm, ((0, kpad - 27 * cin), (0, 0)))
    return wm.T.astype(MXU_DTYPE)


# ----------------------------------- Down module ----------------------------------------
def down_forward(x_ncdhw, params):
    n, cin, d, h, w = x_ncdhw.shape
    d2, h2, w2 = d // 2, h // 2, w // 2            # MaxPool3d(2) output dims
    dp, hp, wp = d2 + 2, h2 + 2, w2 + 2            # +1 zero padding per side (conv pad=1)
    m_real = dp * hp * wp
    mb = _round_up(m_real, LANE)                   # lane-dense flattened volume length
    halo = _round_up(hp * wp + wp + 1, LANE)       # >= max |tap offset|
    offsets = [(kd - 1) * hp * wp + (kh - 1) * wp + (kw - 1)
               for kd in range(3) for kh in range(3) for kw in range(3)]
    cout = params["w1"].shape[-1]
    kpad1 = _round_up(27 * cin, 8)
    kpad2 = _round_up(27 * cout, 8)
    count = float(n * d2 * h2 * w2)                # BN population size

    # ---- layout prep (pure-JAX glue): pooling candidates as (N, Cin, 8, Mb), zero-padded
    xt = x_ncdhw.reshape(n, cin, d2, 2, h2, 2, w2, 2)
    xt = xt.transpose(0, 1, 3, 5, 7, 2, 4, 6)      # (N, Cin, 2,2,2, D2, H2, W2)
    xt = xt.reshape(n, cin, 8, d2, h2, w2)
    xt = jnp.pad(xt, ((0, 0), (0, 0), (0, 0), (1, 1), (1, 1), (1, 1)))
    xt = xt.reshape(n, cin, 8, m_real)
    pool_in = jnp.pad(xt, ((0, 0), (0, 0), (0, 0), (0, mb - m_real)))

    # interior-position mask of the padded volume (shared by all batch elements)
    mask = jnp.pad(jnp.ones((d2, h2, w2), jnp.float32), ((1, 1), (1, 1), (1, 1)))
    mask = jnp.pad(mask.reshape(-1), (0, mb - m_real)).reshape(1, mb)

    w1m = _prep_weight(params["w1"], kpad1)
    w2m = _prep_weight(params["w2"], kpad2)
    b1 = params["b1"].reshape(cout, 1)
    b2 = params["b2"].reshape(cout, 1)
    one = jnp.ones((cin, 1), jnp.float32)
    zero = jnp.zeros((cin, 1), jnp.float32)

    # ---- conv1 (MaxPool3d fused into the prologue) ----
    y1, stats1 = _conv_layer(pool_in, w1m, b1, one, zero, mask,
                             pool=True, in_act=False,
                             offsets=offsets, halo=halo, mb=mb)
    sc1, sh1 = _bn_scale_shift(stats1, params["g1"], params["beta1"], count)

    # ---- conv2 (BN1 + ReLU1 fused into the prologue) ----
    y2, stats2 = _conv_layer(y1.reshape(n, cout, 1, mb), w2m, b2, sc1, sh1, mask,
                             pool=False, in_act=True,
                             offsets=offsets, halo=halo, mb=mb)
    sc2, sh2 = _bn_scale_shift(stats2, params["g2"], params["beta2"], count)

    # ---- final BN2 + ReLU2 ----
    out = _bn_relu(y2, sc2, sh2)                   # (N, Cout, Mb)

    # strip lane / conv padding -> NCDHW
    out = out[:, :, :m_real].reshape(n, cout, dp, hp, wp)
    return out[:, :, 1:1 + d2, 1:1 + h2, 1:1 + w2]


def init_params(key, cin, cout):
    k1, k2, k3, k4 = jax.random.split(key, 4)
    return dict(
        w1=jax.random.normal(k1, (3, 3, 3, cin, cout), jnp.float32) * 0.1,
        b1=jax.random.normal(k2, (cout,), jnp.float32) * 0.05,
        g1=jnp.ones((cout,), jnp.float32),
        beta1=jnp.zeros((cout,), jnp.float32),
        w2=jax.random.normal(k3, (3, 3, 3, cout, cout), jnp.float32) * 0.1,
        b2=jax.random.normal(k4, (cout,), jnp.float32) * 0.05,
        g2=jnp.ones((cout,), jnp.float32),
        beta2=jnp.zeros((cout,), jnp.float32),
    )


# ------------------------------ pure-JAX reference --------------------------------------
def _ref_down(x_ncdhw, p, cast_dtype=None):
    # cast_dtype=bfloat16 reproduces the kernel's MXU-operand rounding points exactly.
    def cast(a):
        return a if cast_dtype is None else a.astype(cast_dtype).astype(jnp.float32)

    xpool = lax.reduce_window(x_ncdhw, -jnp.inf, lax.max,
                              (1, 1, 2, 2, 2), (1, 1, 2, 2, 2), "VALID")

    def cbr(xin, w, b, g, beta):
        w_oidhw = jnp.transpose(cast(w), (4, 3, 0, 1, 2))
        y = lax.conv_general_dilated(
            cast(xin), w_oidhw, window_strides=(1, 1, 1), padding=((1, 1),) * 3,
            dimension_numbers=("NCDHW", "OIDHW", "NCDHW"),
            precision=lax.Precision.HIGHEST)
        y = y + b[None, :, None, None, None]
        mean = jnp.mean(y, axis=(0, 2, 3, 4), keepdims=True)
        var = jnp.mean((y - mean) ** 2, axis=(0, 2, 3, 4), keepdims=True)
        y = (y - mean) / jnp.sqrt(var + BN_EPS)
        y = y * g[None, :, None, None, None] + beta[None, :, None, None, None]
        return jnp.maximum(y, 0.0)

    h1 = cbr(xpool, p["w1"], p["b1"], p["g1"], p["beta1"])
    return cbr(h1, p["w2"], p["b2"], p["g2"], p["beta2"])


if __name__ == "__main__":
    key = jax.random.PRNGKey(0)
    kx, kp = jax.random.split(key)

    N, CIN, COUT = 2, 4, 8
    D, H, W = 8, 16, 16                      # NCDHW input; pooled spatial = (4, 8, 8)
    x = jax.random.normal(kx, (N, CIN, D, H, W), jnp.float32)
    params = init_params(kp, CIN, COUT)

    out = jax.jit(down_forward)(x, params)
    out = jax.block_until_ready(out)
    assert out.shape == (N, COUT, D // 2, H // 2, W // 2), out.shape

    # tight check: reference with the same bf16 operand rounding as the kernel's MXU path
    ref_bf16 = _ref_down(x, params, cast_dtype=MXU_DTYPE)
    err_bf16 = float(jnp.max(jnp.abs(out - ref_bf16)))
    # loose sanity check against the pure-f32 spec (difference = bf16 operand quantization)
    ref_f32 = _ref_down(x, params)
    err_f32 = float(jnp.max(jnp.abs(out - ref_f32)))
    if err_bf16 > 5e-3 or err_f32 > 1e-1:
        raise AssertionError(
            f"Pallas result mismatch: max|err| vs bf16-ref={err_bf16:.3e}, "
            f"vs f32-ref={err_f32:.3e}")
    print("KERNEL_OK")
</pallas_src>

<mosaic_0001>
module attributes {stable_mosaic.version = 11 : i64} {
  func.func @_conv_kernel(%arg0: i32, %arg1: memref<1x4x8x640xf32, #tpu.memory_space<vmem>>, %arg2: memref<8x112xbf16, #tpu.memory_space<vmem>>, %arg3: memref<8x1xf32, #tpu.memory_space<vmem>>, %arg4: memref<4x1xf32, #tpu.memory_space<vmem>>, %arg5: memref<4x1xf32, #tpu.memory_space<vmem>>, %arg6: memref<1x640xf32, #tpu.memory_space<vmem>>, %arg7: memref<1x8x640xf32, #tpu.memory_space<vmem>>, %arg8: memref<8x2xf32, #tpu.memory_space<vmem>>, %arg9: memref<4x896xbf16, #tpu.memory_space<vmem>>, %arg10: memref<112x640xbf16, #tpu.memory_space<vmem>>) attributes {dimension_semantics = [#tpu.dimension_semantics<arbitrary>], iteration_bounds = array<i64: 2>, scalar_prefetch = 0 : i64, scratch_operands = 2 : i64, tpu.core_type = #tpu.core_type<tc>, window_params = [{transform_indices = @transform_0, window_bounds = array<i64: 1, 4, 8, 640>}, {pipeline_mode = #tpu.pipeline_mode<synchronous>, transform_indices = @transform_1, window_bounds = array<i64: 8, 112>}, {pipeline_mode = #tpu.pipeline_mode<synchronous>, transform_indices = @transform_2, window_bounds = array<i64: 8, 1>}, {pipeline_mode = #tpu.pipeline_mode<synchronous>, transform_indices = @transform_3, window_bounds = array<i64: 4, 1>}, {pipeline_mode = #tpu.pipeline_mode<synchronous>, transform_indices = @transform_4, window_bounds = array<i64: 4, 1>}, {pipeline_mode = #tpu.pipeline_mode<synchronous>, transform_indices = @transform_5, window_bounds = array<i64: 1, 640>}, {transform_indices = @transform_6, window_bounds = array<i64: 1, 8, 640>}, {pipeline_mode = #tpu.pipeline_mode<synchronous>, transform_indices = @transform_7, window_bounds = array<i64: 8, 2>}]} {
    %c0_i32 = arith.constant 0 : i32
    %0 = arith.cmpi eq, %arg0, %c0_i32 : i32
    %1 = arith.extui %0 : i1 to i32
    %c0_i32_0 = arith.constant 0 : i32
    %2 = arith.cmpi ne, %1, %c0_i32_0 : i32
    scf.if %2 {
      %cst_92 = arith.constant 0.000000e+00 : f32
      %99 = vector.broadcast %cst_92 : f32 to vector<8x2xf32>
      %c0_93 = arith.constant 0 : index
      %c0_94 = arith.constant 0 : index
      %100 = vector.load %arg8[%c0_93, %c0_94] : memref<8x2xf32, #tpu.memory_space<vmem>>, vector<8x2xf32>
      tpu.vector_store %arg8[%c0_93, %c0_94], %99 {strides = array<i32>} : memref<8x2xf32, #tpu.memory_space<vmem>>, vector<8x2xf32>,
    } else {
    }
    %c0 = arith.constant 0 : index
    %c0_1 = arith.constant 0 : index
    %c0_2 = arith.constant 0 : index
    %c0_3 = arith.constant 0 : index
    %3 = vector.load %arg1[%c0, %c0_1, %c0_2, %c0_3] : memref<1x4x8x640xf32, #tpu.memory_space<vmem>>, vector<1x4x8x640xf32>
    %4 = vector.shape_cast %3 : vector<1x4x8x640xf32> to vector<4x8x640xf32>
    %cst = arith.constant dense<0xFF800000> : vector<4x640xf32>
    %5 = vector.multi_reduction <maximumf>, %4, %cst [1] : vector<4x8x640xf32> to vector<4x640xf32>
    %c0_4 = arith.constant 0 : index
    %c0_5 = arith.constant 0 : index
    %6 = vector.load %arg6[%c0_4, %c0_5] : memref<1x640xf32, #tpu.memory_space<vmem>>, vector<1x640xf32>
    %cst_6 = arith.constant 0.000000e+00 : f32
    %7 = vector.broadcast %cst_6 : f32 to vector<1x640xf32>
    %8 = arith.cmpf ogt, %6, %7 : vector<1x640xf32>
    %cst_7 = arith.constant 0.000000e+00 : f32
    %9 = vector.shape_cast %8 : vector<1x640xi1> to vector<1x640xi1>
    %10 = vector.broadcast %9 : vector<1x640xi1> to vector<4x640xi1>
    %11 = vector.broadcast %cst_7 : f32 to vector<4x640xf32>
    %12 = arith.select %10, %5, %11 : vector<4x640xi1>, vector<4x640xf32>
    %cst_8 = arith.constant 0.000000e+00 : bf16
    %13 = vector.broadcast %cst_8 : bf16 to vector<4x896xbf16>
    %c0_9 = arith.constant 0 : index
    %c0_10 = arith.constant 0 : index
    %14 = vector.load %arg9[%c0_9, %c0_10] : memref<4x896xbf16, #tpu.memory_space<vmem>>, vector<4x896xbf16>
    tpu.vector_store %arg9[%c0_9, %c0_10], %13 {strides = array<i32>} : memref<4x896xbf16, #tpu.memory_space<vmem>>, vector<4x896xbf16>,
    %15 = arith.truncf %12 : vector<4x640xf32> to vector<4x640xbf16>
    %c0_11 = arith.constant 0 : index
    %c128 = arith.constant 128 : index
    %16 = vector.load %arg9[%c0_11, %c128] : memref<4x896xbf16, #tpu.memory_space<vmem>>, vector<4x640xbf16>
    tpu.vector_store %arg9[%c0_11, %c128], %15 {strides = array<i32>} : memref<4x896xbf16, #tpu.memory_space<vmem>>, vector<4x640xbf16>,
    %c0_12 = arith.constant 0 : index
    %c17 = arith.constant 17 : index
    %17 = vector.load %arg9[%c0_12, %c17] : memref<4x896xbf16, #tpu.memory_space<vmem>>, vector<4x640xbf16>
    %c0_13 = arith.constant 0 : index
    %c0_14 = arith.constant 0 : index
    %18 = vector.load %arg10[%c0_13, %c0_14] : memref<112x640xbf16, #tpu.memory_space<vmem>>, vector<4x640xbf16>
    tpu.vector_store %arg10[%c0_13, %c0_14], %17 {strides = array<i32>} : memref<112x640xbf16, #tpu.memory_space<vmem>>, vector<4x640xbf16>,
    %c0_15 = arith.constant 0 : index
    %c18 = arith.constant 18 : index
    %19 = vector.load %arg9[%c0_15, %c18] : memref<4x896xbf16, #tpu.memory_space<vmem>>, vector<4x640xbf16>
    %c4 = arith.constant 4 : index
    %c0_16 = arith.constant 0 : index
    %20 = vector.load %arg10[%c4, %c0_16] : memref<112x640xbf16, #tpu.memory_space<vmem>>, vector<4x640xbf16>
    tpu.vector_store %arg10[%c4, %c0_16], %19 {strides = array<i32>} : memref<112x640xbf16, #tpu.memory_space<vmem>>, vector<4x640xbf16>,
    %c0_17 = arith.constant 0 : index
    %c19 = arith.constant 19 : index
    %21 = vector.load %arg9[%c0_17, %c19] : memref<4x896xbf16, #tpu.memory_space<vmem>>, vector<4x640xbf16>
    %c8 = arith.constant 8 : index
    %c0_18 = arith.constant 0 : index
    %22 = vector.load %arg10[%c8, %c0_18] : memref<112x640xbf16, #tpu.memory_space<vmem>>, vector<4x640xbf16>
    tpu.vector_store %arg10[%c8, %c0_18], %21 {strides = array<i32>} : memref<112x640xbf16, #tpu.memory_space<vmem>>, vector<4x640xbf16>,
    %c0_19 = arith.constant 0 : index
    %c27 = arith.constant 27 : index
    %23 = vector.load %arg9[%c0_19, %c27] : memref<4x896xbf16, #tpu.memory_space<vmem>>, vector<4x640xbf16>
    %c12 = arith.constant 12 : index
    %c0_20 = arith.constant 0 : index
    %24 = vector.load %arg10[%c12, %c0_20] : memref<112x640xbf16, #tpu.memory_space<vmem>>, vector<4x640xbf16>
    tpu.vector_store %arg10[%c12, %c0_20], %23 {strides = array<i32>} : memref<112x640xbf16, #tpu.memory_space<vmem>>, vector<4x640xbf16>,
    %c0_21 = arith.constant 0 : index
    %c28 = arith.constant 28 : index
    %25 = vector.load %arg9[%c0_21, %c28] : memref<4x896xbf16, #tpu.memory_space<vmem>>, vector<4x640xbf16>
    %c16 = arith.constant 16 : index
    %c0_22 = arith.constant 0 : index
    %26 = vector.load %arg10[%c16, %c0_22] : memref<112x640xbf16, #tpu.memory_space<vmem>>, vector<4x640xbf16>
    tpu.vector_store %arg10[%c16, %c0_22], %25 {strides = array<i32>} : memref<112x640xbf16, #tpu.memory_space<vmem>>, vector<4x640xbf16>,
    %c0_23 = arith.constant 0 : index
    %c29 = arith.constant 29 : index
    %27 = vector.load %arg9[%c0_23, %c29] : memref<4x896xbf16, #tpu.memory_space<vmem>>, vector<4x640xbf16>
    %c20 = arith.constant 20 : index
    %c0_24 = arith.constant 0 : index
    %28 = vector.load %arg10[%c20, %c0_24] : memref<112x640xbf16, #tpu.memory_space<vmem>>, vector<4x640xbf16>
    tpu.vector_store %arg10[%c20, %c0_24], %27 {strides = array<i32>} : memref<112x640xbf16, #tpu.memory_space<vmem>>, vector<4x640xbf16>,
    %c0_25 = arith.constant 0 : index
    %c37 = arith.constant 37 : index
    %29 = vector.load %arg9[%c0_25, %c37] : memref<4x896xbf16, #tpu.memory_space<vmem>>, vector<4x640xbf16>
    %c24 = arith.constant 24 : index
    %c0_26 = arith.constant 0 : index
    %30 = vector.load %arg10[%c24, %c0_26] : memref<112x640xbf16, #tpu.memory_space<vmem>>, vector<4x640xbf16>
    tpu.vector_store %arg10[%c24, %c0_26], %29 {strides = array<i32>} : memref<112x640xbf16, #tpu.memory_space<vmem>>, vector<4x640xbf16>,
    %c0_27 = arith.constant 0 : index
    %c38 = arith.constant 38 : index
    %31 = vector.load %arg9[%c0_27, %c38] : memref<4x896xbf16, #tpu.memory_space<vmem>>, vector<4x640xbf16>
    %c28_28 = arith.constant 28 : index
    %c0_29 = arith.constant 0 : index
    %32 = vector.load %arg10[%c28_28, %c0_29] : memref<112x640xbf16, #tpu.memory_space<vmem>>, vector<4x640xbf16>
    tpu.vector_store %arg10[%c28_28, %c0_29], %31 {strides = array<i32>} : memref<112x640xbf16, #tpu.memory_space<vmem>>, vector<4x640xbf16>,
    %c0_30 = arith.constant 0 : index
    %c39 = arith.constant 39 : index
    %33 = vector.load %arg9[%c0_30, %c39] : memref<4x896xbf16, #tpu.memory_space<vmem>>, vector<4x640xbf16>
    %c32 = arith.constant 32 : index
    %c0_31 = arith.constant 0 : index
    %34 = vector.load %arg10[%c32, %c0_31] : memref<112x640xbf16, #tpu.memory_space<vmem>>, vector<4x640xbf16>
    tpu.vector_store %arg10[%c32, %c0_31], %33 {strides = array<i32>} : memref<112x640xbf16, #tpu.memory_space<vmem>>, vector<4x640xbf16>,
    %c0_32 = arith.constant 0 : index
    %c117 = arith.constant 117 : index
    %35 = vector.load %arg9[%c0_32, %c117] : memref<4x896xbf16, #tpu.memory_space<vmem>>, vector<4x640xbf16>
    %c36 = arith.constant 36 : index
    %c0_33 = arith.constant 0 : index
    %36 = vector.load %arg10[%c36, %c0_33] : memref<112x640xbf16, #tpu.memory_space<vmem>>, vector<4x640xbf16>
    tpu.vector_store %arg10[%c36, %c0_33], %35 {strides = array<i32>} : memref<112x640xbf16, #tpu.memory_space<vmem>>, vector<4x640xbf16>,
    %c0_34 = arith.constant 0 : index
    %c118 = arith.constant 118 : index
    %37 = vector.load %arg9[%c0_34, %c118] : memref<4x896xbf16, #tpu.memory_space<vmem>>, vector<4x640xbf16>
    %c40 = arith.constant 40 : index
    %c0_35 = arith.constant 0 : index
    %38 = vector.load %arg10[%c40, %c0_35] : memref<112x640xbf16, #tpu.memory_space<vmem>>, vector<4x640xbf16>
    tpu.vector_store %arg10[%c40, %c0_35], %37 {strides = array<i32>} : memref<112x640xbf16, #tpu.memory_space<vmem>>, vector<4x640xbf16>,
    %c0_36 = arith.constant 0 : index
    %c119 = arith.constant 119 : index
    %39 = vector.load %arg9[%c0_36, %c119] : memref<4x896xbf16, #tpu.memory_space<vmem>>, vector<4x640xbf16>
    %c44 = arith.constant 44 : index
    %c0_37 = arith.constant 0 : index
    %40 = vector.load %arg10[%c44, %c0_37] : memref<112x640xbf16, #tpu.memory_space<vmem>>, vector<4x640xbf16>
    tpu.vector_store %arg10[%c44, %c0_37], %39 {strides = array<i32>} : memref<112x640xbf16, #tpu.memory_space<vmem>>, vector<4x640xbf16>,
    %c0_38 = arith.constant 0 : index
    %c127 = arith.constant 127 : index
    %41 = vector.load %arg9[%c0_38, %c127] : memref<4x896xbf16, #tpu.memory_space<vmem>>, vector<4x640xbf16>
    %c48 = arith.constant 48 : index
    %c0_39 = arith.constant 0 : index
    %42 = vector.load %arg10[%c48, %c0_39] : memref<112x640xbf16, #tpu.memory_space<vmem>>, vector<4x640xbf16>
    tpu.vector_store %arg10[%c48, %c0_39], %41 {strides = array<i32>} : memref<112x640xbf16, #tpu.memory_space<vmem>>, vector<4x640xbf16>,
    %c0_40 = arith.constant 0 : index
    %c128_41 = arith.constant 128 : index
    %43 = vector.load %arg9[%c0_40, %c128_41] : memref<4x896xbf16, #tpu.memory_space<vmem>>, vector<4x640xbf16>
    %c52 = arith.constant 52 : index
    %c0_42 = arith.constant 0 : index
    %44 = vector.load %arg10[%c52, %c0_42] : memref<112x640xbf16, #tpu.memory_space<vmem>>, vector<4x640xbf16>
    tpu.vector_store %arg10[%c52, %c0_42], %43 {strides = array<i32>} : memref<112x640xbf16, #tpu.memory_space<vmem>>, vector<4x640xbf16>,
    %c0_43 = arith.constant 0 : index
    %c129 = arith.constant 129 : index
    %45 = vector.load %arg9[%c0_43, %c129] : memref<4x896xbf16, #tpu.memory_space<vmem>>, vector<4x640xbf16>
    %c56 = arith.constant 56 : index
    %c0_44 = arith.constant 0 : index
    %46 = vector.load %arg10[%c56, %c0_44] : memref<112x640xbf16, #tpu.memory_space<vmem>>, vector<4x640xbf16>
    tpu.vector_store %arg10[%c56, %c0_44], %45 {strides = array<i32>} : memref<112x640xbf16, #tpu.memory_space<vmem>>, vector<4x640xbf16>,
    %c0_45 = arith.constant 0 : index
    %c137 = arith.constant 137 : index
    %47 = vector.load %arg9[%c0_45, %c137] : memref<4x896xbf16, #tpu.memory_space<vmem>>, vector<4x640xbf16>
    %c60 = arith.constant 60 : index
    %c0_46 = arith.constant 0 : index
    %48 = vector.load %arg10[%c60, %c0_46] : memref<112x640xbf16, #tpu.memory_space<vmem>>, vector<4x640xbf16>
    tpu.vector_store %arg10[%c60, %c0_46], %47 {strides = array<i32>} : memref<112x640xbf16, #tpu.memory_space<vmem>>, vector<4x640xbf16>,
    %c0_47 = arith.constant 0 : index
    %c138 = arith.constant 138 : index
    %49 = vector.load %arg9[%c0_47, %c138] : memref<4x896xbf16, #tpu.memory_space<vmem>>, vector<4x640xbf16>
    %c64 = arith.constant 64 : index
    %c0_48 = arith.constant 0 : index
    %50 = vector.load %arg10[%c64, %c0_48] : memref<112x640xbf16, #tpu.memory_space<vmem>>, vector<4x640xbf16>
    tpu.vector_store %arg10[%c64, %c0_48], %49 {strides = array<i32>} : memref<112x640xbf16, #tpu.memory_space<vmem>>, vector<4x640xbf16>,
    %c0_49 = arith.constant 0 : index
    %c139 = arith.constant 139 : index
    %51 = vector.load %arg9[%c0_49, %c139] : memref<4x896xbf16, #tpu.memory_space<vmem>>, vector<4x640xbf16>
    %c68 = arith.constant 68 : index
    %c0_50 = arith.constant 0 : index
    %52 = vector.load %arg10[%c68, %c0_50] : memref<112x640xbf16, #tpu.memory_space<vmem>>, vector<4x640xbf16>
    tpu.vector_store %arg10[%c68, %c0_50], %51 {strides = array<i32>} : memref<112x640xbf16, #tpu.memory_space<vmem>>, vector<4x640xbf16>,
    %c0_51 = arith.constant 0 : index
    %c217 = arith.constant 217 : index
    %53 = vector.load %arg9[%c0_51, %c217] : memref<4x896xbf16, #tpu.memory_space<vmem>>, vector<4x640xbf16>
    %c72 = arith.constant 72 : index
    %c0_52 = arith.constant 0 : index
    %54 = vector.load %arg10[%c72, %c0_52] : memref<112x640xbf16, #tpu.memory_space<vmem>>, vector<4x640xbf16>
    tpu.vector_store %arg10[%c72, %c0_52], %53 {strides = array<i32>} : memref<112x640xbf16, #tpu.memory_space<vmem>>, vector<4x640xbf16>,
    %c0_53 = arith.constant 0 : index
    %c218 = arith.constant 218 : index
    %55 = vector.load %arg9[%c0_53, %c218] : memref<4x896xbf16, #tpu.memory_space<vmem>>, vector<4x640xbf16>
    %c76 = arith.constant 76 : index
    %c0_54 = arith.constant 0 : index
    %56 = vector.load %arg10[%c76, %c0_54] : memref<112x640xbf16, #tpu.memory_space<vmem>>, vector<4x640xbf16>
    tpu.vector_store %arg10[%c76, %c0_54], %55 {strides = array<i32>} : memref<112x640xbf16, #tpu.memory_space<vmem>>, vector<4x640xbf16>,
    %c0_55 = arith.constant 0 : index
    %c219 = arith.constant 219 : index
    %57 = vector.load %arg9[%c0_55, %c219] : memref<4x896xbf16, #tpu.memory_space<vmem>>, vector<4x640xbf16>
    %c80 = arith.constant 80 : index
    %c0_56 = arith.constant 0 : index
    %58 = vector.load %arg10[%c80, %c0_56] : memref<112x640xbf16, #tpu.memory_space<vmem>>, vector<4x640xbf16>
    tpu.vector_store %arg10[%c80, %c0_56], %57 {strides = array<i32>} : memref<112x640xbf16, #tpu.memory_space<vmem>>, vector<4x640xbf16>,
    %c0_57 = arith.constant 0 : index
    %c227 = arith.constant 227 : index
    %59 = vector.load %arg9[%c0_57, %c227] : memref<4x896xbf16, #tpu.memory_space<vmem>>, vector<4x640xbf16>
    %c84 = arith.constant 84 : index
    %c0_58 = arith.constant 0 : index
    %60 = vector.load %arg10[%c84, %c0_58] : memref<112x640xbf16, #tpu.memory_space<vmem>>, vector<4x640xbf16>
    tpu.vector_store %arg10[%c84, %c0_58], %59 {strides = array<i32>} : memref<112x640xbf16, #tpu.memory_space<vmem>>, vector<4x640xbf16>,
    %c0_59 = arith.constant 0 : index
    %c228 = arith.constant 228 : index
    %61 = vector.load %arg9[%c0_59, %c228] : memref<4x896xbf16, #tpu.memory_space<vmem>>, vector<4x640xbf16>
    %c88 = arith.constant 88 : index
    %c0_60 = arith.constant 0 : index
    %62 = vector.load %arg10[%c88, %c0_60] : memref<112x640xbf16, #tpu.memory_space<vmem>>, vector<4x640xbf16>
    tpu.vector_store %arg10[%c88, %c0_60], %61 {strides = array<i32>} : memref<112x640xbf16, #tpu.memory_space<vmem>>, vector<4x640xbf16>,
    %c0_61 = arith.constant 0 : index
    %c229 = arith.constant 229 : index
    %63 = vector.load %arg9[%c0_61, %c229] : memref<4x896xbf16, #tpu.memory_space<vmem>>, vector<4x640xbf16>
    %c92 = arith.constant 92 : index
    %c0_62 = arith.constant 0 : index
    %64 = vector.load %arg10[%c92, %c0_62] : memref<112x640xbf16, #tpu.memory_space<vmem>>, vector<4x640xbf16>
    tpu.vector_store %arg10[%c92, %c0_62], %63 {strides = array<i32>} : memref<112x640xbf16, #tpu.memory_space<vmem>>, vector<4x640xbf16>,
    %c0_63 = arith.constant 0 : index
    %c237 = arith.constant 237 : index
    %65 = vector.load %arg9[%c0_63, %c237] : memref<4x896xbf16, #tpu.memory_space<vmem>>, vector<4x640xbf16>
    %c96 = arith.constant 96 : index
    %c0_64 = arith.constant 0 : index
    %66 = vector.load %arg10[%c96, %c0_64] : memref<112x640xbf16, #tpu.memory_space<vmem>>, vector<4x640xbf16>
    tpu.vector_store %arg10[%c96, %c0_64], %65 {strides = array<i32>} : memref<112x640xbf16, #tpu.memory_space<vmem>>, vector<4x640xbf16>,
    %c0_65 = arith.constant 0 : index
    %c238 = arith.constant 238 : index
    %67 = vector.load %arg9[%c0_65, %c238] : memref<4x896xbf16, #tpu.memory_space<vmem>>, vector<4x640xbf16>
    %c100 = arith.constant 100 : index
    %c0_66 = arith.constant 0 : index
    %68 = vector.load %arg10[%c100, %c0_66] : memref<112x640xbf16, #tpu.memory_space<vmem>>, vector<4x640xbf16>
    tpu.vector_store %arg10[%c100, %c0_66], %67 {strides = array<i32>} : memref<112x640xbf16, #tpu.memory_space<vmem>>, vector<4x640xbf16>,
    %c0_67 = arith.constant 0 : index
    %c239 = arith.constant 239 : index
    %69 = vector.load %arg9[%c0_67, %c239] : memref<4x896xbf16, #tpu.memory_space<vmem>>, vector<4x640xbf16>
    %c104 = arith.constant 104 : index
    %c0_68 = arith.constant 0 : index
    %70 = vector.load %arg10[%c104, %c0_68] : memref<112x640xbf16, #tpu.memory_space<vmem>>, vector<4x640xbf16>
    tpu.vector_store %arg10[%c104, %c0_68], %69 {strides = array<i32>} : memref<112x640xbf16, #tpu.memory_space<vmem>>, vector<4x640xbf16>,
    %cst_69 = arith.constant 0.000000e+00 : bf16
    %71 = vector.broadcast %cst_69 : bf16 to vector<4x640xbf16>
    %c108 = arith.constant 108 : index
    %c0_70 = arith.constant 0 : index
    %72 = vector.load %arg10[%c108, %c0_70] : memref<112x640xbf16, #tpu.memory_space<vmem>>, vector<4x640xbf16>
    tpu.vector_store %arg10[%c108, %c0_70], %71 {strides = array<i32>} : memref<112x640xbf16, #tpu.memory_space<vmem>>, vector<4x640xbf16>,
    %c0_71 = arith.constant 0 : index
    %c0_72 = arith.constant 0 : index
    %73 = vector.load %arg2[%c0_71, %c0_72] : memref<8x112xbf16, #tpu.memory_space<vmem>>, vector<8x112xbf16>
    %c0_73 = arith.constant 0 : index
    %c0_74 = arith.constant 0 : index
    %74 = vector.load %arg10[%c0_73, %c0_74] : memref<112x640xbf16, #tpu.memory_space<vmem>>, vector<112x640xbf16>
    %cst_75 = arith.constant dense<0.000000e+00> : vector<8x640xf32>
    %75 = tpu.matmul %73, %74, %cst_75 {dimension_numbers = #tpu.dot_dimension_numbers<[1], [0], [0], [1], [0, 0, 1, 1], [], []>} : vector<8x112xbf16>, vector<112x640xbf16>, vector<8x640xf32> -> vector<8x640xf32>
    %c0_76 = arith.constant 0 : index
    %c0_77 = arith.constant 0 : index
    %76 = vector.load %arg3[%c0_76, %c0_77] : memref<8x1xf32, #tpu.memory_space<vmem>>, vector<8x1xf32>
    %77 = vector.broadcast %76 : vector<8x1xf32> to vector<8x640xf32>
    %78 = arith.addf %75, %77 : vector<8x640xf32>
    %c0_78 = arith.constant 0 : index
    %c0_79 = arith.constant 0 : index
    %c0_80 = arith.constant 0 : index
    %79 = vector.load %arg7[%c0_78, %c0_79, %c0_80] : memref<1x8x640xf32, #tpu.memory_space<vmem>>, vector<1x8x640xf32>
    %80 = vector.shape_cast %79 : vector<1x8x640xf32> to vector<8x640xf32>
    %81 = vector.shape_cast %78 : vector<8x640xf32> to vector<1x8x640xf32>
    tpu.vector_store %arg7[%c0_78, %c0_79, %c0_80], %81 {strides = array<i32>} : memref<1x8x640xf32, #tpu.memory_space<vmem>>, vector<1x8x640xf32>,
    %cst_81 = arith.constant 0.000000e+00 : f32
    %82 = vector.broadcast %cst_81 : f32 to vector<1x640xf32>
    %83 = arith.cmpf ogt, %6, %82 : vector<1x640xf32>
    %cst_82 = arith.constant 0.000000e+00 : f32
    %84 = vector.shape_cast %83 : vector<1x640xi1> to vector<1x640xi1>
    %85 = vector.broadcast %84 : vector<1x640xi1> to vector<8x640xi1>
    %86 = vector.broadcast %cst_82 : f32 to vector<8x640xf32>
    %87 = arith.select %85, %78, %86 : vector<8x640xi1>, vector<8x640xf32>
    %c0_83 = arith.constant 0 : index
    %c0_84 = arith.constant 0 : index
    %88 = vector.load %arg8[%c0_83, %c0_84] : memref<8x2xf32, #tpu.memory_space<vmem>>, vector<8x1xf32>
    %cst_85 = arith.constant dense<0.000000e+00> : vector<8xf32>
    %89 = vector.multi_reduction <add>, %87, %cst_85 [1] : vector<8x640xf32> to vector<8xf32>
    %90 = vector.shape_cast %89 : vector<8xf32> to vector<8x1xf32>
    %91 = arith.addf %88, %90 : vector<8x1xf32>
    %c0_86 = arith.constant 0 : index
    %c0_87 = arith.constant 0 : index
    %92 = vector.load %arg8[%c0_86, %c0_87] : memref<8x2xf32, #tpu.memory_space<vmem>>, vector<8x1xf32>
    tpu.vector_store %arg8[%c0_86, %c0_87], %91 {strides = array<i32>} : memref<8x2xf32, #tpu.memory_space<vmem>>, vector<8x1xf32>,
    %c0_88 = arith.constant 0 : index
    %c1 = arith.constant 1 : index
    %93 = vector.load %arg8[%c0_88, %c1] : memref<8x2xf32, #tpu.memory_space<vmem>>, vector<8x1xf32>
    %94 = arith.mulf %87, %87 : vector<8x640xf32>
    %cst_89 = arith.constant dense<0.000000e+00> : vector<8xf32>
    %95 = vector.multi_reduction <add>, %94, %cst_89 [1] : vector<8x640xf32> to vector<8xf32>
    %96 = vector.shape_cast %95 : vector<8xf32> to vector<8x1xf32>
    %97 = arith.addf %93, %96 : vector<8x1xf32>
    %c0_90 = arith.constant 0 : index
    %c1_91 = arith.constant 1 : index
    %98 = vector.load %arg8[%c0_90, %c1_91] : memref<8x2xf32, #tpu.memory_space<vmem>>, vector<8x1xf32>
    tpu.vector_store %arg8[%c0_90, %c1_91], %97 {strides = array<i32>} : memref<8x2xf32, #tpu.memory_space<vmem>>, vector<8x1xf32>,
    return
  }
  func.func @transform_0(%arg0: i32) -> (i32, i32, i32, i32) {
    %c0_i32 = arith.constant 0 : i32
    %c0_i32_0 = arith.constant 0 : i32
    %c0_i32_1 = arith.constant 0 : i32
    %c0_i32_2 = arith.constant 0 : i32
    return %arg0, %c0_i32, %c0_i32_0, %c0_i32_1 : i32, i32, i32, i32
  }
  func.func @transform_1(%arg0: i32) -> (i32, i32) {
    %c0_i32 = arith.constant 0 : i32
    %c0_i32_0 = arith.constant 0 : i32
    %c0_i32_1 = arith.constant 0 : i32
    return %c0_i32, %c0_i32_0 : i32, i32
  }
  func.func @transform_2(%arg0: i32) -> (i32, i32) {
    %c0_i32 = arith.constant 0 : i32
    %c0_i32_0 = arith.constant 0 : i32
    %c0_i32_1 = arith.constant 0 : i32
    return %c0_i32, %c0_i32_0 : i32, i32
  }
  func.func @transform_3(%arg0: i32) -> (i32, i32) {
    %c0_i32 = arith.constant 0 : i32
    %c0_i32_0 = arith.constant 0 : i32
    %c0_i32_1 = arith.constant 0 : i32
    return %c0_i32, %c0_i32_0 : i32, i32
  }
  func.func @transform_4(%arg0: i32) -> (i32, i32) {
    %c0_i32 = arith.constant 0 : i32
    %c0_i32_0 = arith.constant 0 : i32
    %c0_i32_1 = arith.constant 0 : i32
    return %c0_i32, %c0_i32_0 : i32, i32
  }
  func.func @transform_5(%arg0: i32) -> (i32, i32) {
    %c0_i32 = arith.constant 0 : i32
    %c0_i32_0 = arith.constant 0 : i32
    %c0_i32_1 = arith.constant 0 : i32
    return %c0_i32, %c0_i32_0 : i32, i32
  }
  func.func @transform_6(%arg0: i32) -> (i32, i32, i32) {
    %c0_i32 = arith.constant 0 : i32
    %c0_i32_0 = arith.constant 0 : i32
    %c0_i32_1 = arith.constant 0 : i32
    return %arg0, %c0_i32, %c0_i32_0 : i32, i32, i32
  }
  func.func @transform_7(%arg0: i32) -> (i32, i32) {
    %c0_i32 = arith.constant 0 : i32
    %c0_i32_0 = arith.constant 0 : i32
    %c0_i32_1 = arith.constant 0 : i32
    return %c0_i32, %c0_i32_0 : i32, i32
  }
}

module attributes {stable_mosaic.version = 11 : i64} {
  func.func @_bn_relu_kernel(%arg0: i32, %arg1: memref<1x8x640xf32, #tpu.memory_space<vmem>>, %arg2: memref<8x1xf32, #tpu.memory_space<vmem>>, %arg3: memref<8x1xf32, #tpu.memory_space<vmem>>, %arg4: memref<1x8x640xf32, #tpu.memory_space<vmem>>) attributes {dimension_semantics = [#tpu.dimension_semantics<parallel>], iteration_bounds = array<i64: 2>, scalar_prefetch = 0 : i64, scratch_operands = 0 : i64, tpu.core_type = #tpu.core_type<tc>, window_params = [{transform_indices = @transform_0, window_bounds = array<i64: 1, 8, 640>}, {pipeline_mode = #tpu.pipeline_mode<synchronous>, transform_indices = @transform_1, window_bounds = array<i64: 8, 1>}, {pipeline_mode = #tpu.pipeline_mode<synchronous>, transform_indices = @transform_2, window_bounds = array<i64: 8, 1>}, {transform_indices = @transform_3, window_bounds = array<i64: 1, 8, 640>}]} {
    %c0 = arith.constant 0 : index
    %c0_0 = arith.constant 0 : index
    %c0_1 = arith.constant 0 : index
    %0 = vector.load %arg1[%c0, %c0_0, %c0_1] : memref<1x8x640xf32, #tpu.memory_space<vmem>>, vector<1x8x640xf32>
    %1 = vector.shape_cast %0 : vector<1x8x640xf32> to vector<8x640xf32>
    %c0_2 = arith.constant 0 : index
    %c0_3 = arith.constant 0 : index
    %2 = vector.load %arg2[%c0_2, %c0_3] : memref<8x1xf32, #tpu.memory_space<vmem>>, vector<8x1xf32>
    %3 = vector.broadcast %2 : vector<8x1xf32> to vector<8x640xf32>
    %4 = arith.mulf %1, %3 : vector<8x640xf32>
    %c0_4 = arith.constant 0 : index
    %c0_5 = arith.constant 0 : index
    %5 = vector.load %arg3[%c0_4, %c0_5] : memref<8x1xf32, #tpu.memory_space<vmem>>, vector<8x1xf32>
    %6 = vector.broadcast %5 : vector<8x1xf32> to vector<8x640xf32>
    %7 = arith.addf %4, %6 : vector<8x640xf32>
    %cst = arith.constant 0.000000e+00 : f32
    %8 = vector.broadcast %cst : f32 to vector<8x640xf32>
    %9 = arith.maximumf %7, %8 : vector<8x640xf32>
    %c0_6 = arith.constant 0 : index
    %c0_7 = arith.constant 0 : index
    %c0_8 = arith.constant 0 : index
    %10 = vector.load %arg4[%c0_6, %c0_7, %c0_8] : memref<1x8x640xf32, #tpu.memory_space<vmem>>, vector<1x8x640xf32>
    %11 = vector.shape_cast %10 : vector<1x8x640xf32> to vector<8x640xf32>
    %12 = vector.shape_cast %9 : vector<8x640xf32> to vector<1x8x640xf32>
    tpu.vector_store %arg4[%c0_6, %c0_7, %c0_8], %12 {strides = array<i32>} : memref<1x8x640xf32, #tpu.memory_space<vmem>>, vector<1x8x640xf32>,
    return
  }
  func.func @transform_0(%arg0: i32) -> (i32, i32, i32) {
    %c0_i32 = arith.constant 0 : i32
    %c0_i32_0 = arith.constant 0 : i32
    %c0_i32_1 = arith.constant 0 : i32
    return %arg0, %c0_i32, %c0_i32_0 : i32, i32, i32
  }
  func.func @transform_1(%arg0: i32) -> (i32, i32) {
    %c0_i32 = arith.constant 0 : i32
    %c0_i32_0 = arith.constant 0 : i32
    %c0_i32_1 = arith.constant 0 : i32
    return %c0_i32, %c0_i32_0 : i32, i32
  }
  func.func @transform_2(%arg0: i32) -> (i32, i32) {
    %c0_i32 = arith.constant 0 : i32
    %c0_i32_0 = arith.constant 0 : i32
    %c0_i32_1 = arith.constant 0 : i32
    return %c0_i32, %c0_i32_0 : i32, i32
  }
  func.func @transform_3(%arg0: i32) -> (i32, i32, i32) {
    %c0_i32 = arith.constant 0 : i32
    %c0_i32_0 = arith.constant 0 : i32
    %c0_i32_1 = arith.constant 0 : i32
    return %arg0, %c0_i32, %c0_i32_0 : i32, i32, i32
  }
}

module attributes {stable_mosaic.version = 11 : i64} {
  func.func @_conv_kernel(%arg0: i32, %arg1: memref<1x8x1x640xf32, #tpu.memory_space<vmem>>, %arg2: memref<8x216xbf16, #tpu.memory_space<vmem>>, %arg3: memref<8x1xf32, #tpu.memory_space<vmem>>, %arg4: memref<8x1xf32, #tpu.memory_space<vmem>>, %arg5: memref<8x1xf32, #tpu.memory_space<vmem>>, %arg6: memref<1x640xf32, #tpu.memory_space<vmem>>, %arg7: memref<1x8x640xf32, #tpu.memory_space<vmem>>, %arg8: memref<8x2xf32, #tpu.memory_space<vmem>>, %arg9: memref<8x896xbf16, #tpu.memory_space<vmem>>, %arg10: memref<216x640xbf16, #tpu.memory_space<vmem>>) attributes {dimension_semantics = [#tpu.dimension_semantics<arbitrary>], iteration_bounds = array<i64: 2>, scalar_prefetch = 0 : i64, scratch_operands = 2 : i64, tpu.core_type = #tpu.core_type<tc>, window_params = [{transform_indices = @transform_0, window_bounds = array<i64: 1, 8, 1, 640>}, {pipeline_mode = #tpu.pipeline_mode<synchronous>, transform_indices = @transform_1, window_bounds = array<i64: 8, 216>}, {pipeline_mode = #tpu.pipeline_mode<synchronous>, transform_indices = @transform_2, window_bounds = array<i64: 8, 1>}, {pipeline_mode = #tpu.pipeline_mode<synchronous>, transform_indices = @transform_3, window_bounds = array<i64: 8, 1>}, {pipeline_mode = #tpu.pipeline_mode<synchronous>, transform_indices = @transform_4, window_bounds = array<i64: 8, 1>}, {pipeline_mode = #tpu.pipeline_mode<synchronous>, transform_indices = @transform_5, window_bounds = array<i64: 1, 640>}, {transform_indices = @transform_6, window_bounds = array<i64: 1, 8, 640>}, {pipeline_mode = #tpu.pipeline_mode<synchronous>, transform_indices = @transform_7, window_bounds = array<i64: 8, 2>}]} {
    %c0_i32 = arith.constant 0 : i32
    %0 = arith.cmpi eq, %arg0, %c0_i32 : i32
    %1 = arith.extui %0 : i1 to i32
    %c0_i32_0 = arith.constant 0 : i32
    %2 = arith.cmpi ne, %1, %c0_i32_0 : i32
    scf.if %2 {
      %cst_94 = arith.constant 0.000000e+00 : f32
      %105 = vector.broadcast %cst_94 : f32 to vector<8x2xf32>
      %c0_95 = arith.constant 0 : index
      %c0_96 = arith.constant 0 : index
      %106 = vector.load %arg8[%c0_95, %c0_96] : memref<8x2xf32, #tpu.memory_space<vmem>>, vector<8x2xf32>
      tpu.vector_store %arg8[%c0_95, %c0_96], %105 {strides = array<i32>} : memref<8x2xf32, #tpu.memory_space<vmem>>, vector<8x2xf32>,
    } else {
    }
    %c0 = arith.constant 0 : index
    %c0_1 = arith.constant 0 : index
    %c0_2 = arith.constant 0 : index
    %c0_3 = arith.constant 0 : index
    %3 = vector.load %arg1[%c0, %c0_1, %c0_2, %c0_3] : memref<1x8x1x640xf32, #tpu.memory_space<vmem>>, vector<1x8x1x640xf32>
    %4 = vector.shape_cast %3 : vector<1x8x1x640xf32> to vector<8x1x640xf32>
    %5 = vector.shape_cast %4 : vector<8x1x640xf32> to vector<8x640xf32>
    %c0_4 = arith.constant 0 : index
    %c0_5 = arith.constant 0 : index
    %6 = vector.load %arg4[%c0_4, %c0_5] : memref<8x1xf32, #tpu.memory_space<vmem>>, vector<8x1xf32>
    %7 = vector.broadcast %6 : vector<8x1xf32> to vector<8x640xf32>
    %8 = arith.mulf %5, %7 : vector<8x640xf32>
    %c0_6 = arith.constant 0 : index
    %c0_7 = arith.constant 0 : index
    %9 = vector.load %arg5[%c0_6, %c0_7] : memref<8x1xf32, #tpu.memory_space<vmem>>, vector<8x1xf32>
    %10 = vector.broadcast %9 : vector<8x1xf32> to vector<8x640xf32>
    %11 = arith.addf %8, %10 : vector<8x640xf32>
    %cst = arith.constant 0.000000e+00 : f32
    %12 = vector.broadcast %cst : f32 to vector<8x640xf32>
    %13 = arith.maximumf %11, %12 : vector<8x640xf32>
    %c0_8 = arith.constant 0 : index
    %c0_9 = arith.constant 0 : index
    %14 = vector.load %arg6[%c0_8, %c0_9] : memref<1x640xf32, #tpu.memory_space<vmem>>, vector<1x640xf32>
    %cst_10 = arith.constant 0.000000e+00 : f32
    %15 = vector.broadcast %cst_10 : f32 to vector<1x640xf32>
    %16 = arith.cmpf ogt, %14, %15 : vector<1x640xf32>
    %cst_11 = arith.constant 0.000000e+00 : f32
    %17 = vector.shape_cast %16 : vector<1x640xi1> to vector<1x640xi1>
    %18 = vector.broadcast %17 : vector<1x640xi1> to vector<8x640xi1>
    %19 = vector.broadcast %cst_11 : f32 to vector<8x640xf32>
    %20 = arith.select %18, %13, %19 : vector<8x640xi1>, vector<8x640xf32>
    %cst_12 = arith.constant 0.000000e+00 : bf16
    %21 = vector.broadcast %cst_12 : bf16 to vector<8x896xbf16>
    %c0_13 = arith.constant 0 : index
    %c0_14 = arith.constant 0 : index
    %22 = vector.load %arg9[%c0_13, %c0_14] : memref<8x896xbf16, #tpu.memory_space<vmem>>, vector<8x896xbf16>
    tpu.vector_store %arg9[%c0_13, %c0_14], %21 {strides = array<i32>} : memref<8x896xbf16, #tpu.memory_space<vmem>>, vector<8x896xbf16>,
    %23 = arith.truncf %20 : vector<8x640xf32> to vector<8x640xbf16>
    %c0_15 = arith.constant 0 : index
    %c128 = arith.constant 128 : index
    %24 = vector.load %arg9[%c0_15, %c128] : memref<8x896xbf16, #tpu.memory_space<vmem>>, vector<8x640xbf16>
    tpu.vector_store %arg9[%c0_15, %c128], %23 {strides = array<i32>} : memref<8x896xbf16, #tpu.memory_space<vmem>>, vector<8x640xbf16>,
    %c0_16 = arith.constant 0 : index
    %c17 = arith.constant 17 : index
    %25 = vector.load %arg9[%c0_16, %c17] : memref<8x896xbf16, #tpu.memory_space<vmem>>, vector<8x640xbf16>
    %c0_17 = arith.constant 0 : index
    %c0_18 = arith.constant 0 : index
    %26 = vector.load %arg10[%c0_17, %c0_18] : memref<216x640xbf16, #tpu.memory_space<vmem>>, vector<8x640xbf16>
    tpu.vector_store %arg10[%c0_17, %c0_18], %25 {strides = array<i32>} : memref<216x640xbf16, #tpu.memory_space<vmem>>, vector<8x640xbf16>,
    %c0_19 = arith.constant 0 : index
    %c18 = arith.constant 18 : index
    %27 = vector.load %arg9[%c0_19, %c18] : memref<8x896xbf16, #tpu.memory_space<vmem>>, vector<8x640xbf16>
    %c8 = arith.constant 8 : index
    %c0_20 = arith.constant 0 : index
    %28 = vector.load %arg10[%c8, %c0_20] : memref<216x640xbf16, #tpu.memory_space<vmem>>, vector<8x640xbf16>
    tpu.vector_store %arg10[%c8, %c0_20], %27 {strides = array<i32>} : memref<216x640xbf16, #tpu.memory_space<vmem>>, vector<8x640xbf16>,
    %c0_21 = arith.constant 0 : index
    %c19 = arith.constant 19 : index
    %29 = vector.load %arg9[%c0_21, %c19] : memref<8x896xbf16, #tpu.memory_space<vmem>>, vector<8x640xbf16>
    %c16 = arith.constant 16 : index
    %c0_22 = arith.constant 0 : index
    %30 = vector.load %arg10[%c16, %c0_22] : memref<216x640xbf16, #tpu.memory_space<vmem>>, vector<8x640xbf16>
    tpu.vector_store %arg10[%c16, %c0_22], %29 {strides = array<i32>} : memref<216x640xbf16, #tpu.memory_space<vmem>>, vector<8x640xbf16>,
    %c0_23 = arith.constant 0 : index
    %c27 = arith.constant 27 : index
    %31 = vector.load %arg9[%c0_23, %c27] : memref<8x896xbf16, #tpu.memory_space<vmem>>, vector<8x640xbf16>
    %c24 = arith.constant 24 : index
    %c0_24 = arith.constant 0 : index
    %32 = vector.load %arg10[%c24, %c0_24] : memref<216x640xbf16, #tpu.memory_space<vmem>>, vector<8x640xbf16>
    tpu.vector_store %arg10[%c24, %c0_24], %31 {strides = array<i32>} : memref<216x640xbf16, #tpu.memory_space<vmem>>, vector<8x640xbf16>,
    %c0_25 = arith.constant 0 : index
    %c28 = arith.constant 28 : index
    %33 = vector.load %arg9[%c0_25, %c28] : memref<8x896xbf16, #tpu.memory_space<vmem>>, vector<8x640xbf16>
    %c32 = arith.constant 32 : index
    %c0_26 = arith.constant 0 : index
    %34 = vector.load %arg10[%c32, %c0_26] : memref<216x640xbf16, #tpu.memory_space<vmem>>, vector<8x640xbf16>
    tpu.vector_store %arg10[%c32, %c0_26], %33 {strides = array<i32>} : memref<216x640xbf16, #tpu.memory_space<vmem>>, vector<8x640xbf16>,
    %c0_27 = arith.constant 0 : index
    %c29 = arith.constant 29 : index
    %35 = vector.load %arg9[%c0_27, %c29] : memref<8x896xbf16, #tpu.memory_space<vmem>>, vector<8x640xbf16>
    %c40 = arith.constant 40 : index
    %c0_28 = arith.constant 0 : index
    %36 = vector.load %arg10[%c40, %c0_28] : memref<216x640xbf16, #tpu.memory_space<vmem>>, vector<8x640xbf16>
    tpu.vector_store %arg10[%c40, %c0_28], %35 {strides = array<i32>} : memref<216x640xbf16, #tpu.memory_space<vmem>>, vector<8x640xbf16>,
    %c0_29 = arith.constant 0 : index
    %c37 = arith.constant 37 : index
    %37 = vector.load %arg9[%c0_29, %c37] : memref<8x896xbf16, #tpu.memory_space<vmem>>, vector<8x640xbf16>
    %c48 = arith.constant 48 : index
    %c0_30 = arith.constant 0 : index
    %38 = vector.load %arg10[%c48, %c0_30] : memref<216x640xbf16, #tpu.memory_space<vmem>>, vector<8x640xbf16>
    tpu.vector_store %arg10[%c48, %c0_30], %37 {strides = array<i32>} : memref<216x640xbf16, #tpu.memory_space<vmem>>, vector<8x640xbf16>,
    %c0_31 = arith.constant 0 : index
    %c38 = arith.constant 38 : index
    %39 = vector.load %arg9[%c0_31, %c38] : memref<8x896xbf16, #tpu.memory_space<vmem>>, vector<8x640xbf16>
    %c56 = arith.constant 56 : index
    %c0_32 = arith.constant 0 : index
    %40 = vector.load %arg10[%c56, %c0_32] : memref<216x640xbf16, #tpu.memory_space<vmem>>, vector<8x640xbf16>
    tpu.vector_store %arg10[%c56, %c0_32], %39 {strides = array<i32>} : memref<216x640xbf16, #tpu.memory_space<vmem>>, vector<8x640xbf16>,
    %c0_33 = arith.constant 0 : index
    %c39 = arith.constant 39 : index
    %41 = vector.load %arg9[%c0_33, %c39] : memref<8x896xbf16, #tpu.memory_space<vmem>>, vector<8x640xbf16>
    %c64 = arith.constant 64 : index
    %c0_34 = arith.constant 0 : index
    %42 = vector.load %arg10[%c64, %c0_34] : memref<216x640xbf16, #tpu.memory_space<vmem>>, vector<8x640xbf16>
    tpu.vector_store %arg10[%c64, %c0_34], %41 {strides = array<i32>} : memref<216x640xbf16, #tpu.memory_space<vmem>>, vector<8x640xbf16>,
    %c0_35 = arith.constant 0 : index
    %c117 = arith.constant 117 : index
    %43 = vector.load %arg9[%c0_35, %c117] : memref<8x896xbf16, #tpu.memory_space<vmem>>, vector<8x640xbf16>
    %c72 = arith.constant 72 : index
    %c0_36 = arith.constant 0 : index
    %44 = vector.load %arg10[%c72, %c0_36] : memref<216x640xbf16, #tpu.memory_space<vmem>>, vector<8x640xbf16>
    tpu.vector_store %arg10[%c72, %c0_36], %43 {strides = array<i32>} : memref<216x640xbf16, #tpu.memory_space<vmem>>, vector<8x640xbf16>,
    %c0_37 = arith.constant 0 : index
    %c118 = arith.constant 118 : index
    %45 = vector.load %arg9[%c0_37, %c118] : memref<8x896xbf16, #tpu.memory_space<vmem>>, vector<8x640xbf16>
    %c80 = arith.constant 80 : index
    %c0_38 = arith.constant 0 : index
    %46 = vector.load %arg10[%c80, %c0_38] : memref<216x640xbf16, #tpu.memory_space<vmem>>, vector<8x640xbf16>
    tpu.vector_store %arg10[%c80, %c0_38], %45 {strides = array<i32>} : memref<216x640xbf16, #tpu.memory_space<vmem>>, vector<8x640xbf16>,
    %c0_39 = arith.constant 0 : index
    %c119 = arith.constant 119 : index
    %47 = vector.load %arg9[%c0_39, %c119] : memref<8x896xbf16, #tpu.memory_space<vmem>>, vector<8x640xbf16>
    %c88 = arith.constant 88 : index
    %c0_40 = arith.constant 0 : index
    %48 = vector.load %arg10[%c88, %c0_40] : memref<216x640xbf16, #tpu.memory_space<vmem>>, vector<8x640xbf16>
    tpu.vector_store %arg10[%c88, %c0_40], %47 {strides = array<i32>} : memref<216x640xbf16, #tpu.memory_space<vmem>>, vector<8x640xbf16>,
    %c0_41 = arith.constant 0 : index
    %c127 = arith.constant 127 : index
    %49 = vector.load %arg9[%c0_41, %c127] : memref<8x896xbf16, #tpu.memory_space<vmem>>, vector<8x640xbf16>
    %c96 = arith.constant 96 : index
    %c0_42 = arith.constant 0 : index
    %50 = vector.load %arg10[%c96, %c0_42] : memref<216x640xbf16, #tpu.memory_space<vmem>>, vector<8x640xbf16>
    tpu.vector_store %arg10[%c96, %c0_42], %49 {strides = array<i32>} : memref<216x640xbf16, #tpu.memory_space<vmem>>, vector<8x640xbf16>,
    %c0_43 = arith.constant 0 : index
    %c128_44 = arith.constant 128 : index
    %51 = vector.load %arg9[%c0_43, %c128_44] : memref<8x896xbf16, #tpu.memory_space<vmem>>, vector<8x640xbf16>
    %c104 = arith.constant 104 : index
    %c0_45 = arith.constant 0 : index
    %52 = vector.load %arg10[%c104, %c0_45] : memref<216x640xbf16, #tpu.memory_space<vmem>>, vector<8x640xbf16>
    tpu.vector_store %arg10[%c104, %c0_45], %51 {strides = array<i32>} : memref<216x640xbf16, #tpu.memory_space<vmem>>, vector<8x640xbf16>,
    %c0_46 = arith.constant 0 : index
    %c129 = arith.constant 129 : index
    %53 = vector.load %arg9[%c0_46, %c129] : memref<8x896xbf16, #tpu.memory_space<vmem>>, vector<8x640xbf16>
    %c112 = arith.constant 112 : index
    %c0_47 = arith.constant 0 : index
    %54 = vector.load %arg10[%c112, %c0_47] : memref<216x640xbf16, #tpu.memory_space<vmem>>, vector<8x640xbf16>
    tpu.vector_store %arg10[%c112, %c0_47], %53 {strides = array<i32>} : memref<216x640xbf16, #tpu.memory_space<vmem>>, vector<8x640xbf16>,
    %c0_48 = arith.constant 0 : index
    %c137 = arith.constant 137 : index
    %55 = vector.load %arg9[%c0_48, %c137] : memref<8x896xbf16, #tpu.memory_space<vmem>>, vector<8x640xbf16>
    %c120 = arith.constant 120 : index
    %c0_49 = arith.constant 0 : index
    %56 = vector.load %arg10[%c120, %c0_49] : memref<216x640xbf16, #tpu.memory_space<vmem>>, vector<8x640xbf16>
    tpu.vector_store %arg10[%c120, %c0_49], %55 {strides = array<i32>} : memref<216x640xbf16, #tpu.memory_space<vmem>>, vector<8x640xbf16>,
    %c0_50 = arith.constant 0 : index
    %c138 = arith.constant 138 : index
    %57 = vector.load %arg9[%c0_50, %c138] : memref<8x896xbf16, #tpu.memory_space<vmem>>, vector<8x640xbf16>
    %c128_51 = arith.constant 128 : index
    %c0_52 = arith.constant 0 : index
    %58 = vector.load %arg10[%c128_51, %c0_52] : memref<216x640xbf16, #tpu.memory_space<vmem>>, vector<8x640xbf16>
    tpu.vector_store %arg10[%c128_51, %c0_52], %57 {strides = array<i32>} : memref<216x640xbf16, #tpu.memory_space<vmem>>, vector<8x640xbf16>,
    %c0_53 = arith.constant 0 : index
    %c139 = arith.constant 139 : index
    %59 = vector.load %arg9[%c0_53, %c139] : memref<8x896xbf16, #tpu.memory_space<vmem>>, vector<8x640xbf16>
    %c136 = arith.constant 136 : index
    %c0_54 = arith.constant 0 : index
    %60 = vector.load %arg10[%c136, %c0_54] : memref<216x640xbf16, #tpu.memory_space<vmem>>, vector<8x640xbf16>
    tpu.vector_store %arg10[%c136, %c0_54], %59 {strides = array<i32>} : memref<216x640xbf16, #tpu.memory_space<vmem>>, vector<8x640xbf16>,
    %c0_55 = arith.constant 0 : index
    %c217 = arith.constant 217 : index
    %61 = vector.load %arg9[%c0_55, %c217] : memref<8x896xbf16, #tpu.memory_space<vmem>>, vector<8x640xbf16>
    %c144 = arith.constant 144 : index
    %c0_56 = arith.constant 0 : index
    %62 = vector.load %arg10[%c144, %c0_56] : memref<216x640xbf16, #tpu.memory_space<vmem>>, vector<8x640xbf16>
    tpu.vector_store %arg10[%c144, %c0_56], %61 {strides = array<i32>} : memref<216x640xbf16, #tpu.memory_space<vmem>>, vector<8x640xbf16>,
    %c0_57 = arith.constant 0 : index
    %c218 = arith.constant 218 : index
    %63 = vector.load %arg9[%c0_57, %c218] : memref<8x896xbf16, #tpu.memory_space<vmem>>, vector<8x640xbf16>
    %c152 = arith.constant 152 : index
    %c0_58 = arith.constant 0 : index
    %64 = vector.load %arg10[%c152, %c0_58] : memref<216x640xbf16, #tpu.memory_space<vmem>>, vector<8x640xbf16>
    tpu.vector_store %arg10[%c152, %c0_58], %63 {strides = array<i32>} : memref<216x640xbf16, #tpu.memory_space<vmem>>, vector<8x640xbf16>,
    %c0_59 = arith.constant 0 : index
    %c219 = arith.constant 219 : index
    %65 = vector.load %arg9[%c0_59, %c219] : memref<8x896xbf16, #tpu.memory_space<vmem>>, vector<8x640xbf16>
    %c160 = arith.constant 160 : index
    %c0_60 = arith.constant 0 : index
    %66 = vector.load %arg10[%c160, %c0_60] : memref<216x640xbf16, #tpu.memory_space<vmem>>, vector<8x640xbf16>
    tpu.vector_store %arg10[%c160, %c0_60], %65 {strides = array<i32>} : memref<216x640xbf16, #tpu.memory_space<vmem>>, vector<8x640xbf16>,
    %c0_61 = arith.constant 0 : index
    %c227 = arith.constant 227 : index
    %67 = vector.load %arg9[%c0_61, %c227] : memref<8x896xbf16, #tpu.memory_space<vmem>>, vector<8x640xbf16>
    %c168 = arith.constant 168 : index
    %c0_62 = arith.constant 0 : index
    %68 = vector.load %arg10[%c168, %c0_62] : memref<216x640xbf16, #tpu.memory_space<vmem>>, vector<8x640xbf16>
    tpu.vector_store %arg10[%c168, %c0_62], %67 {strides = array<i32>} : memref<216x640xbf16, #tpu.memory_space<vmem>>, vector<8x640xbf16>,
    %c0_63 = arith.constant 0 : index
    %c228 = arith.constant 228 : index
    %69 = vector.load %arg9[%c0_63, %c228] : memref<8x896xbf16, #tpu.memory_space<vmem>>, vector<8x640xbf16>
    %c176 = arith.constant 176 : index
    %c0_64 = arith.constant 0 : index
    %70 = vector.load %arg10[%c176, %c0_64] : memref<216x640xbf16, #tpu.memory_space<vmem>>, vector<8x640xbf16>
    tpu.vector_store %arg10[%c176, %c0_64], %69 {strides = array<i32>} : memref<216x640xbf16, #tpu.memory_space<vmem>>, vector<8x640xbf16>,
    %c0_65 = arith.constant 0 : index
    %c229 = arith.constant 229 : index
    %71 = vector.load %arg9[%c0_65, %c229] : memref<8x896xbf16, #tpu.memory_space<vmem>>, vector<8x640xbf16>
    %c184 = arith.constant 184 : index
    %c0_66 = arith.constant 0 : index
    %72 = vector.load %arg10[%c184, %c0_66] : memref<216x640xbf16, #tpu.memory_space<vmem>>, vector<8x640xbf16>
    tpu.vector_store %arg10[%c184, %c0_66], %71 {strides = array<i32>} : memref<216x640xbf16, #tpu.memory_space<vmem>>, vector<8x640xbf16>,
    %c0_67 = arith.constant 0 : index
    %c237 = arith.constant 237 : index
    %73 = vector.load %arg9[%c0_67, %c237] : memref<8x896xbf16, #tpu.memory_space<vmem>>, vector<8x640xbf16>
    %c192 = arith.constant 192 : index
    %c0_68 = arith.constant 0 : index
    %74 = vector.load %arg10[%c192, %c0_68] : memref<216x640xbf16, #tpu.memory_space<vmem>>, vector<8x640xbf16>
    tpu.vector_store %arg10[%c192, %c0_68], %73 {strides = array<i32>} : memref<216x640xbf16, #tpu.memory_space<vmem>>, vector<8x640xbf16>,
    %c0_69 = arith.constant 0 : index
    %c238 = arith.constant 238 : index
    %75 = vector.load %arg9[%c0_69, %c238] : memref<8x896xbf16, #tpu.memory_space<vmem>>, vector<8x640xbf16>
    %c200 = arith.constant 200 : index
    %c0_70 = arith.constant 0 : index
    %76 = vector.load %arg10[%c200, %c0_70] : memref<216x640xbf16, #tpu.memory_space<vmem>>, vector<8x640xbf16>
    tpu.vector_store %arg10[%c200, %c0_70], %75 {strides = array<i32>} : memref<216x640xbf16, #tpu.memory_space<vmem>>, vector<8x640xbf16>,
    %c0_71 = arith.constant 0 : index
    %c239 = arith.constant 239 : index
    %77 = vector.load %arg9[%c0_71, %c239] : memref<8x896xbf16, #tpu.memory_space<vmem>>, vector<8x640xbf16>
    %c208 = arith.constant 208 : index
    %c0_72 = arith.constant 0 : index
    %78 = vector.load %arg10[%c208, %c0_72] : memref<216x640xbf16, #tpu.memory_space<vmem>>, vector<8x640xbf16>
    tpu.vector_store %arg10[%c208, %c0_72], %77 {strides = array<i32>} : memref<216x640xbf16, #tpu.memory_space<vmem>>, vector<8x640xbf16>,
    %c0_73 = arith.constant 0 : index
    %c0_74 = arith.constant 0 : index
    %79 = vector.load %arg2[%c0_73, %c0_74] : memref<8x216xbf16, #tpu.memory_space<vmem>>, vector<8x216xbf16>
    %c0_75 = arith.constant 0 : index
    %c0_76 = arith.constant 0 : index
    %80 = vector.load %arg10[%c0_75, %c0_76] : memref<216x640xbf16, #tpu.memory_space<vmem>>, vector<216x640xbf16>
    %cst_77 = arith.constant dense<0.000000e+00> : vector<8x640xf32>
    %81 = tpu.matmul %79, %80, %cst_77 {dimension_numbers = #tpu.dot_dimension_numbers<[1], [0], [0], [1], [0, 0, 1, 1], [], []>} : vector<8x216xbf16>, vector<216x640xbf16>, vector<8x640xf32> -> vector<8x640xf32>
    %c0_78 = arith.constant 0 : index
    %c0_79 = arith.constant 0 : index
    %82 = vector.load %arg3[%c0_78, %c0_79] : memref<8x1xf32, #tpu.memory_space<vmem>>, vector<8x1xf32>
    %83 = vector.broadcast %82 : vector<8x1xf32> to vector<8x640xf32>
    %84 = arith.addf %81, %83 : vector<8x640xf32>
    %c0_80 = arith.constant 0 : index
    %c0_81 = arith.constant 0 : index
    %c0_82 = arith.constant 0 : index
    %85 = vector.load %arg7[%c0_80, %c0_81, %c0_82] : memref<1x8x640xf32, #tpu.memory_space<vmem>>, vector<1x8x640xf32>
    %86 = vector.shape_cast %85 : vector<1x8x640xf32> to vector<8x640xf32>
    %87 = vector.shape_cast %84 : vector<8x640xf32> to vector<1x8x640xf32>
    tpu.vector_store %arg7[%c0_80, %c0_81, %c0_82], %87 {strides = array<i32>} : memref<1x8x640xf32, #tpu.memory_space<vmem>>, vector<1x8x640xf32>,
    %cst_83 = arith.constant 0.000000e+00 : f32
    %88 = vector.broadcast %cst_83 : f32 to vector<1x640xf32>
    %89 = arith.cmpf ogt, %14, %88 : vector<1x640xf32>
    %cst_84 = arith.constant 0.000000e+00 : f32
    %90 = vector.shape_cast %89 : vector<1x640xi1> to vector<1x640xi1>
    %91 = vector.broadcast %90 : vector<1x640xi1> to vector<8x640xi1>
    %92 = vector.broadcast %cst_84 : f32 to vector<8x640xf32>
    %93 = arith.select %91, %84, %92 : vector<8x640xi1>, vector<8x640xf32>
    %c0_85 = arith.constant 0 : index
    %c0_86 = arith.constant 0 : index
    %94 = vector.load %arg8[%c0_85, %c0_86] : memref<8x2xf32, #tpu.memory_space<vmem>>, vector<8x1xf32>
    %cst_87 = arith.constant dense<0.000000e+00> : vector<8xf32>
    %95 = vector.multi_reduction <add>, %93, %cst_87 [1] : vector<8x640xf32> to vector<8xf32>
    %96 = vector.shape_cast %95 : vector<8xf32> to vector<8x1xf32>
    %97 = arith.addf %94, %96 : vector<8x1xf32>
    %c0_88 = arith.constant 0 : index
    %c0_89 = arith.constant 0 : index
    %98 = vector.load %arg8[%c0_88, %c0_89] : memref<8x2xf32, #tpu.memory_space<vmem>>, vector<8x1xf32>
    tpu.vector_store %arg8[%c0_88, %c0_89], %97 {strides = array<i32>} : memref<8x2xf32, #tpu.memory_space<vmem>>, vector<8x1xf32>,
    %c0_90 = arith.constant 0 : index
    %c1 = arith.constant 1 : index
    %99 = vector.load %arg8[%c0_90, %c1] : memref<8x2xf32, #tpu.memory_space<vmem>>, vector<8x1xf32>
    %100 = arith.mulf %93, %93 : vector<8x640xf32>
    %cst_91 = arith.constant dense<0.000000e+00> : vector<8xf32>
    %101 = vector.multi_reduction <add>, %100, %cst_91 [1] : vector<8x640xf32> to vector<8xf32>
    %102 = vector.shape_cast %101 : vector<8xf32> to vector<8x1xf32>
    %103 = arith.addf %99, %102 : vector<8x1xf32>
    %c0_92 = arith.constant 0 : index
    %c1_93 = arith.constant 1 : index
    %104 = vector.load %arg8[%c0_92, %c1_93] : memref<8x2xf32, #tpu.memory_space<vmem>>, vector<8x1xf32>
    tpu.vector_store %arg8[%c0_92, %c1_93], %103 {strides = array<i32>} : memref<8x2xf32, #tpu.memory_space<vmem>>, vector<8x1xf32>,
    return
  }
  func.func @transform_0(%arg0: i32) -> (i32, i32, i32, i32) {
    %c0_i32 = arith.constant 0 : i32
    %c0_i32_0 = arith.constant 0 : i32
    %c0_i32_1 = arith.constant 0 : i32
    %c0_i32_2 = arith.constant 0 : i32
    return %arg0, %c0_i32, %c0_i32_0, %c0_i32_1 : i32, i32, i32, i32
  }
  func.func @transform_1(%arg0: i32) -> (i32, i32) {
    %c0_i32 = arith.constant 0 : i32
    %c0_i32_0 = arith.constant 0 : i32
    %c0_i32_1 = arith.constant 0 : i32
    return %c0_i32, %c0_i32_0 : i32, i32
  }
  func.func @transform_2(%arg0: i32) -> (i32, i32) {
    %c0_i32 = arith.constant 0 : i32
    %c0_i32_0 = arith.constant 0 : i32
    %c0_i32_1 = arith.constant 0 : i32
    return %c0_i32, %c0_i32_0 : i32, i32
  }
  func.func @transform_3(%arg0: i32) -> (i32, i32) {
    %c0_i32 = arith.constant 0 : i32
    %c0_i32_0 = arith.constant 0 : i32
    %c0_i32_1 = arith.constant 0 : i32
    return %c0_i32, %c0_i32_0 : i32, i32
  }
  func.func @transform_4(%arg0: i32) -> (i32, i32) {
    %c0_i32 = arith.constant 0 : i32
    %c0_i32_0 = arith.constant 0 : i32
    %c0_i32_1 = arith.constant 0 : i32
    return %c0_i32, %c0_i32_0 : i32, i32
  }
  func.func @transform_5(%arg0: i32) -> (i32, i32) {
    %c0_i32 = arith.constant 0 : i32
    %c0_i32_0 = arith.constant 0 : i32
    %c0_i32_1 = arith.constant 0 : i32
    return %c0_i32, %c0_i32_0 : i32, i32
  }
  func.func @transform_6(%arg0: i32) -> (i32, i32, i32) {
    %c0_i32 = arith.constant 0 : i32
    %c0_i32_0 = arith.constant 0 : i32
    %c0_i32_1 = arith.constant 0 : i32
    return %arg0, %c0_i32, %c0_i32_0 : i32, i32, i32
  }
  func.func @transform_7(%arg0: i32) -> (i32, i32) {
    %c0_i32 = arith.constant 0 : i32
    %c0_i32_0 = arith.constant 0 : i32
    %c0_i32_1 = arith.constant 0 : i32
    return %c0_i32, %c0_i32_0 : i32, i32
  }
}

</mosaic_0001>

<llo_original>
// kernel: down_forward.3
$region0: #{down_forward.3}
  #allocation0 [shape = 'u32[]', space=smem, size = 0x4, offset = 0x4, fixed_abs, tag = 'smem constant byte address 0x4 - core index']
  #allocation1 [shape = 'u32[144,128]{1,0:T(1,128)}', space=vmem, size = 0x12000, scoped, tag = 'internal scratch']
  #allocation2 [shape = 'bf16[4,896]{1,0:T(4,128)(2,1)}', space=vmem, size = 0x1c00, scoped, tag = 'scratch operand']
  #allocation3 [shape = 'bf16[112,640]{1,0:T(16,128)(2,1)}', space=vmem, size = 0x23000, scoped, tag = 'scratch operand']
  %s0 = inlined_call_operand.vmem [shape: f32[2,4,8,640], index: 0, kind: input, shape index: {}]
  %s1 = inlined_call_operand.vmem [shape: bf16[8,112], index: 1, kind: input, shape index: {}]
  %s2 = inlined_call_operand.vmem [shape: f32[8,1], index: 2, kind: input, shape index: {}]
  %s3 = inlined_call_operand.vmem [shape: f32[4,1], index: 3, kind: input, shape index: {}]
  %s4 = inlined_call_operand.vmem [shape: f32[4,1], index: 4, kind: input, shape index: {}]
  %s5 = inlined_call_operand.vmem [shape: f32[1,640], index: 5, kind: input, shape index: {}]
  %s6 = inlined_call_operand.vmem [shape: f32[2,8,640], index: 6, kind: output, shape index: {0}]
  %s7 = inlined_call_operand.vmem [shape: f32[8,2], index: 7, kind: output, shape index: {1}]
  %8 = xla_tuple %s6, %s7
  %s9 = sld [smem:[#allocation0]]
  $region69: #{down_forward.3} parent=0
    _
  %s11 = ssub.s32 1, %s9
  %s12 = scalar_select 0, %s11, %s9
  loop: start=0, step=1, limit=4
  $region2: #{down_forward.3} parent=0 // loop_pre_header
    _
  $region3: #{down_forward.3} parent=0 // loop_header
    %s14 = sphi 0, %s18
    %p15 = scmp.ge.s32.totalorder %s14, 4
    %s24 = sphi 0, %s26
    %s27 = sphi 0, %s24
    %s28 = sphi 0, %s27
    %s44 = sphi 0, %s28
    %s48 = sphi 0, %s48
    %s50 = sphi 0, %s48
    %s51 = sphi 0, %s50
    %s65 = sphi 0, %s51
    %s69 = sphi 0, %s69
    %s71 = sphi 0, %s69
    %s72 = sphi 0, %s71
    %s86 = sphi 0, %s72
    %s90 = sphi 0, %s90
    %s92 = sphi 0, %s90
    %s93 = sphi 0, %s92
    %s107 = sphi 0, %s93
    %s111 = sphi 0, %s111
    %s113 = sphi 0, %s111
    %s114 = sphi 0, %s113
    %s128 = sphi 0, %s114
    %s132 = sphi 0, %s132
    %s134 = sphi 0, %s132
    %s135 = sphi 0, %s134
    %s149 = sphi 0, %s135
    %s155 = sphi 0, %s157
    %s158 = sphi 0, %s155
    %s159 = sphi 0, %s158
    %s175 = sphi 0, %s159
    %s179 = sphi 0, %s179
    %s181 = sphi 0, %s179
    %s182 = sphi 0, %s181
    %s196 = sphi 0, %s182
  $region4: #{down_forward.3} parent=0 // loop_header_branch
    %17 = sbr.rel (%p15) target = $region8
  $region5: #{down_forward.3} parent=0 // loop_body
    %s19 = ssub.s32 %s14, 1
    %s20 = ssub.s32 %s14, 2
    %s21 = sadd.s32 %s14, 1
    %s22 = ssub.s32 %s14, %s21
    %p23 = scmp.eq.s32.totalorder %s22, 0
    %s25 = sadd.s32 %s24, 1
    %s26 = scalar_select %p23, %s24, %s25
    %p29 = pneg %p23
    %p30 = scmp.eq.s32.totalorder %s14, 1
    %p31 = por %p29, %p30
    %p32 = scmp.ne.s32.totalorder %s24, %s27
    %p33 = scmp.eq.s32.totalorder %s14, 0
    %p34 = por %p32, %p33
    %p35 = scmp.ne.s32.totalorder %s24, %s27
    %p36 = scmp.eq.s32.totalorder %s19, 1
    %p37 = por %p35, %p36
    %p38 = scmp.ne.s32.totalorder %s27, %s28
    %p39 = scmp.eq.s32.totalorder %s19, 0
    %p40 = por %p38, %p39
    %p41 = scmp.ne.s32.totalorder %s27, %s28
    %p42 = scmp.eq.s32.totalorder %s20, 1
    %p43 = por %p41, %p42
    %p45 = scmp.ne.s32.totalorder %s28, %s44
    %p46 = scmp.eq.s32.totalorder %s20, 0
    %p47 = por %p45, %p46
    %s49 = sadd.s32 %s48, 1
    %p52 = scmp.eq.s32.totalorder %s14, 1
    %p53 = scmp.ne.s32.totalorder %s48, %s50
    %p54 = scmp.eq.s32.totalorder %s14, 0
    %p55 = por %p53, %p54
    %p56 = scmp.ne.s32.totalorder %s48, %s50
    %p57 = scmp.eq.s32.totalorder %s19, 1
    %p58 = por %p56, %p57
    %p59 = scmp.ne.s32.totalorder %s50, %s51
    %p60 = scmp.eq.s32.totalorder %s19, 0
    %p61 = por %p59, %p60
    %p62 = scmp.ne.s32.totalorder %s50, %s51
    %p63 = scmp.eq.s32.totalorder %s20, 1
    %p64 = por %p62, %p63
    %p66 = scmp.ne.s32.totalorder %s51, %s65
    %p67 = scmp.eq.s32.totalorder %s20, 0
    %p68 = por %p66, %p67
    %s70 = sadd.s32 %s69, 1
    %p73 = scmp.eq.s32.totalorder %s14, 1
    %p74 = scmp.ne.s32.totalorder %s69, %s71
    %p75 = scmp.eq.s32.totalorder %s14, 0
    %p76 = por %p74, %p75
    %p77 = scmp.ne.s32.totalorder %s69, %s71
    %p78 = scmp.eq.s32.totalorder %s19, 1
    %p79 = por %p77, %p78
    %p80 = scmp.ne.s32.totalorder %s71, %s72
    %p81 = scmp.eq.s32.totalorder %s19, 0
    %p82 = por %p80, %p81
    %p83 = scmp.ne.s32.totalorder %s71, %s72
    %p84 = scmp.eq.s32.totalorder %s20, 1
    %p85 = por %p83, %p84
    %p87 = scmp.ne.s32.totalorder %s72, %s86
    %p88 = scmp.eq.s32.totalorder %s20, 0
    %p89 = por %p87, %p88
    %s91 = sadd.s32 %s90, 1
    %p94 = scmp.eq.s32.totalorder %s14, 1
    %p95 = scmp.ne.s32.totalorder %s90, %s92
    %p96 = scmp.eq.s32.totalorder %s14, 0
    %p97 = por %p95, %p96
    %p98 = scmp.ne.s32.totalorder %s90, %s92
    %p99 = scmp.eq.s32.totalorder %s19, 1
    %p100 = por %p98, %p99
    %p101 = scmp.ne.s32.totalorder %s92, %s93
    %p102 = scmp.eq.s32.totalorder %s19, 0
    %p103 = por %p101, %p102
    %p104 = scmp.ne.s32.totalorder %s92, %s93
    %p105 = scmp.eq.s32.totalorder %s20, 1
    %p106 = por %p104, %p105
    %p108 = scmp.ne.s32.totalorder %s93, %s107
    %p109 = scmp.eq.s32.totalorder %s20, 0
    %p110 = por %p108, %p109
    %s112 = sadd.s32 %s111, 1
    %p115 = scmp.eq.s32.totalorder %s14, 1
    %p116 = scmp.ne.s32.totalorder %s111, %s113
    %p117 = scmp.eq.s32.totalorder %s14, 0
    %p118 = por %p116, %p117
    %p119 = scmp.ne.s32.totalorder %s111, %s113
    %p120 = scmp.eq.s32.totalorder %s19, 1
    %p121 = por %p119, %p120
    %p122 = scmp.ne.s32.totalorder %s113, %s114
    %p123 = scmp.eq.s32.totalorder %s19, 0
    %p124 = por %p122, %p123
    %p125 = scmp.ne.s32.totalorder %s113, %s114
    %p126 = scmp.eq.s32.totalorder %s20, 1
    %p127 = por %p125, %p126
    %p129 = scmp.ne.s32.totalorder %s114, %s128
    %p130 = scmp.eq.s32.totalorder %s20, 0
    %p131 = por %p129, %p130
    %s133 = sadd.s32 %s132, 1
    %p136 = scmp.eq.s32.totalorder %s14, 1
    %p137 = scmp.ne.s32.totalorder %s132, %s134
    %p138 = scmp.eq.s32.totalorder %s14, 0
    %p139 = por %p137, %p138
    %p140 = scmp.ne.s32.totalorder %s132, %s134
    %p141 = scmp.eq.s32.totalorder %s19, 1
    %p142 = por %p140, %p141
    %p143 = scmp.ne.s32.totalorder %s134, %s135
    %p144 = scmp.eq.s32.totalorder %s19, 0
    %p145 = por %p143, %p144
    %p146 = scmp.ne.s32.totalorder %s134, %s135
    %p147 = scmp.eq.s32.totalorder %s20, 1
    %p148 = por %p146, %p147
    %p150 = scmp.ne.s32.totalorder %s135, %s149
    %p151 = scmp.eq.s32.totalorder %s20, 0
    %p152 = por %p150, %p151
    %s153 = ssub.s32 %s14, %s21
    %p154 = scmp.eq.s32.totalorder %s153, 0
    %s156 = sadd.s32 %s155, 1
    %s157 = scalar_select %p154, %s155, %s156
    %p160 = pneg %p154
    %p161 = scmp.eq.s32.totalorder %s14, 1
    %p162 = por %p160, %p161
    %p163 = scmp.ne.s32.totalorder %s155, %s158
    %p164 = scmp.eq.s32.totalorder %s14, 0
    %p165 = por %p163, %p164
    %p166 = scmp.ne.s32.totalorder %s155, %s158
    %p167 = scmp.eq.s32.totalorder %s19, 1
    %p168 = por %p166, %p167
    %p169 = scmp.ne.s32.totalorder %s158, %s159
    %p170 = scmp.eq.s32.totalorder %s19, 0
    %p171 = por %p169, %p170
    %p172 = scmp.ne.s32.totalorder %s158, %s159
    %p173 = scmp.eq.s32.totalorder %s20, 1
    %p174 = por %p172, %p173
    %p176 = scmp.ne.s32.totalorder %s159, %s175
    %p177 = scmp.eq.s32.totalorder %s20, 0
    %p178 = por %p176, %p177
    %s180 = sadd.s32 %s179, 1
    %p183 = scmp.eq.s32.totalorder %s14, 1
    %p184 = scmp.ne.s32.totalorder %s179, %s181
    %p185 = scmp.eq.s32.totalorder %s14, 0
    %p186 = por %p184, %p185
    %p187 = scmp.ne.s32.totalorder %s179, %s181
    %p188 = scmp.eq.s32.totalorder %s19, 1
    %p189 = por %p187, %p188
    %p190 = scmp.ne.s32.totalorder %s181, %s182
    %p191 = scmp.eq.s32.totalorder %s19, 0
    %p192 = por %p190, %p191
    %p193 = scmp.ne.s32.totalorder %s181, %s182
    %p194 = scmp.eq.s32.totalorder %s20, 1
    %p195 = por %p193, %p194
    %p197 = scmp.ne.s32.totalorder %s182, %s196
    %p198 = scmp.eq.s32.totalorder %s20, 0
    %p199 = por %p197, %p198
    %p200 = scmp.le.s32.totalorder 1, %s14
    %p201 = scmp.lt.s32.totalorder %s14, 3
    %p202 = pnand %p200, %p201
    %p203 = pneg %p202
    // Predicated region
    $region9: #{down_forward.3} parent=5 // pred_check
      _
    $region10: #{down_forward.3} parent=5 // pred_check_branch
      %205 = sbr.rel (%p202) target = $region12
    $region11: #{down_forward.3} parent=5 // pred_region
      %s206 = ssub.s32 %s14, 1
      // Predicated region
      $region13: #{down_forward.3} parent=11 // pred_check
        %p207 = pneg %p61
      $region14: #{down_forward.3} parent=11 // pred_check_branch
        %209 = sbr.rel (%p207) target = $region16
      $region15: #{down_forward.3} parent=11 // pred_region
        _
      $region16: #{down_forward.3} parent=11 // pred_fallthru
        _
      // Predicated region
      $region17: #{down_forward.3} parent=11 // pred_check
        %p210 = pneg %p82
      $region18: #{down_forward.3} parent=11 // pred_check_branch
        %212 = sbr.rel (%p210) target = $region20
      $region19: #{down_forward.3} parent=11 // pred_region
        _
      $region20: #{down_forward.3} parent=11 // pred_fallthru
        _
      // Predicated region
      $region21: #{down_forward.3} parent=11 // pred_check
        %p213 = pneg %p103
      $region22: #{down_forward.3} parent=11 // pred_check_branch
        %215 = sbr.rel (%p213) target = $region24
      $region23: #{down_forward.3} parent=11 // pred_region
        _
      $region24: #{down_forward.3} parent=11 // pred_fallthru
        _
      // Predicated region
      $region25: #{down_forward.3} parent=11 // pred_check
        %p216 = pneg %p124
      $region26: #{down_forward.3} parent=11 // pred_check_branch
        %218 = sbr.rel (%p216) target = $region28
      $region27: #{down_forward.3} parent=11 // pred_region
        _
      $region28: #{down_forward.3} parent=11 // pred_fallthru
        _
      // Predicated region
      $region29: #{down_forward.3} parent=11 // pred_check
        %p219 = pneg %p145
      $region30: #{down_forward.3} parent=11 // pred_check_branch
        %221 = sbr.rel (%p219) target = $region32
      $region31: #{down_forward.3} parent=11 // pred_region
        _
      $region32: #{down_forward.3} parent=11 // pred_fallthru
        _
    $region12: #{down_forward.3} parent=5 // pred_fallthru
      _
    %p222 = scmp.lt.s32.totalorder %s14, 2
    // Predicated region
    $region33: #{down_forward.3} parent=5 // pred_check
      %p223 = pneg %p222
    $region34: #{down_forward.3} parent=5 // pred_check_branch
      %225 = sbr.rel (%p223) target = $region36
    $region35: #{down_forward.3} parent=5 // pred_region
      // Predicated region
      $region37: #{down_forward.3} parent=35 // pred_check
        %p226 = pneg %p34
      $region38: #{down_forward.3} parent=35 // pred_check_branch
        %228 = sbr.rel (%p226) target = $region40
      $region39: #{down_forward.3} parent=35 // pred_region
        %p229 = scmp.lt.s32.totalorder %s14, 1
        %s230 = scalar_select %p229, %s14, 1
        %s231 = smul.addr %s230, 20
        %s232 = smul.addr %s231, 8
        %s233 = scalar_lea.vmem %s0, %s232
      $region40: #{down_forward.3} parent=35 // pred_fallthru
        _
    $region36: #{down_forward.3} parent=5 // pred_fallthru
      _
    %p234 = scmp.le.s32.totalorder 1, %s14
    %p235 = scmp.lt.s32.totalorder %s14, 3
    %p236 = pnand %p234, %p235
    %p237 = pneg %p236
    // Predicated region
    $region41: #{down_forward.3} parent=5 // pred_check
      _
    $region42: #{down_forward.3} parent=5 // pred_check_branch
      %239 = sbr.rel (%p236) target = $region44
    $region43: #{down_forward.3} parent=5 // pred_region
      %s240 = ssub.s32 %s14, 1
      %p241 = scmp.lt.s32.totalorder %s19, 1
      %s242 = scalar_select %p241, %s19, 1
      %s243 = smul.addr %s242, 20
      %s244 = smul.addr %s243, 8
      %s245 = scalar_lea.vmem %s0, %s244
      %p246 = pneg %p40
      %p247 = pneg %p37
      %p248 = pneg %p61
      %p249 = pneg %p58
      %p250 = pneg %p82
      %p251 = pneg %p79
      %p252 = pneg %p103
      %p253 = pneg %p100
      %p254 = pneg %p124
      %p255 = pneg %p121
      %p256 = pneg %p145
      %p257 = pneg %p142
      %p258 = pneg %p171
      %p259 = pneg %p168
      %p260 = scmp.lt.s32.totalorder %s19, 1
      %s261 = scalar_select %p260, %s19, 1
      %s262 = smul.addr %s261, 5
      %s263 = smul.addr %s262, 8
      %s264 = scalar_lea.vmem %s6, %s263
      %p265 = pneg %p192
      %p266 = pneg %p189
      %p267 = scmp.lt.s32.totalorder %s19, 1
      %s268 = scalar_select %p267, %s19, 1
      %s269 = smul.addr %s268, 20
      %s270 = smul.addr %s269, 8
      %s271 = scalar_lea.vmem %s0, %s270
      %p272 = scmp.lt.s32.totalorder %s19, 1
      %s273 = scalar_select %p272, %s19, 1
      %s274 = smul.addr %s273, 5
      %s275 = smul.addr %s274, 8
      %s276 = scalar_lea.vmem %s6, %s275
      %p278 = scmp.eq.s32.totalorder %s19, 0
      // Predicated region
      $region45: #{down_forward.3} parent=43 // pred_check
        %p279 = pneg %p278
      $region46: #{down_forward.3} parent=43 // pred_check_branch
        %281 = sbr.rel (%p279) target = $region48
      $region47: #{down_forward.3} parent=43 // pred_region
        %vm282 = vcmask 15360
        %283 = vst.msk [vmem:[%s7] sm:$0xff] %vm282, 0.0
      $region48: #{down_forward.3} parent=43 // pred_fallthru
        _
      %v284 = vld [vmem:[%s271] sm:$0xff]
      %v285 = vld [vmem:[%s271 + $0x8] sm:$0xff]
      %v286 = vld [vmem:[%s271 + $0x10] sm:$0xff]
      %v287 = vld [vmem:[%s271 + $0x18] sm:$0xff]
      %v288 = vld [vmem:[%s271 + $0x20] sm:$0xff]
      %v289 = vld [vmem:[%s271 + $0x28] sm:$0xff]
      %v290 = vld [vmem:[%s271 + $0x30] sm:$0xff]
      %v291 = vld [vmem:[%s271 + $0x38] sm:$0xff]
      %v292 = vld [vmem:[%s271 + $0x40] sm:$0xff]
      %v293 = vld [vmem:[%s271 + $0x48] sm:$0xff]
      %v294 = vld [vmem:[%s271 + $0x50] sm:$0xff]
      %v295 = vld [vmem:[%s271 + $0x58] sm:$0xff]
      %v296 = vld [vmem:[%s271 + $0x60] sm:$0xff]
      %v297 = vld [vmem:[%s271 + $0x68] sm:$0xff]
      %v298 = vld [vmem:[%s271 + $0x70] sm:$0xff]
      %v299 = vld [vmem:[%s271 + $0x78] sm:$0xff]
      %v300 = vld [vmem:[%s271 + $0x80] sm:$0xff]
      %v301 = vld [vmem:[%s271 + $0x88] sm:$0xff]
      %v302 = vld [vmem:[%s271 + $0x90] sm:$0xff]
      %v303 = vld [vmem:[%s271 + $0x98] sm:$0xff]
      %v304 = vrot.slane %v284, 4
      %v305 = vmax.f32 %v284, %v304
      %v306 = vrot.slane %v305, 2
      %v307 = vmax.f32 %v305, %v306
      %v308 = vrot.slane %v307, 1
      %v309 = vmax.f32 %v307, %v308
      %v310 = vrot.slane %v285, 4
      %v311 = vmax.f32 %v285, %v310
      %v312 = vrot.slane %v311, 2
      %v313 = vmax.f32 %v311, %v312
      %v314 = vrot.slane %v313, 1
      %v315 = vmax.f32 %v313, %v314
      %v316 = vrot.slane %v286, 4
      %v317 = vmax.f32 %v286, %v316
      %v318 = vrot.slane %v317, 2
      %v319 = vmax.f32 %v317, %v318
      %v320 = vrot.slane %v319, 1
      %v321 = vmax.f32 %v319, %v320
      %v322 = vrot.slane %v287, 4
      %v323 = vmax.f32 %v287, %v322
      %v324 = vrot.slane %v323, 2
      %v325 = vmax.f32 %v323, %v324
      %v326 = vrot.slane %v325, 1
      %v327 = vmax.f32 %v325, %v326
      %v328 = vrot.slane %v288, 4
      %v329 = vmax.f32 %v288, %v328
      %v330 = vrot.slane %v329, 2
      %v331 = vmax.f32 %v329, %v330
      %v332 = vrot.slane %v331, 1
      %v333 = vmax.f32 %v331, %v332
      %v334 = vrot.slane %v289, 4
      %v335 = vmax.f32 %v289, %v334
      %v336 = vrot.slane %v335, 2
      %v337 = vmax.f32 %v335, %v336
      %v338 = vrot.slane %v337, 1
      %v339 = vmax.f32 %v337, %v338
      %v340 = vrot.slane %v290, 4
      %v341 = vmax.f32 %v290, %v340
      %v342 = vrot.slane %v341, 2
      %v343 = vmax.f32 %v341, %v342
      %v344 = vrot.slane %v343, 1
      %v345 = vmax.f32 %v343, %v344
      %v346 = vrot.slane %v291, 4
      %v347 = vmax.f32 %v291, %v346
      %v348 = vrot.slane %v347, 2
      %v349 = vmax.f32 %v347, %v348
      %v350 = vrot.slane %v349, 1
      %v351 = vmax.f32 %v349, %v350
      %v352 = vrot.slane %v292, 4
      %v353 = vmax.f32 %v292, %v352
      %v354 = vrot.slane %v353, 2
      %v355 = vmax.f32 %v353, %v354
      %v356 = vrot.slane %v355, 1
      %v357 = vmax.f32 %v355, %v356
      %v358 = vrot.slane %v293, 4
      %v359 = vmax.f32 %v293, %v358
      %v360 = vrot.slane %v359, 2
      %v361 = vmax.f32 %v359, %v360
      %v362 = vrot.slane %v361, 1
      %v363 = vmax.f32 %v361, %v362
      %v364 = vrot.slane %v294, 4
      %v365 = vmax.f32 %v294, %v364
      %v366 = vrot.slane %v365, 2
      %v367 = vmax.f32 %v365, %v366
      %v368 = vrot.slane %v367, 1
      %v369 = vmax.f32 %v367, %v368
      %v370 = vrot.slane %v295, 4
      %v371 = vmax.f32 %v295, %v370
      %v372 = vrot.slane %v371, 2
      %v373 = vmax.f32 %v371, %v372
      %v374 = vrot.slane %v373, 1
      %v375 = vmax.f32 %v373, %v374
      %v376 = vrot.slane %v296, 4
      %v377 = vmax.f32 %v296, %v376
      %v378 = vrot.slane %v377, 2
      %v379 = vmax.f32 %v377, %v378
      %v380 = vrot.slane %v379, 1
      %v381 = vmax.f32 %v379, %v380
      %v382 = vrot.slane %v297, 4
      %v383 = vmax.f32 %v297, %v382
      %v384 = vrot.slane %v383, 2
      %v385 = vmax.f32 %v383, %v384
      %v386 = vrot.slane %v385, 1
      %v387 = vmax.f32 %v385, %v386
      %v388 = vrot.slane %v298, 4
      %v389 = vmax.f32 %v298, %v388
      %v390 = vrot.slane %v389, 2
      %v391 = vmax.f32 %v389, %v390
      %v392 = vrot.slane %v391, 1
      %v393 = vmax.f32 %v391, %v392
      %v394 = vrot.slane %v299, 4
      %v395 = vmax.f32 %v299, %v394
      %v396 = vrot.slane %v395, 2
      %v397 = vmax.f32 %v395, %v396
      %v398 = vrot.slane %v397, 1
      %v399 = vmax.f32 %v397, %v398
      %v400 = vrot.slane %v300, 4
      %v401 = vmax.f32 %v300, %v400
      %v402 = vrot.slane %v401, 2
      %v403 = vmax.f32 %v401, %v402
      %v404 = vrot.slane %v403, 1
      %v405 = vmax.f32 %v403, %v404
      %v406 = vrot.slane %v301, 4
      %v407 = vmax.f32 %v301, %v406
      %v408 = vrot.slane %v407, 2
      %v409 = vmax.f32 %v407, %v408
      %v410 = vrot.slane %v409, 1
      %v411 = vmax.f32 %v409, %v410
      %v412 = vrot.slane %v302, 4
      %v413 = vmax.f32 %v302, %v412
      %v414 = vrot.slane %v413, 2
      %v415 = vmax.f32 %v413, %v414
      %v416 = vrot.slane %v415, 1
      %v417 = vmax.f32 %v415, %v416
      %v418 = vrot.slane %v303, 4
      %v419 = vmax.f32 %v303, %v418
      %v420 = vrot.slane %v419, 2
      %v421 = vmax.f32 %v419, %v420
      %v422 = vrot.slane %v421, 1
      %v423 = vmax.f32 %v421, %v422
      %v424 = vld [vmem:[%s5] sm:$0x1f]
      %vm425 = vcmp.gt.f32.partialorder %v424, 0.0
      %v426 = vsel %vm425, 1, 0
      %v427 = vlaneseq
      %v428 = vshrl.u32 %v427, 7
      %v429 = vsub.s32 0, %v428
      %v430 = vrot.slane %v426, %v429
      %v431 = vlaneseq
      %v432 = vshrl.u32 %v431, 7
      %v433 = vsub.s32 1, %v432
      %v434 = vrot.slane %v426, %v433
      %v435 = vlaneseq
      %v436 = vshrl.u32 %v435, 7
      %v437 = vsub.s32 2, %v436
      %v438 = vrot.slane %v426, %v437
      %v439 = vlaneseq
      %v440 = vshrl.u32 %v439, 7
      %v441 = vsub.s32 3, %v440
      %v442 = vrot.slane %v426, %v441
      %v443 = vlaneseq
      %v444 = vshrl.u32 %v443, 7
      %v445 = vsub.s32 4, %v444
      %v446 = vrot.slane %v426, %v445
      %vm447 = vcmp.eq.s32.totalorder %v430, 1
      %vm448 = vcmp.eq.s32.totalorder %v434, 1
      %vm449 = vcmp.eq.s32.totalorder %v438, 1
      %vm450 = vcmp.eq.s32.totalorder %v442, 1
      %vm451 = vcmp.eq.s32.totalorder %v446, 1
      %vm472 = vcmask 1041409
      %v473 = vsel %vm472, %v339, %v309
      %vm474 = vcmask 1042434
      %v475 = vsel %vm474, %v369, %v473
      %vm476 = vcmask 1043459
      %v477 = vsel %vm476, %v399, %v475
      %v478 = vsel %vm472, %v345, %v315
      %v479 = vsel %vm474, %v375, %v478
      %v480 = vsel %vm476, %v405, %v479
      %v481 = vsel %vm472, %v351, %v321
      %v482 = vsel %vm474, %v381, %v481
      %v483 = vsel %vm476, %v411, %v482
      %v484 = vsel %vm472, %v357, %v327
      %v485 = vsel %vm474, %v387, %v484
      %v486 = vsel %vm476, %v417, %v485
      %v487 = vsel %vm472, %v363, %v333
      %v488 = vsel %vm474, %v393, %v487
      %v489 = vsel %vm476, %v423, %v488
      %v495 = vsel %vm447, %v477, 0.0
      %v496 = vsel %vm448, %v480, 0.0
      %v497 = vsel %vm449, %v483, 0.0
      %v498 = vsel %vm450, %v486, 0.0
      %v499 = vsel %vm451, %v489, 0.0
      %500 = vst [vmem:[#allocation2] sm:$0xff] 0
      %501 = vst [vmem:[#allocation2 + $0x8] sm:$0x3f] 0
      %v502 = vpack.c.bf16 %v495, %v495
      %v503 = vpack.c.bf16 %v496, %v496
      %v504 = vpack.c.bf16 %v497, %v497
      %v505 = vpack.c.bf16 %v498, %v498
      %v506 = vpack.c.bf16 %v499, %v499
      %v512 = vcombine.low %v502, %v503
      %v513 = vcombine.low %v504, %v505
      %v515 = vunpack.c.l.s4 1983009808
      %v516 = vunpack.c.0.s8 %v515
      %v517 = vlaneseq
      %v518 = vshrl.u32 %v517, 7
      %v519 = vsub.s32 %v516, %v518
      %v520 = vrot.slane %v512, %v519
      %v522 = vunpack.c.l.s4 1983009808
      %v523 = vunpack.c.0.s8 %v522
      %v524 = vlaneseq
      %v525 = vshrl.u32 %v524, 7
      %v526 = vsub.s32 %v523, %v525
      %v527 = vrot.slane %v513, %v526
      %v528 = vcombine.low %v520, %v527
      %v530 = vunpack.c.l.s4 1983009808
      %v531 = vunpack.c.0.s8 %v530
      %v532 = vlaneseq
      %v533 = vshrl.u32 %v532, 7
      %v534 = vsub.s32 %v531, %v533
      %v535 = vrot.slane %v506, %v534
      %538 = vst [vmem:[#allocation2 + $0x2] sm:$0xff] %v528
      %539 = vst [vmem:[#allocation2 + $0xa] sm:$0x3] %v535
      %v540 = vld [vmem:[#allocation2] sm:$0xff]
      %v541 = vld [vmem:[#allocation2 + $0x8] sm:$0xf]
      %v544 = vcombine.high %v540, %v540
      %v546 = vunpack.c.l.s4 1983009808
      %v547 = vunpack.c.0.s8 %v546
      %v548 = vlaneseq
      %v549 = vshrl.u32 %v548, 7
      %v550 = vsub.s32 %v547, %v549
      %v551 = vrot.slane %v540, %v550
      %v553 = vunpack.c.l.s4 1983009808
      %v554 = vunpack.c.0.s8 %v553
      %v555 = vlaneseq
      %v556 = vshrl.u32 %v555, 7
      %v557 = vsub.s32 %v554, %v556
      %v558 = vrot.slane %v544, %v557
      %v559 = vcombine.high %v551, %v551
      %v560 = vcombine.high %v558, %v558
      %v562 = vunpack.c.l.s4 1983009808
      %v563 = vunpack.c.0.s8 %v562
      %v564 = vlaneseq
      %v565 = vshrl.u32 %v564, 7
      %v566 = vsub.s32 %v563, %v565
      %v567 = vrot.slane %v541, %v566
      %v568 = vcombine.high %v567, %v567
      %569 = vrot.lane.b32.xlu0 %v551, 111
      %v570 = vpop.permute.xlu0 %569
      %571 = vrot.lane.b32.xlu0 %v559, 111
      %v572 = vpop.permute.xlu0 %571
      %573 = vrot.lane.b32.xlu0 %v558, 111
      %v574 = vpop.permute.xlu0 %573
      %575 = vrot.lane.b32.xlu0 %v560, 111
      %v576 = vpop.permute.xlu0 %575
      %577 = vrot.lane.b32.xlu0 %v567, 111
      %v578 = vpop.permute.xlu0 %577
      %579 = vrot.lane.b32.xlu0 %v568, 111
      %v580 = vpop.permute.xlu0 %579
      %vm581 = vcmask 908288
      %v582 = vsel %vm581, %v570, %v572
      %v583 = vsel %vm581, %v572, %v574
      %v584 = vsel %vm581, %v574, %v576
      %v585 = vsel %vm581, %v576, %v578
      %v586 = vsel %vm581, %v578, %v580
      %592 = vst [vmem:[#allocation3] sm:$0x3] %v582
      %593 = vst [vmem:[#allocation3 + $0x8] sm:$0x3] %v583
      %594 = vst [vmem:[#allocation3 + $0x10] sm:$0x3] %v584
      %595 = vst [vmem:[#allocation3 + $0x18] sm:$0x3] %v585
      %596 = vst [vmem:[#allocation3 + $0x20] sm:$0x3] %v586
      %v597 = vld [vmem:[#allocation2] sm:$0xff]
      %v598 = vld [vmem:[#allocation2 + $0x8] sm:$0xf]
      %v601 = vcombine.low %v597, %v597
      %v603 = vunpack.c.l.s4 1983009808
      %v604 = vunpack.c.0.s8 %v603
      %v605 = vlaneseq
      %v606 = vshrl.u32 %v605, 7
      %v607 = vsub.s32 %v604, %v606
      %v608 = vrot.slane %v601, %v607
      %v610 = vunpack.c.l.s4 1983009808
      %v611 = vunpack.c.0.s8 %v610
      %v612 = vlaneseq
      %v613 = vshrl.u32 %v612, 7
      %v614 = vsub.s32 %v611, %v613
      %v615 = vrot.slane %v597, %v614
      %v616 = vcombine.high %v608, %v608
      %v617 = vcombine.high %v615, %v615
      %v618 = vcombine.low %v598, %v598
      %v620 = vunpack.c.l.s4 1983009808
      %v621 = vunpack.c.0.s8 %v620
      %v622 = vlaneseq
      %v623 = vshrl.u32 %v622, 7
      %v624 = vsub.s32 %v621, %v623
      %v625 = vrot.slane %v618, %v624
      %v626 = vcombine.high %v625, %v625
      %627 = vrot.lane.b32.xlu0 %v608, 110
      %v628 = vpop.permute.xlu0 %627
      %629 = vrot.lane.b32.xlu0 %v616, 110
      %v630 = vpop.permute.xlu0 %629
      %631 = vrot.lane.b32.xlu0 %v615, 110
      %v632 = vpop.permute.xlu0 %631
      %633 = vrot.lane.b32.xlu0 %v617, 110
      %v634 = vpop.permute.xlu0 %633
      %635 = vrot.lane.b32.xlu0 %v625, 110
      %v636 = vpop.permute.xlu0 %635
      %637 = vrot.lane.b32.xlu0 %v626, 110
      %v638 = vpop.permute.xlu0 %637
      %vm639 = vcmask 900096
      %v640 = vsel %vm639, %v628, %v630
      %v641 = vsel %vm639, %v630, %v632
      %v642 = vsel %vm639, %v632, %v634
      %v643 = vsel %vm639, %v634, %v636
      %v644 = vsel %vm639, %v636, %v638
      %650 = vst [vmem:[#allocation3] sm:$0xc] %v640
      %651 = vst [vmem:[#allocation3 + $0x8] sm:$0xc] %v641
      %652 = vst [vmem:[#allocation3 + $0x10] sm:$0xc] %v642
      %653 = vst [vmem:[#allocation3 + $0x18] sm:$0xc] %v643
      %654 = vst [vmem:[#allocation3 + $0x20] sm:$0xc] %v644
      %v655 = vld [vmem:[#allocation2] sm:$0xff]
      %v656 = vld [vmem:[#allocation2 + $0x8] sm:$0xf]
      %v659 = vcombine.high %v655, %v655
      %v661 = vunpack.c.l.s4 1983009808
      %v662 = vunpack.c.0.s8 %v661
      %v663 = vlaneseq
      %v664 = vshrl.u32 %v663, 7
      %v665 = vsub.s32 %v662, %v664
      %v666 = vrot.slane %v655, %v665
      %v668 = vunpack.c.l.s4 1983009808
      %v669 = vunpack.c.0.s8 %v668
      %v670 = vlaneseq
      %v671 = vshrl.u32 %v670, 7
      %v672 = vsub.s32 %v669, %v671
      %v673 = vrot.slane %v659, %v672
      %v674 = vcombine.low %v666, %v666
      %v675 = vcombine.low %v673, %v673
      %v677 = vunpack.c.l.s4 1983009808
      %v678 = vunpack.c.0.s8 %v677
      %v679 = vlaneseq
      %v680 = vshrl.u32 %v679, 7
      %v681 = vsub.s32 %v678, %v680
      %v682 = vrot.slane %v656, %v681
      %v683 = vcombine.low %v682, %v682
      %684 = vrot.lane.b32.xlu0 %v674, 109
      %v685 = vpop.permute.xlu0 %684
      %686 = vrot.lane.b32.xlu0 %v666, 109
      %v687 = vpop.permute.xlu0 %686
      %688 = vrot.lane.b32.xlu0 %v675, 109
      %v689 = vpop.permute.xlu0 %688
      %690 = vrot.lane.b32.xlu0 %v673, 109
      %v691 = vpop.permute.xlu0 %690
      %692 = vrot.lane.b32.xlu0 %v683, 109
      %v693 = vpop.permute.xlu0 %692
      %694 = vrot.lane.b32.xlu0 %v682, 109
      %v695 = vpop.permute.xlu0 %694
      %vm696 = vcmask 891904
      %v697 = vsel %vm696, %v685, %v687
      %v698 = vsel %vm696, %v687, %v689
      %v699 = vsel %vm696, %v689, %v691
      %v700 = vsel %vm696, %v691, %v693
      %v701 = vsel %vm696, %v693, %v695
      %707 = vst [vmem:[#allocation3] sm:$0x30] %v697
      %708 = vst [vmem:[#allocation3 + $0x8] sm:$0x30] %v698
      %709 = vst [vmem:[#allocation3 + $0x10] sm:$0x30] %v699
      %710 = vst [vmem:[#allocation3 + $0x18] sm:$0x30] %v700
      %711 = vst [vmem:[#allocation3 + $0x20] sm:$0x30] %v701
      %v712 = vld [vmem:[#allocation2] sm:$0xff]
      %v713 = vld [vmem:[#allocation2 + $0x8] sm:$0xf]
      %v716 = vcombine.low %v712, %v712
      %v718 = vunpack.c.l.s4 1983009808
      %v719 = vunpack.c.0.s8 %v718
      %v720 = vlaneseq
      %v721 = vshrl.u32 %v720, 7
      %v722 = vsub.s32 %v719, %v721
      %v723 = vrot.slane %v716, %v722
      %v725 = vunpack.c.l.s4 1983009808
      %v726 = vunpack.c.0.s8 %v725
      %v727 = vlaneseq
      %v728 = vshrl.u32 %v727, 7
      %v729 = vsub.s32 %v726, %v728
      %v730 = vrot.slane %v712, %v729
      %v731 = vcombine.low %v723, %v723
      %v732 = vcombine.low %v730, %v730
      %v733 = vcombine.low %v713, %v713
      %v735 = vunpack.c.l.s4 1983009808
      %v736 = vunpack.c.0.s8 %v735
      %v737 = vlaneseq
      %v738 = vshrl.u32 %v737, 7
      %v739 = vsub.s32 %v736, %v738
      %v740 = vrot.slane %v733, %v739
      %v741 = vcombine.low %v740, %v740
      %742 = vrot.lane.b32.xlu0 %v731, 101
      %v743 = vpop.permute.xlu0 %742
      %744 = vrot.lane.b32.xlu0 %v723, 101
      %v745 = vpop.permute.xlu0 %744
      %746 = vrot.lane.b32.xlu0 %v732, 101
      %v747 = vpop.permute.xlu0 %746
      %748 = vrot.lane.b32.xlu0 %v730, 101
      %v749 = vpop.permute.xlu0 %748
      %750 = vrot.lane.b32.xlu0 %v741, 101
      %v751 = vpop.permute.xlu0 %750
      %752 = vrot.lane.b32.xlu0 %v740, 101
      %v753 = vpop.permute.xlu0 %752
      %vm754 = vcmask 826368
      %v755 = vsel %vm754, %v743, %v745
      %v756 = vsel %vm754, %v745, %v747
      %v757 = vsel %vm754, %v747, %v749
      %v758 = vsel %vm754, %v749, %v751
      %v759 = vsel %vm754, %v751, %v753
      %765 = vst [vmem:[#allocation3] sm:$0xc0] %v755
      %766 = vst [vmem:[#allocation3 + $0x8] sm:$0xc0] %v756
      %767 = vst [vmem:[#allocation3 + $0x10] sm:$0xc0] %v757
      %768 = vst [vmem:[#allocation3 + $0x18] sm:$0xc0] %v758
      %769 = vst [vmem:[#allocation3 + $0x20] sm:$0xc0] %v759
      %v770 = vld [vmem:[#allocation2] sm:$0xff]
      %v771 = vld [vmem:[#allocation2 + $0x8] sm:$0xf]
      %v774 = vcombine.high %v770, %v770
      %v776 = vunpack.c.l.s4 1983009808
      %v777 = vunpack.c.0.s8 %v776
      %v778 = vlaneseq
      %v779 = vshrl.u32 %v778, 7
      %v780 = vsub.s32 %v777, %v779
      %v781 = vrot.slane %v770, %v780
      %v783 = vunpack.c.l.s4 1983009808
      %v784 = vunpack.c.0.s8 %v783
      %v785 = vlaneseq
      %v786 = vshrl.u32 %v785, 7
      %v787 = vsub.s32 %v784, %v786
      %v788 = vrot.slane %v774, %v787
      %v789 = vcombine.high %v781, %v781
      %v790 = vcombine.high %v788, %v788
      %v792 = vunpack.c.l.s4 1983009808
      %v793 = vunpack.c.0.s8 %v792
      %v794 = vlaneseq
      %v795 = vshrl.u32 %v794, 7
      %v796 = vsub.s32 %v793, %v795
      %v797 = vrot.slane %v771, %v796
      %v798 = vcombine.high %v797, %v797
      %799 = vrot.lane.b32.xlu0 %v781, 100
      %v800 = vpop.permute.xlu0 %799
      %801 = vrot.lane.b32.xlu0 %v789, 100
      %v802 = vpop.permute.xlu0 %801
      %803 = vrot.lane.b32.xlu0 %v788, 100
      %v804 = vpop.permute.xlu0 %803
      %805 = vrot.lane.b32.xlu0 %v790, 100
      %v806 = vpop.permute.xlu0 %805
      %807 = vrot.lane.b32.xlu0 %v797, 100
      %v808 = vpop.permute.xlu0 %807
      %809 = vrot.lane.b32.xlu0 %v798, 100
      %v810 = vpop.permute.xlu0 %809
      %vm811 = vcmask 818176
      %v812 = vsel %vm811, %v800, %v802
      %v813 = vsel %vm811, %v802, %v804
      %v814 = vsel %vm811, %v804, %v806
      %v815 = vsel %vm811, %v806, %v808
      %v816 = vsel %vm811, %v808, %v810
      %822 = vst [vmem:[#allocation3 + $0x28] sm:$0x3] %v812
      %823 = vst [vmem:[#allocation3 + $0x30] sm:$0x3] %v813
      %824 = vst [vmem:[#allocation3 + $0x38] sm:$0x3] %v814
      %825 = vst [vmem:[#allocation3 + $0x40] sm:$0x3] %v815
      %826 = vst [vmem:[#allocation3 + $0x48] sm:$0x3] %v816
      %v827 = vld [vmem:[#allocation2] sm:$0xff]
      %v828 = vld [vmem:[#allocation2 + $0x8] sm:$0xf]
      %v831 = vcombine.low %v827, %v827
      %v833 = vunpack.c.l.s4 1983009808
      %v834 = vunpack.c.0.s8 %v833
      %v835 = vlaneseq
      %v836 = vshrl.u32 %v835, 7
      %v837 = vsub.s32 %v834, %v836
      %v838 = vrot.slane %v831, %v837
      %v840 = vunpack.c.l.s4 1983009808
      %v841 = vunpack.c.0.s8 %v840
      %v842 = vlaneseq
      %v843 = vshrl.u32 %v842, 7
      %v844 = vsub.s32 %v841, %v843
      %v845 = vrot.slane %v827, %v844
      %v846 = vcombine.high %v838, %v838
      %v847 = vcombine.high %v845, %v845
      %v848 = vcombine.low %v828, %v828
      %v850 = vunpack.c.l.s4 1983009808
      %v851 = vunpack.c.0.s8 %v850
      %v852 = vlaneseq
      %v853 = vshrl.u32 %v852, 7
      %v854 = vsub.s32 %v851, %v853
      %v855 = vrot.slane %v848, %v854
      %v856 = vcombine.high %v855, %v855
      %857 = vrot.lane.b32.xlu0 %v838, 99
      %v858 = vpop.permute.xlu0 %857
      %859 = vrot.lane.b32.xlu0 %v846, 99
      %v860 = vpop.permute.xlu0 %859
      %861 = vrot.lane.b32.xlu0 %v845, 99
      %v862 = vpop.permute.xlu0 %861
      %863 = vrot.lane.b32.xlu0 %v847, 99
      %v864 = vpop.permute.xlu0 %863
      %865 = vrot.lane.b32.xlu0 %v855, 99
      %v866 = vpop.permute.xlu0 %865
      %867 = vrot.lane.b32.xlu0 %v856, 99
      %v868 = vpop.permute.xlu0 %867
      %vm869 = vcmask 809984
      %v870 = vsel %vm869, %v858, %v860
      %v871 = vsel %vm869, %v860, %v862
      %v872 = vsel %vm869, %v862, %v864
      %v873 = vsel %vm869, %v864, %v866
      %v874 = vsel %vm869, %v866, %v868
      %880 = vst [vmem:[#allocation3 + $0x28] sm:$0xc] %v870
      %881 = vst [vmem:[#allocation3 + $0x30] sm:$0xc] %v871
      %882 = vst [vmem:[#allocation3 + $0x38] sm:$0xc] %v872
      %883 = vst [vmem:[#allocation3 + $0x40] sm:$0xc] %v873
      %884 = vst [vmem:[#allocation3 + $0x48] sm:$0xc] %v874
      %v885 = vld [vmem:[#allocation2] sm:$0xff]
      %v886 = vld [vmem:[#allocation2 + $0x8] sm:$0xf]
      %v889 = vcombine.high %v885, %v885
      %v891 = vunpack.c.l.s4 1983009808
      %v892 = vunpack.c.0.s8 %v891
      %v893 = vlaneseq
      %v894 = vshrl.u32 %v893, 7
      %v895 = vsub.s32 %v892, %v894
      %v896 = vrot.slane %v885, %v895
      %v898 = vunpack.c.l.s4 1983009808
      %v899 = vunpack.c.0.s8 %v898
      %v900 = vlaneseq
      %v901 = vshrl.u32 %v900, 7
      %v902 = vsub.s32 %v899, %v901
      %v903 = vrot.slane %v889, %v902
      %v904 = vcombine.low %v896, %v896
      %v905 = vcombine.low %v903, %v903
      %v907 = vunpack.c.l.s4 1983009808
      %v908 = vunpack.c.0.s8 %v907
      %v909 = vlaneseq
      %v910 = vshrl.u32 %v909, 7
      %v911 = vsub.s32 %v908, %v910
      %v912 = vrot.slane %v886, %v911
      %v913 = vcombine.low %v912, %v912
      %914 = vrot.lane.b32.xlu0 %v904, 91
      %v915 = vpop.permute.xlu0 %914
      %916 = vrot.lane.b32.xlu0 %v896, 91
      %v917 = vpop.permute.xlu0 %916
      %918 = vrot.lane.b32.xlu0 %v905, 91
      %v919 = vpop.permute.xlu0 %918
      %920 = vrot.lane.b32.xlu0 %v903, 91
      %v921 = vpop.permute.xlu0 %920
      %922 = vrot.lane.b32.xlu0 %v913, 91
      %v923 = vpop.permute.xlu0 %922
      %924 = vrot.lane.b32.xlu0 %v912, 91
      %v925 = vpop.permute.xlu0 %924
      %vm926 = vcmask 744448
      %v927 = vsel %vm926, %v915, %v917
      %v928 = vsel %vm926, %v917, %v919
      %v929 = vsel %vm926, %v919, %v921
      %v930 = vsel %vm926, %v921, %v923
      %v931 = vsel %vm926, %v923, %v925
      %937 = vst [vmem:[#allocation3 + $0x28] sm:$0x30] %v927
      %938 = vst [vmem:[#allocation3 + $0x30] sm:$0x30] %v928
      %939 = vst [vmem:[#allocation3 + $0x38] sm:$0x30] %v929
      %940 = vst [vmem:[#allocation3 + $0x40] sm:$0x30] %v930
      %941 = vst [vmem:[#allocation3 + $0x48] sm:$0x30] %v931
      %v942 = vld [vmem:[#allocation2] sm:$0xff]
      %v943 = vld [vmem:[#allocation2 + $0x8] sm:$0xf]
      %v946 = vcombine.low %v942, %v942
      %v948 = vunpack.c.l.s4 1983009808
      %v949 = vunpack.c.0.s8 %v948
      %v950 = vlaneseq
      %v951 = vshrl.u32 %v950, 7
      %v952 = vsub.s32 %v949, %v951
      %v953 = vrot.slane %v946, %v952
      %v955 = vunpack.c.l.s4 1983009808
      %v956 = vunpack.c.0.s8 %v955
      %v957 = vlaneseq
      %v958 = vshrl.u32 %v957, 7
      %v959 = vsub.s32 %v956, %v958
      %v960 = vrot.slane %v942, %v959
      %v961 = vcombine.low %v953, %v953
      %v962 = vcombine.low %v960, %v960
      %v963 = vcombine.low %v943, %v943
      %v965 = vunpack.c.l.s4 1983009808
      %v966 = vunpack.c.0.s8 %v965
      %v967 = vlaneseq
      %v968 = vshrl.u32 %v967, 7
      %v969 = vsub.s32 %v966, %v968
      %v970 = vrot.slane %v963, %v969
      %v971 = vcombine.low %v970, %v970
      %972 = vrot.lane.b32.xlu0 %v961, 90
      %v973 = vpop.permute.xlu0 %972
      %974 = vrot.lane.b32.xlu0 %v953, 90
      %v975 = vpop.permute.xlu0 %974
      %976 = vrot.lane.b32.xlu0 %v962, 90
      %v977 = vpop.permute.xlu0 %976
      %978 = vrot.lane.b32.xlu0 %v960, 90
      %v979 = vpop.permute.xlu0 %978
      %980 = vrot.lane.b32.xlu0 %v971, 90
      %v981 = vpop.permute.xlu0 %980
      %982 = vrot.lane.b32.xlu0 %v970, 90
      %v983 = vpop.permute.xlu0 %982
      %vm984 = vcmask 736256
      %v985 = vsel %vm984, %v973, %v975
      %v986 = vsel %vm984, %v975, %v977
      %v987 = vsel %vm984, %v977, %v979
      %v988 = vsel %vm984, %v979, %v981
      %v989 = vsel %vm984, %v981, %v983
      %995 = vst [vmem:[#allocation3 + $0x28] sm:$0xc0] %v985
      %996 = vst [vmem:[#allocation3 + $0x30] sm:$0xc0] %v986
      %997 = vst [vmem:[#allocation3 + $0x38] sm:$0xc0] %v987
      %998 = vst [vmem:[#allocation3 + $0x40] sm:$0xc0] %v988
      %999 = vst [vmem:[#allocation3 + $0x48] sm:$0xc0] %v989
      %v1000 = vld [vmem:[#allocation2] sm:$0xff]
      %v1001 = vld [vmem:[#allocation2 + $0x8] sm:$0xf]
      %v1004 = vcombine.high %v1000, %v1000
      %v1006 = vunpack.c.l.s4 1983009808
      %v1007 = vunpack.c.0.s8 %v1006
      %v1008 = vlaneseq
      %v1009 = vshrl.u32 %v1008, 7
      %v1010 = vsub.s32 %v1007, %v1009
      %v1011 = vrot.slane %v1000, %v1010
      %v1013 = vunpack.c.l.s4 1983009808
      %v1014 = vunpack.c.0.s8 %v1013
      %v1015 = vlaneseq
      %v1016 = vshrl.u32 %v1015, 7
      %v1017 = vsub.s32 %v1014, %v1016
      %v1018 = vrot.slane %v1004, %v1017
      %v1019 = vcombine.high %v1011, %v1011
      %v1020 = vcombine.high %v1018, %v1018
      %v1022 = vunpack.c.l.s4 1983009808
      %v1023 = vunpack.c.0.s8 %v1022
      %v1024 = vlaneseq
      %v1025 = vshrl.u32 %v1024, 7
      %v1026 = vsub.s32 %v1023, %v1025
      %v1027 = vrot.slane %v1001, %v1026
      %v1028 = vcombine.high %v1027, %v1027
      %1029 = vrot.lane.b32.xlu0 %v1011, 89
      %v1030 = vpop.permute.xlu0 %1029
      %1031 = vrot.lane.b32.xlu0 %v1019, 89
      %v1032 = vpop.permute.xlu0 %1031
      %1033 = vrot.lane.b32.xlu0 %v1018, 89
      %v1034 = vpop.permute.xlu0 %1033
      %1035 = vrot.lane.b32.xlu0 %v1020, 89
      %v1036 = vpop.permute.xlu0 %1035
      %1037 = vrot.lane.b32.xlu0 %v1027, 89
      %v1038 = vpop.permute.xlu0 %1037
      %1039 = vrot.lane.b32.xlu0 %v1028, 89
      %v1040 = vpop.permute.xlu0 %1039
      %vm1041 = vcmask 728064
      %v1042 = vsel %vm1041, %v1030, %v1032
      %v1043 = vsel %vm1041, %v1032, %v1034
      %v1044 = vsel %vm1041, %v1034, %v1036
      %v1045 = vsel %vm1041, %v1036, %v1038
      %v1046 = vsel %vm1041, %v1038, %v1040
      %1052 = vst [vmem:[#allocation3 + $0x50] sm:$0x3] %v1042
      %1053 = vst [vmem:[#allocation3 + $0x58] sm:$0x3] %v1043
      %1054 = vst [vmem:[#allocation3 + $0x60] sm:$0x3] %v1044
      %1055 = vst [vmem:[#allocation3 + $0x68] sm:$0x3] %v1045
      %1056 = vst [vmem:[#allocation3 + $0x70] sm:$0x3] %v1046
      %v1057 = vld [vmem:[#allocation2] sm:$0xff]
      %v1058 = vld [vmem:[#allocation2 + $0x8] sm:$0xf]
      %v1061 = vcombine.low %v1057, %v1057
      %v1063 = vunpack.c.l.s4 1983009808
      %v1064 = vunpack.c.0.s8 %v1063
      %v1065 = vlaneseq
      %v1066 = vshrl.u32 %v1065, 7
      %v1067 = vsub.s32 %v1064, %v1066
      %v1068 = vrot.slane %v1061, %v1067
      %v1070 = vunpack.c.l.s4 1983009808
      %v1071 = vunpack.c.0.s8 %v1070
      %v1072 = vlaneseq
      %v1073 = vshrl.u32 %v1072, 7
      %v1074 = vsub.s32 %v1071, %v1073
      %v1075 = vrot.slane %v1057, %v1074
      %v1076 = vcombine.high %v1068, %v1068
      %v1077 = vcombine.high %v1075, %v1075
      %v1078 = vcombine.low %v1058, %v1058
      %v1080 = vunpack.c.l.s4 1983009808
      %v1081 = vunpack.c.0.s8 %v1080
      %v1082 = vlaneseq
      %v1083 = vshrl.u32 %v1082, 7
      %v1084 = vsub.s32 %v1081, %v1083
      %v1085 = vrot.slane %v1078, %v1084
      %v1086 = vcombine.high %v1085, %v1085
      %1087 = vrot.lane.b32.xlu0 %v1068, 11
      %v1088 = vpop.permute.xlu0 %1087
      %1089 = vrot.lane.b32.xlu0 %v1076, 11
      %v1090 = vpop.permute.xlu0 %1089
      %1091 = vrot.lane.b32.xlu0 %v1075, 11
      %v1092 = vpop.permute.xlu0 %1091
      %1093 = vrot.lane.b32.xlu0 %v1077, 11
      %v1094 = vpop.permute.xlu0 %1093
      %1095 = vrot.lane.b32.xlu0 %v1085, 11
      %v1096 = vpop.permute.xlu0 %1095
      %1097 = vrot.lane.b32.xlu0 %v1086, 11
      %v1098 = vpop.permute.xlu0 %1097
      %vm1099 = vcmask 89088
      %v1100 = vsel %vm1099, %v1088, %v1090
      %v1101 = vsel %vm1099, %v1090, %v1092
      %v1102 = vsel %vm1099, %v1092, %v1094
      %v1103 = vsel %vm1099, %v1094, %v1096
      %v1104 = vsel %vm1099, %v1096, %v1098
      %1110 = vst [vmem:[#allocation3 + $0x50] sm:$0xc] %v1100
      %1111 = vst [vmem:[#allocation3 + $0x58] sm:$0xc] %v1101
      %1112 = vst [vmem:[#allocation3 + $0x60] sm:$0xc] %v1102
      %1113 = vst [vmem:[#allocation3 + $0x68] sm:$0xc] %v1103
      %1114 = vst [vmem:[#allocation3 + $0x70] sm:$0xc] %v1104
      %v1115 = vld [vmem:[#allocation2] sm:$0xff]
      %v1116 = vld [vmem:[#allocation2 + $0x8] sm:$0xf]
      %v1119 = vcombine.high %v1115, %v1115
      %v1121 = vunpack.c.l.s4 1983009808
      %v1122 = vunpack.c.0.s8 %v1121
      %v1123 = vlaneseq
      %v1124 = vshrl.u32 %v1123, 7
      %v1125 = vsub.s32 %v1122, %v1124
      %v1126 = vrot.slane %v1115, %v1125
      %v1128 = vunpack.c.l.s4 1983009808
      %v1129 = vunpack.c.0.s8 %v1128
      %v1130 = vlaneseq
      %v1131 = vshrl.u32 %v1130, 7
      %v1132 = vsub.s32 %v1129, %v1131
      %v1133 = vrot.slane %v1119, %v1132
      %v1134 = vcombine.low %v1126, %v1126
      %v1135 = vcombine.low %v1133, %v1133
      %v1137 = vunpack.c.l.s4 1983009808
      %v1138 = vunpack.c.0.s8 %v1137
      %v1139 = vlaneseq
      %v1140 = vshrl.u32 %v1139, 7
      %v1141 = vsub.s32 %v1138, %v1140
      %v1142 = vrot.slane %v1116, %v1141
      %v1143 = vcombine.low %v1142, %v1142
      %1144 = vrot.lane.b32.xlu0 %v1134, 10
      %v1145 = vpop.permute.xlu0 %1144
      %1146 = vrot.lane.b32.xlu0 %v1126, 10
      %v1147 = vpop.permute.xlu0 %1146
      %1148 = vrot.lane.b32.xlu0 %v1135, 10
      %v1149 = vpop.permute.xlu0 %1148
      %1150 = vrot.lane.b32.xlu0 %v1133, 10
      %v1151 = vpop.permute.xlu0 %1150
      %1152 = vrot.lane.b32.xlu0 %v1143, 10
      %v1153 = vpop.permute.xlu0 %1152
      %1154 = vrot.lane.b32.xlu0 %v1142, 10
      %v1155 = vpop.permute.xlu0 %1154
      %vm1156 = vcmask 80896
      %v1157 = vsel %vm1156, %v1145, %v1147
      %v1158 = vsel %vm1156, %v1147, %v1149
      %v1159 = vsel %vm1156, %v1149, %v1151
      %v1160 = vsel %vm1156, %v1151, %v1153
      %v1161 = vsel %vm1156, %v1153, %v1155
      %1167 = vst [vmem:[#allocation3 + $0x50] sm:$0x30] %v1157
      %1168 = vst [vmem:[#allocation3 + $0x58] sm:$0x30] %v1158
      %1169 = vst [vmem:[#allocation3 + $0x60] sm:$0x30] %v1159
      %1170 = vst [vmem:[#allocation3 + $0x68] sm:$0x30] %v1160
      %1171 = vst [vmem:[#allocation3 + $0x70] sm:$0x30] %v1161
      %v1172 = vld [vmem:[#allocation2] sm:$0xff]
      %v1173 = vld [vmem:[#allocation2 + $0x8] sm:$0xf]
      %v1176 = vcombine.low %v1172, %v1172
      %v1178 = vunpack.c.l.s4 1983009808
      %v1179 = vunpack.c.0.s8 %v1178
      %v1180 = vlaneseq
      %v1181 = vshrl.u32 %v1180, 7
      %v1182 = vsub.s32 %v1179, %v1181
      %v1183 = vrot.slane %v1176, %v1182
      %v1185 = vunpack.c.l.s4 1983009808
      %v1186 = vunpack.c.0.s8 %v1185
      %v1187 = vlaneseq
      %v1188 = vshrl.u32 %v1187, 7
      %v1189 = vsub.s32 %v1186, %v1188
      %v1190 = vrot.slane %v1172, %v1189
      %v1191 = vcombine.low %v1183, %v1183
      %v1192 = vcombine.low %v1190, %v1190
      %v1193 = vcombine.low %v1173, %v1173
      %v1195 = vunpack.c.l.s4 1983009808
      %v1196 = vunpack.c.0.s8 %v1195
      %v1197 = vlaneseq
      %v1198 = vshrl.u32 %v1197, 7
      %v1199 = vsub.s32 %v1196, %v1198
      %v1200 = vrot.slane %v1193, %v1199
      %v1201 = vcombine.low %v1200, %v1200
      %1202 = vrot.lane.b32.xlu0 %v1191, 9
      %v1203 = vpop.permute.xlu0 %1202
      %1204 = vrot.lane.b32.xlu0 %v1183, 9
      %v1205 = vpop.permute.xlu0 %1204
      %1206 = vrot.lane.b32.xlu0 %v1192, 9
      %v1207 = vpop.permute.xlu0 %1206
      %1208 = vrot.lane.b32.xlu0 %v1190, 9
      %v1209 = vpop.permute.xlu0 %1208
      %1210 = vrot.lane.b32.xlu0 %v1201, 9
      %v1211 = vpop.permute.xlu0 %1210
      %1212 = vrot.lane.b32.xlu0 %v1200, 9
      %v1213 = vpop.permute.xlu0 %1212
      %vm1214 = vcmask 72704
      %v1215 = vsel %vm1214, %v1203, %v1205
      %v1216 = vsel %vm1214, %v1205, %v1207
      %v1217 = vsel %vm1214, %v1207, %v1209
      %v1218 = vsel %vm1214, %v1209, %v1211
      %v1219 = vsel %vm1214, %v1211, %v1213
      %1225 = vst [vmem:[#allocation3 + $0x50] sm:$0xc0] %v1215
      %1226 = vst [vmem:[#allocation3 + $0x58] sm:$0xc0] %v1216
      %1227 = vst [vmem:[#allocation3 + $0x60] sm:$0xc0] %v1217
      %1228 = vst [vmem:[#allocation3 + $0x68] sm:$0xc0] %v1218
      %1229 = vst [vmem:[#allocation3 + $0x70] sm:$0xc0] %v1219
      %v1230 = vld [vmem:[#allocation2] sm:$0xff]
      %v1231 = vld [vmem:[#allocation2 + $0x8] sm:$0xf]
      %v1234 = vcombine.high %v1230, %v1230
      %v1236 = vunpack.c.l.s4 1983009808
      %v1237 = vunpack.c.0.s8 %v1236
      %v1238 = vlaneseq
      %v1239 = vshrl.u32 %v1238, 7
      %v1240 = vsub.s32 %v1237, %v1239
      %v1241 = vrot.slane %v1230, %v1240
      %v1243 = vunpack.c.l.s4 1983009808
      %v1244 = vunpack.c.0.s8 %v1243
      %v1245 = vlaneseq
      %v1246 = vshrl.u32 %v1245, 7
      %v1247 = vsub.s32 %v1244, %v1246
      %v1248 = vrot.slane %v1234, %v1247
      %v1249 = vcombine.high %v1241, %v1241
      %v1250 = vcombine.high %v1248, %v1248
      %v1252 = vunpack.c.l.s4 1983009808
      %v1253 = vunpack.c.0.s8 %v1252
      %v1254 = vlaneseq
      %v1255 = vshrl.u32 %v1254, 7
      %v1256 = vsub.s32 %v1253, %v1255
      %v1257 = vrot.slane %v1231, %v1256
      %v1258 = vcombine.high %v1257, %v1257
      %1259 = vrot.lane.b32.xlu0 %v1241, 1
      %v1260 = vpop.permute.xlu0 %1259
      %1261 = vrot.lane.b32.xlu0 %v1249, 1
      %v1262 = vpop.permute.xlu0 %1261
      %1263 = vrot.lane.b32.xlu0 %v1248, 1
      %v1264 = vpop.permute.xlu0 %1263
      %1265 = vrot.lane.b32.xlu0 %v1250, 1
      %v1266 = vpop.permute.xlu0 %1265
      %1267 = vrot.lane.b32.xlu0 %v1257, 1
      %v1268 = vpop.permute.xlu0 %1267
      %1269 = vrot.lane.b32.xlu0 %v1258, 1
      %v1270 = vpop.permute.xlu0 %1269
      %vm1271 = vcmask 7168
      %v1272 = vsel %vm1271, %v1260, %v1262
      %v1273 = vsel %vm1271, %v1262, %v1264
      %v1274 = vsel %vm1271, %v1264, %v1266
      %v1275 = vsel %vm1271, %v1266, %v1268
      %v1276 = vsel %vm1271, %v1268, %v1270
      %1282 = vst [vmem:[#allocation3 + $0x78] sm:$0x3] %v1272
      %1283 = vst [vmem:[#allocation3 + $0x80] sm:$0x3] %v1273
      %1284 = vst [vmem:[#allocation3 + $0x88] sm:$0x3] %v1274
      %1285 = vst [vmem:[#allocation3 + $0x90] sm:$0x3] %v1275
      %1286 = vst [vmem:[#allocation3 + $0x98] sm:$0x3] %v1276
      %v1287 = vld [vmem:[#allocation2 + $0x2] sm:$0xff]
      %v1288 = vld [vmem:[#allocation2 + $0xa] sm:$0x3]
      %v1291 = vcombine.low %v1287, %v1287
      %v1293 = vunpack.c.l.s4 1983009808
      %v1294 = vunpack.c.0.s8 %v1293
      %v1295 = vlaneseq
      %v1296 = vshrl.u32 %v1295, 7
      %v1297 = vsub.s32 %v1294, %v1296
      %v1298 = vrot.slane %v1291, %v1297
      %v1300 = vunpack.c.l.s4 1983009808
      %v1301 = vunpack.c.0.s8 %v1300
      %v1302 = vlaneseq
      %v1303 = vshrl.u32 %v1302, 7
      %v1304 = vsub.s32 %v1301, %v1303
      %v1305 = vrot.slane %v1287, %v1304
      %v1306 = vcombine.high %v1298, %v1298
      %v1307 = vcombine.high %v1305, %v1305
      %v1308 = vcombine.low %v1288, %v1288
      %v1310 = vunpack.c.l.s4 1983009808
      %v1311 = vunpack.c.0.s8 %v1310
      %v1312 = vlaneseq
      %v1313 = vshrl.u32 %v1312, 7
      %v1314 = vsub.s32 %v1311, %v1313
      %v1315 = vrot.slane %v1308, %v1314
      %1321 = vst [vmem:[#allocation3 + $0x78] sm:$0xc] %v1298
      %1322 = vst [vmem:[#allocation3 + $0x80] sm:$0xc] %v1306
      %1323 = vst [vmem:[#allocation3 + $0x88] sm:$0xc] %v1305
      %1324 = vst [vmem:[#allocation3 + $0x90] sm:$0xc] %v1307
      %1325 = vst [vmem:[#allocation3 + $0x98] sm:$0xc] %v1315
      %v1326 = vld [vmem:[#allocation2 + $0x2] sm:$0xff]
      %v1327 = vld [vmem:[#allocation2 + $0xa] sm:$0xf]
      %v1330 = vcombine.high %v1326, %v1326
      %v1332 = vunpack.c.l.s4 1983009808
      %v1333 = vunpack.c.0.s8 %v1332
      %v1334 = vlaneseq
      %v1335 = vshrl.u32 %v1334, 7
      %v1336 = vsub.s32 %v1333, %v1335
      %v1337 = vrot.slane %v1326, %v1336
      %v1339 = vunpack.c.l.s4 1983009808
      %v1340 = vunpack.c.0.s8 %v1339
      %v1341 = vlaneseq
      %v1342 = vshrl.u32 %v1341, 7
      %v1343 = vsub.s32 %v1340, %v1342
      %v1344 = vrot.slane %v1330, %v1343
      %v1345 = vcombine.low %v1337, %v1337
      %v1346 = vcombine.low %v1344, %v1344
      %v1348 = vunpack.c.l.s4 1983009808
      %v1349 = vunpack.c.0.s8 %v1348
      %v1350 = vlaneseq
      %v1351 = vshrl.u32 %v1350, 7
      %v1352 = vsub.s32 %v1349, %v1351
      %v1353 = vrot.slane %v1327, %v1352
      %v1354 = vcombine.low %v1353, %v1353
      %1355 = vrot.lane.b32.xlu0 %v1345, 127
      %v1356 = vpop.permute.xlu0 %1355
      %1357 = vrot.lane.b32.xlu0 %v1337, 127
      %v1358 = vpop.permute.xlu0 %1357
      %1359 = vrot.lane.b32.xlu0 %v1346, 127
      %v1360 = vpop.permute.xlu0 %1359
      %1361 = vrot.lane.b32.xlu0 %v1344, 127
      %v1362 = vpop.permute.xlu0 %1361
      %1363 = vrot.lane.b32.xlu0 %v1354, 127
      %v1364 = vpop.permute.xlu0 %1363
      %1365 = vrot.lane.b32.xlu0 %v1353, 127
      %v1366 = vpop.permute.xlu0 %1365
      %vm1367 = vcmask 1039360
      %v1368 = vsel %vm1367, %v1356, %v1358
      %v1369 = vsel %vm1367, %v1358, %v1360
      %v1370 = vsel %vm1367, %v1360, %v1362
      %v1371 = vsel %vm1367, %v1362, %v1364
      %v1372 = vsel %vm1367, %v1364, %v1366
      %1378 = vst [vmem:[#allocation3 + $0x78] sm:$0x30] %v1368
      %1379 = vst [vmem:[#allocation3 + $0x80] sm:$0x30] %v1369
      %1380 = vst [vmem:[#allocation3 + $0x88] sm:$0x30] %v1370
      %1381 = vst [vmem:[#allocation3 + $0x90] sm:$0x30] %v1371
      %1382 = vst [vmem:[#allocation3 + $0x98] sm:$0x30] %v1372
      %v1383 = vld [vmem:[#allocation2 + $0x2] sm:$0xff]
      %v1384 = vld [vmem:[#allocation2 + $0xa] sm:$0xf]
      %v1387 = vcombine.low %v1383, %v1383
      %v1389 = vunpack.c.l.s4 1983009808
      %v1390 = vunpack.c.0.s8 %v1389
      %v1391 = vlaneseq
      %v1392 = vshrl.u32 %v1391, 7
      %v1393 = vsub.s32 %v1390, %v1392
      %v1394 = vrot.slane %v1387, %v1393
      %v1396 = vunpack.c.l.s4 1983009808
      %v1397 = vunpack.c.0.s8 %v1396
      %v1398 = vlaneseq
      %v1399 = vshrl.u32 %v1398, 7
      %v1400 = vsub.s32 %v1397, %v1399
      %v1401 = vrot.slane %v1383, %v1400
      %v1402 = vcombine.low %v1394, %v1394
      %v1403 = vcombine.low %v1401, %v1401
      %v1404 = vcombine.low %v1384, %v1384
      %v1406 = vunpack.c.l.s4 1983009808
      %v1407 = vunpack.c.0.s8 %v1406
      %v1408 = vlaneseq
      %v1409 = vshrl.u32 %v1408, 7
      %v1410 = vsub.s32 %v1407, %v1409
      %v1411 = vrot.slane %v1404, %v1410
      %v1412 = vcombine.low %v1411, %v1411
      %1413 = vrot.lane.b32.xlu0 %v1402, 119
      %v1414 = vpop.permute.xlu0 %1413
      %1415 = vrot.lane.b32.xlu0 %v1394, 119
      %v1416 = vpop.permute.xlu0 %1415
      %1417 = vrot.lane.b32.xlu0 %v1403, 119
      %v1418 = vpop.permute.xlu0 %1417
      %1419 = vrot.lane.b32.xlu0 %v1401, 119
      %v1420 = vpop.permute.xlu0 %1419
      %1421 = vrot.lane.b32.xlu0 %v1412, 119
      %v1422 = vpop.permute.xlu0 %1421
      %1423 = vrot.lane.b32.xlu0 %v1411, 119
      %v1424 = vpop.permute.xlu0 %1423
      %vm1425 = vcmask 973824
      %v1426 = vsel %vm1425, %v1414, %v1416
      %v1427 = vsel %vm1425, %v1416, %v1418
      %v1428 = vsel %vm1425, %v1418, %v1420
      %v1429 = vsel %vm1425, %v1420, %v1422
      %v1430 = vsel %vm1425, %v1422, %v1424
      %1436 = vst [vmem:[#allocation3 + $0x78] sm:$0xc0] %v1426
      %1437 = vst [vmem:[#allocation3 + $0x80] sm:$0xc0] %v1427
      %1438 = vst [vmem:[#allocation3 + $0x88] sm:$0xc0] %v1428
      %1439 = vst [vmem:[#allocation3 + $0x90] sm:$0xc0] %v1429
      %1440 = vst [vmem:[#allocation3 + $0x98] sm:$0xc0] %v1430
      %v1441 = vld [vmem:[#allocation2 + $0x2] sm:$0xff]
      %v1442 = vld [vmem:[#allocation2 + $0xa] sm:$0xf]
      %v1445 = vcombine.high %v1441, %v1441
      %v1447 = vunpack.c.l.s4 1983009808
      %v1448 = vunpack.c.0.s8 %v1447
      %v1449 = vlaneseq
      %v1450 = vshrl.u32 %v1449, 7
      %v1451 = vsub.s32 %v1448, %v1450
      %v1452 = vrot.slane %v1441, %v1451
      %v1454 = vunpack.c.l.s4 1983009808
      %v1455 = vunpack.c.0.s8 %v1454
      %v1456 = vlaneseq
      %v1457 = vshrl.u32 %v1456, 7
      %v1458 = vsub.s32 %v1455, %v1457
      %v1459 = vrot.slane %v1445, %v1458
      %v1460 = vcombine.high %v1452, %v1452
      %v1461 = vcombine.high %v1459, %v1459
      %v1463 = vunpack.c.l.s4 1983009808
      %v1464 = vunpack.c.0.s8 %v1463
      %v1465 = vlaneseq
      %v1466 = vshrl.u32 %v1465, 7
      %v1467 = vsub.s32 %v1464, %v1466
      %v1468 = vrot.slane %v1442, %v1467
      %v1469 = vcombine.high %v1468, %v1468
      %1470 = vrot.lane.b32.xlu0 %v1452, 118
      %v1471 = vpop.permute.xlu0 %1470
      %1472 = vrot.lane.b32.xlu0 %v1460, 118
      %v1473 = vpop.permute.xlu0 %1472
      %1474 = vrot.lane.b32.xlu0 %v1459, 118
      %v1475 = vpop.permute.xlu0 %1474
      %1476 = vrot.lane.b32.xlu0 %v1461, 118
      %v1477 = vpop.permute.xlu0 %1476
      %1478 = vrot.lane.b32.xlu0 %v1468, 118
      %v1479 = vpop.permute.xlu0 %1478
      %1480 = vrot.lane.b32.xlu0 %v1469, 118
      %v1481 = vpop.permute.xlu0 %1480
      %vm1482 = vcmask 965632
      %v1483 = vsel %vm1482, %v1471, %v1473
      %v1484 = vsel %vm1482, %v1473, %v1475
      %v1485 = vsel %vm1482, %v1475, %v1477
      %v1486 = vsel %vm1482, %v1477, %v1479
      %v1487 = vsel %vm1482, %v1479, %v1481
      %1493 = vst [vmem:[#allocation3 + $0xa0] sm:$0x3] %v1483
      %1494 = vst [vmem:[#allocation3 + $0xa8] sm:$0x3] %v1484
      %1495 = vst [vmem:[#allocation3 + $0xb0] sm:$0x3] %v1485
      %1496 = vst [vmem:[#allocation3 + $0xb8] sm:$0x3] %v1486
      %1497 = vst [vmem:[#allocation3 + $0xc0] sm:$0x3] %v1487
      %v1498 = vld [vmem:[#allocation2 + $0x2] sm:$0xff]
      %v1499 = vld [vmem:[#allocation2 + $0xa] sm:$0xf]
      %v1502 = vcombine.low %v1498, %v1498
      %v1504 = vunpack.c.l.s4 1983009808
      %v1505 = vunpack.c.0.s8 %v1504
      %v1506 = vlaneseq
      %v1507 = vshrl.u32 %v1506, 7
      %v1508 = vsub.s32 %v1505, %v1507
      %v1509 = vrot.slane %v1502, %v1508
      %v1511 = vunpack.c.l.s4 1983009808
      %v1512 = vunpack.c.0.s8 %v1511
      %v1513 = vlaneseq
      %v1514 = vshrl.u32 %v1513, 7
      %v1515 = vsub.s32 %v1512, %v1514
      %v1516 = vrot.slane %v1498, %v1515
      %v1517 = vcombine.high %v1509, %v1509
      %v1518 = vcombine.high %v1516, %v1516
      %v1519 = vcombine.low %v1499, %v1499
      %v1521 = vunpack.c.l.s4 1983009808
      %v1522 = vunpack.c.0.s8 %v1521
      %v1523 = vlaneseq
      %v1524 = vshrl.u32 %v1523, 7
      %v1525 = vsub.s32 %v1522, %v1524
      %v1526 = vrot.slane %v1519, %v1525
      %v1527 = vcombine.high %v1526, %v1526
      %1528 = vrot.lane.b32.xlu0 %v1509, 117
      %v1529 = vpop.permute.xlu0 %1528
      %1530 = vrot.lane.b32.xlu0 %v1517, 117
      %v1531 = vpop.permute.xlu0 %1530
      %1532 = vrot.lane.b32.xlu0 %v1516, 117
      %v1533 = vpop.permute.xlu0 %1532
      %1534 = vrot.lane.b32.xlu0 %v1518, 117
      %v1535 = vpop.permute.xlu0 %1534
      %1536 = vrot.lane.b32.xlu0 %v1526, 117
      %v1537 = vpop.permute.xlu0 %1536
      %1538 = vrot.lane.b32.xlu0 %v1527, 117
      %v1539 = vpop.permute.xlu0 %1538
      %vm1540 = vcmask 957440
      %v1541 = vsel %vm1540, %v1529, %v1531
      %v1542 = vsel %vm1540, %v1531, %v1533
      %v1543 = vsel %vm1540, %v1533, %v1535
      %v1544 = vsel %vm1540, %v1535, %v1537
      %v1545 = vsel %vm1540, %v1537, %v1539
      %1551 = vst [vmem:[#allocation3 + $0xa0] sm:$0xc] %v1541
      %1552 = vst [vmem:[#allocation3 + $0xa8] sm:$0xc] %v1542
      %1553 = vst [vmem:[#allocation3 + $0xb0] sm:$0xc] %v1543
      %1554 = vst [vmem:[#allocation3 + $0xb8] sm:$0xc] %v1544
      %1555 = vst [vmem:[#allocation3 + $0xc0] sm:$0xc] %v1545
      %v1556 = vld [vmem:[#allocation2 + $0x2] sm:$0xff]
      %v1557 = vld [vmem:[#allocation2 + $0xa] sm:$0xf]
      %v1560 = vcombine.high %v1556, %v1556
      %v1562 = vunpack.c.l.s4 1983009808
      %v1563 = vunpack.c.0.s8 %v1562
      %v1564 = vlaneseq
      %v1565 = vshrl.u32 %v1564, 7
      %v1566 = vsub.s32 %v1563, %v1565
      %v1567 = vrot.slane %v1556, %v1566
      %v1569 = vunpack.c.l.s4 1983009808
      %v1570 = vunpack.c.0.s8 %v1569
      %v1571 = vlaneseq
      %v1572 = vshrl.u32 %v1571, 7
      %v1573 = vsub.s32 %v1570, %v1572
      %v1574 = vrot.slane %v1560, %v1573
      %v1575 = vcombine.low %v1567, %v1567
      %v1576 = vcombine.low %v1574, %v1574
      %v1578 = vunpack.c.l.s4 1983009808
      %v1579 = vunpack.c.0.s8 %v1578
      %v1580 = vlaneseq
      %v1581 = vshrl.u32 %v1580, 7
      %v1582 = vsub.s32 %v1579, %v1581
      %v1583 = vrot.slane %v1557, %v1582
      %v1584 = vcombine.low %v1583, %v1583
      %1585 = vrot.lane.b32.xlu0 %v1575, 39
      %v1586 = vpop.permute.xlu0 %1585
      %1587 = vrot.lane.b32.xlu0 %v1567, 39
      %v1588 = vpop.permute.xlu0 %1587
      %1589 = vrot.lane.b32.xlu0 %v1576, 39
      %v1590 = vpop.permute.xlu0 %1589
      %1591 = vrot.lane.b32.xlu0 %v1574, 39
      %v1592 = vpop.permute.xlu0 %1591
      %1593 = vrot.lane.b32.xlu0 %v1584, 39
      %v1594 = vpop.permute.xlu0 %1593
      %1595 = vrot.lane.b32.xlu0 %v1583, 39
      %v1596 = vpop.permute.xlu0 %1595
      %vm1597 = vcmask 318464
      %v1598 = vsel %vm1597, %v1586, %v1588
      %v1599 = vsel %vm1597, %v1588, %v1590
      %v1600 = vsel %vm1597, %v1590, %v1592
      %v1601 = vsel %vm1597, %v1592, %v1594
      %v1602 = vsel %vm1597, %v1594, %v1596
      %1608 = vst [vmem:[#allocation3 + $0xa0] sm:$0x30] %v1598
      %1609 = vst [vmem:[#allocation3 + $0xa8] sm:$0x30] %v1599
      %1610 = vst [vmem:[#allocation3 + $0xb0] sm:$0x30] %v1600
      %1611 = vst [vmem:[#allocation3 + $0xb8] sm:$0x30] %v1601
      %1612 = vst [vmem:[#allocation3 + $0xc0] sm:$0x30] %v1602
      %v1613 = vld [vmem:[#allocation2 + $0x2] sm:$0xff]
      %v1614 = vld [vmem:[#allocation2 + $0xa] sm:$0xf]
      %v1617 = vcombine.low %v1613, %v1613
      %v1619 = vunpack.c.l.s4 1983009808
      %v1620 = vunpack.c.0.s8 %v1619
      %v1621 = vlaneseq
      %v1622 = vshrl.u32 %v1621, 7
      %v1623 = vsub.s32 %v1620, %v1622
      %v1624 = vrot.slane %v1617, %v1623
      %v1626 = vunpack.c.l.s4 1983009808
      %v1627 = vunpack.c.0.s8 %v1626
      %v1628 = vlaneseq
      %v1629 = vshrl.u32 %v1628, 7
      %v1630 = vsub.s32 %v1627, %v1629
      %v1631 = vrot.slane %v1613, %v1630
      %v1632 = vcombine.low %v1624, %v1624
      %v1633 = vcombine.low %v1631, %v1631
      %v1634 = vcombine.low %v1614, %v1614
      %v1636 = vunpack.c.l.s4 1983009808
      %v1637 = vunpack.c.0.s8 %v1636
      %v1638 = vlaneseq
      %v1639 = vshrl.u32 %v1638, 7
      %v1640 = vsub.s32 %v1637, %v1639
      %v1641 = vrot.slane %v1634, %v1640
      %v1642 = vcombine.low %v1641, %v1641
      %1643 = vrot.lane.b32.xlu0 %v1632, 38
      %v1644 = vpop.permute.xlu0 %1643
      %1645 = vrot.lane.b32.xlu0 %v1624, 38
      %v1646 = vpop.permute.xlu0 %1645
      %1647 = vrot.lane.b32.xlu0 %v1633, 38
      %v1648 = vpop.permute.xlu0 %1647
      %1649 = vrot.lane.b32.xlu0 %v1631, 38
      %v1650 = vpop.permute.xlu0 %1649
      %1651 = vrot.lane.b32.xlu0 %v1642, 38
      %v1652 = vpop.permute.xlu0 %1651
      %1653 = vrot.lane.b32.xlu0 %v1641, 38
      %v1654 = vpop.permute.xlu0 %1653
      %vm1655 = vcmask 310272
      %v1656 = vsel %vm1655, %v1644, %v1646
      %v1657 = vsel %vm1655, %v1646, %v1648
      %v1658 = vsel %vm1655, %v1648, %v1650
      %v1659 = vsel %vm1655, %v1650, %v1652
      %v1660 = vsel %vm1655, %v1652, %v1654
      %1666 = vst [vmem:[#allocation3 + $0xa0] sm:$0xc0] %v1656
      %1667 = vst [vmem:[#allocation3 + $0xa8] sm:$0xc0] %v1657
      %1668 = vst [vmem:[#allocation3 + $0xb0] sm:$0xc0] %v1658
      %1669 = vst [vmem:[#allocation3 + $0xb8] sm:$0xc0] %v1659
      %1670 = vst [vmem:[#allocation3 + $0xc0] sm:$0xc0] %v1660
      %v1671 = vld [vmem:[#allocation2 + $0x2] sm:$0xff]
      %v1672 = vld [vmem:[#allocation2 + $0xa] sm:$0xf]
      %v1675 = vcombine.high %v1671, %v1671
      %v1677 = vunpack.c.l.s4 1983009808
      %v1678 = vunpack.c.0.s8 %v1677
      %v1679 = vlaneseq
      %v1680 = vshrl.u32 %v1679, 7
      %v1681 = vsub.s32 %v1678, %v1680
      %v1682 = vrot.slane %v1671, %v1681
      %v1684 = vunpack.c.l.s4 1983009808
      %v1685 = vunpack.c.0.s8 %v1684
      %v1686 = vlaneseq
      %v1687 = vshrl.u32 %v1686, 7
      %v1688 = vsub.s32 %v1685, %v1687
      %v1689 = vrot.slane %v1675, %v1688
      %v1690 = vcombine.high %v1682, %v1682
      %v1691 = vcombine.high %v1689, %v1689
      %v1693 = vunpack.c.l.s4 1983009808
      %v1694 = vunpack.c.0.s8 %v1693
      %v1695 = vlaneseq
      %v1696 = vshrl.u32 %v1695, 7
      %v1697 = vsub.s32 %v1694, %v1696
      %v1698 = vrot.slane %v1672, %v1697
      %v1699 = vcombine.high %v1698, %v1698
      %1700 = vrot.lane.b32.xlu0 %v1682, 37
      %v1701 = vpop.permute.xlu0 %1700
      %1702 = vrot.lane.b32.xlu0 %v1690, 37
      %v1703 = vpop.permute.xlu0 %1702
      %1704 = vrot.lane.b32.xlu0 %v1689, 37
      %v1705 = vpop.permute.xlu0 %1704
      %1706 = vrot.lane.b32.xlu0 %v1691, 37
      %v1707 = vpop.permute.xlu0 %1706
      %1708 = vrot.lane.b32.xlu0 %v1698, 37
      %v1709 = vpop.permute.xlu0 %1708
      %1710 = vrot.lane.b32.xlu0 %v1699, 37
      %v1711 = vpop.permute.xlu0 %1710
      %vm1712 = vcmask 302080
      %v1713 = vsel %vm1712, %v1701, %v1703
      %v1714 = vsel %vm1712, %v1703, %v1705
      %v1715 = vsel %vm1712, %v1705, %v1707
      %v1716 = vsel %vm1712, %v1707, %v1709
      %v1717 = vsel %vm1712, %v1709, %v1711
      %1723 = vst [vmem:[#allocation3 + $0xc8] sm:$0x3] %v1713
      %1724 = vst [vmem:[#allocation3 + $0xd0] sm:$0x3] %v1714
      %1725 = vst [vmem:[#allocation3 + $0xd8] sm:$0x3] %v1715
      %1726 = vst [vmem:[#allocation3 + $0xe0] sm:$0x3] %v1716
      %1727 = vst [vmem:[#allocation3 + $0xe8] sm:$0x3] %v1717
      %v1728 = vld [vmem:[#allocation2 + $0x2] sm:$0xff]
      %v1729 = vld [vmem:[#allocation2 + $0xa] sm:$0xf]
      %v1732 = vcombine.low %v1728, %v1728
      %v1734 = vunpack.c.l.s4 1983009808
      %v1735 = vunpack.c.0.s8 %v1734
      %v1736 = vlaneseq
      %v1737 = vshrl.u32 %v1736, 7
      %v1738 = vsub.s32 %v1735, %v1737
      %v1739 = vrot.slane %v1732, %v1738
      %v1741 = vunpack.c.l.s4 1983009808
      %v1742 = vunpack.c.0.s8 %v1741
      %v1743 = vlaneseq
      %v1744 = vshrl.u32 %v1743, 7
      %v1745 = vsub.s32 %v1742, %v1744
      %v1746 = vrot.slane %v1728, %v1745
      %v1747 = vcombine.high %v1739, %v1739
      %v1748 = vcombine.high %v1746, %v1746
      %v1749 = vcombine.low %v1729, %v1729
      %v1751 = vunpack.c.l.s4 1983009808
      %v1752 = vunpack.c.0.s8 %v1751
      %v1753 = vlaneseq
      %v1754 = vshrl.u32 %v1753, 7
      %v1755 = vsub.s32 %v1752, %v1754
      %v1756 = vrot.slane %v1749, %v1755
      %v1757 = vcombine.high %v1756, %v1756
      %1758 = vrot.lane.b32.xlu0 %v1739, 29
      %v1759 = vpop.permute.xlu0 %1758
      %1760 = vrot.lane.b32.xlu0 %v1747, 29
      %v1761 = vpop.permute.xlu0 %1760
      %1762 = vrot.lane.b32.xlu0 %v1746, 29
      %v1763 = vpop.permute.xlu0 %1762
      %1764 = vrot.lane.b32.xlu0 %v1748, 29
      %v1765 = vpop.permute.xlu0 %1764
      %1766 = vrot.lane.b32.xlu0 %v1756, 29
      %v1767 = vpop.permute.xlu0 %1766
      %1768 = vrot.lane.b32.xlu0 %v1757, 29
      %v1769 = vpop.permute.xlu0 %1768
      %vm1770 = vcmask 236544
      %v1771 = vsel %vm1770, %v1759, %v1761
      %v1772 = vsel %vm1770, %v1761, %v1763
      %v1773 = vsel %vm1770, %v1763, %v1765
      %v1774 = vsel %vm1770, %v1765, %v1767
      %v1775 = vsel %vm1770, %v1767, %v1769
      %1781 = vst [vmem:[#allocation3 + $0xc8] sm:$0xc] %v1771
      %1782 = vst [vmem:[#allocation3 + $0xd0] sm:$0xc] %v1772
      %1783 = vst [vmem:[#allocation3 + $0xd8] sm:$0xc] %v1773
      %1784 = vst [vmem:[#allocation3 + $0xe0] sm:$0xc] %v1774
      %1785 = vst [vmem:[#allocation3 + $0xe8] sm:$0xc] %v1775
      %v1786 = vld [vmem:[#allocation2 + $0x2] sm:$0xff]
      %v1787 = vld [vmem:[#allocation2 + $0xa] sm:$0xf]
      %v1790 = vcombine.high %v1786, %v1786
      %v1792 = vunpack.c.l.s4 1983009808
      %v1793 = vunpack.c.0.s8 %v1792
      %v1794 = vlaneseq
      %v1795 = vshrl.u32 %v1794, 7
      %v1796 = vsub.s32 %v1793, %v1795
      %v1797 = vrot.slane %v1786, %v1796
      %v1799 = vunpack.c.l.s4 1983009808
      %v1800 = vunpack.c.0.s8 %v1799
      %v1801 = vlaneseq
      %v1802 = vshrl.u32 %v1801, 7
      %v1803 = vsub.s32 %v1800, %v1802
      %v1804 = vrot.slane %v1790, %v1803
      %v1805 = vcombine.low %v1797, %v1797
      %v1806 = vcombine.low %v1804, %v1804
      %v1808 = vunpack.c.l.s4 1983009808
      %v1809 = vunpack.c.0.s8 %v1808
      %v1810 = vlaneseq
      %v1811 = vshrl.u32 %v1810, 7
      %v1812 = vsub.s32 %v1809, %v1811
      %v1813 = vrot.slane %v1787, %v1812
      %v1814 = vcombine.low %v1813, %v1813
      %1815 = vrot.lane.b32.xlu0 %v1805, 28
      %v1816 = vpop.permute.xlu0 %1815
      %1817 = vrot.lane.b32.xlu0 %v1797, 28
      %v1818 = vpop.permute.xlu0 %1817
      %1819 = vrot.lane.b32.xlu0 %v1806, 28
      %v1820 = vpop.permute.xlu0 %1819
      %1821 = vrot.lane.b32.xlu0 %v1804, 28
      %v1822 = vpop.permute.xlu0 %1821
      %1823 = vrot.lane.b32.xlu0 %v1814, 28
      %v1824 = vpop.permute.xlu0 %1823
      %1825 = vrot.lane.b32.xlu0 %v1813, 28
      %v1826 = vpop.permute.xlu0 %1825
      %vm1827 = vcmask 228352
      %v1828 = vsel %vm1827, %v1816, %v1818
      %v1829 = vsel %vm1827, %v1818, %v1820
      %v1830 = vsel %vm1827, %v1820, %v1822
      %v1831 = vsel %vm1827, %v1822, %v1824
      %v1832 = vsel %vm1827, %v1824, %v1826
      %1838 = vst [vmem:[#allocation3 + $0xc8] sm:$0x30] %v1828
      %1839 = vst [vmem:[#allocation3 + $0xd0] sm:$0x30] %v1829
      %1840 = vst [vmem:[#allocation3 + $0xd8] sm:$0x30] %v1830
      %1841 = vst [vmem:[#allocation3 + $0xe0] sm:$0x30] %v1831
      %1842 = vst [vmem:[#allocation3 + $0xe8] sm:$0x30] %v1832
      %v1843 = vld [vmem:[#allocation2 + $0x2] sm:$0xff]
      %v1844 = vld [vmem:[#allocation2 + $0xa] sm:$0xf]
      %v1847 = vcombine.low %v1843, %v1843
      %v1849 = vunpack.c.l.s4 1983009808
      %v1850 = vunpack.c.0.s8 %v1849
      %v1851 = vlaneseq
      %v1852 = vshrl.u32 %v1851, 7
      %v1853 = vsub.s32 %v1850, %v1852
      %v1854 = vrot.slane %v1847, %v1853
      %v1856 = vunpack.c.l.s4 1983009808
      %v1857 = vunpack.c.0.s8 %v1856
      %v1858 = vlaneseq
      %v1859 = vshrl.u32 %v1858, 7
      %v1860 = vsub.s32 %v1857, %v1859
      %v1861 = vrot.slane %v1843, %v1860
      %v1862 = vcombine.low %v1854, %v1854
      %v1863 = vcombine.low %v1861, %v1861
      %v1864 = vcombine.low %v1844, %v1844
      %v1866 = vunpack.c.l.s4 1983009808
      %v1867 = vunpack.c.0.s8 %v1866
      %v1868 = vlaneseq
      %v1869 = vshrl.u32 %v1868, 7
      %v1870 = vsub.s32 %v1867, %v1869
      %v1871 = vrot.slane %v1864, %v1870
      %v1872 = vcombine.low %v1871, %v1871
      %1873 = vrot.lane.b32.xlu0 %v1862, 27
      %v1874 = vpop.permute.xlu0 %1873
      %1875 = vrot.lane.b32.xlu0 %v1854, 27
      %v1876 = vpop.permute.xlu0 %1875
      %1877 = vrot.lane.b32.xlu0 %v1863, 27
      %v1878 = vpop.permute.xlu0 %1877
      %1879 = vrot.lane.b32.xlu0 %v1861, 27
      %v1880 = vpop.permute.xlu0 %1879
      %1881 = vrot.lane.b32.xlu0 %v1872, 27
      %v1882 = vpop.permute.xlu0 %1881
      %1883 = vrot.lane.b32.xlu0 %v1871, 27
      %v1884 = vpop.permute.xlu0 %1883
      %vm1885 = vcmask 220160
      %v1886 = vsel %vm1885, %v1874, %v1876
      %v1887 = vsel %vm1885, %v1876, %v1878
      %v1888 = vsel %vm1885, %v1878, %v1880
      %v1889 = vsel %vm1885, %v1880, %v1882
      %v1890 = vsel %vm1885, %v1882, %v1884
      %1896 = vst [vmem:[#allocation3 + $0xc8] sm:$0xc0] %v1886
      %1897 = vst [vmem:[#allocation3 + $0xd0] sm:$0xc0] %v1887
      %1898 = vst [vmem:[#allocation3 + $0xd8] sm:$0xc0] %v1888
      %1899 = vst [vmem:[#allocation3 + $0xe0] sm:$0xc0] %v1889
      %1900 = vst [vmem:[#allocation3 + $0xe8] sm:$0xc0] %v1890
      %v1901 = vld [vmem:[#allocation2 + $0x2] sm:$0xff]
      %v1902 = vld [vmem:[#allocation2 + $0xa] sm:$0xf]
      %v1905 = vcombine.high %v1901, %v1901
      %v1907 = vunpack.c.l.s4 1983009808
      %v1908 = vunpack.c.0.s8 %v1907
      %v1909 = vlaneseq
      %v1910 = vshrl.u32 %v1909, 7
      %v1911 = vsub.s32 %v1908, %v1910
      %v1912 = vrot.slane %v1901, %v1911
      %v1914 = vunpack.c.l.s4 1983009808
      %v1915 = vunpack.c.0.s8 %v1914
      %v1916 = vlaneseq
      %v1917 = vshrl.u32 %v1916, 7
      %v1918 = vsub.s32 %v1915, %v1917
      %v1919 = vrot.slane %v1905, %v1918
      %v1920 = vcombine.high %v1912, %v1912
      %v1921 = vcombine.high %v1919, %v1919
      %v1923 = vunpack.c.l.s4 1983009808
      %v1924 = vunpack.c.0.s8 %v1923
      %v1925 = vlaneseq
      %v1926 = vshrl.u32 %v1925, 7
      %v1927 = vsub.s32 %v1924, %v1926
      %v1928 = vrot.slane %v1902, %v1927
      %v1929 = vcombine.high %v1928, %v1928
      %1930 = vrot.lane.b32.xlu0 %v1912, 19
      %v1931 = vpop.permute.xlu0 %1930
      %1932 = vrot.lane.b32.xlu0 %v1920, 19
      %v1933 = vpop.permute.xlu0 %1932
      %1934 = vrot.lane.b32.xlu0 %v1919, 19
      %v1935 = vpop.permute.xlu0 %1934
      %1936 = vrot.lane.b32.xlu0 %v1921, 19
      %v1937 = vpop.permute.xlu0 %1936
      %1938 = vrot.lane.b32.xlu0 %v1928, 19
      %v1939 = vpop.permute.xlu0 %1938
      %1940 = vrot.lane.b32.xlu0 %v1929, 19
      %v1941 = vpop.permute.xlu0 %1940
      %vm1942 = vcmask 154624
      %v1943 = vsel %vm1942, %v1931, %v1933
      %v1944 = vsel %vm1942, %v1933, %v1935
      %v1945 = vsel %vm1942, %v1935, %v1937
      %v1946 = vsel %vm1942, %v1937, %v1939
      %v1947 = vsel %vm1942, %v1939, %v1941
      %1953 = vst [vmem:[#allocation3 + $0xf0] sm:$0x3] %v1943
      %1954 = vst [vmem:[#allocation3 + $0xf8] sm:$0x3] %v1944
      %1955 = vst [vmem:[#allocation3 + $0x100] sm:$0x3] %v1945
      %1956 = vst [vmem:[#allocation3 + $0x108] sm:$0x3] %v1946
      %1957 = vst [vmem:[#allocation3 + $0x110] sm:$0x3] %v1947
      %v1958 = vld [vmem:[#allocation2 + $0x2] sm:$0xff]
      %v1959 = vld [vmem:[#allocation2 + $0xa] sm:$0xf]
      %v1962 = vcombine.low %v1958, %v1958
      %v1964 = vunpack.c.l.s4 1983009808
      %v1965 = vunpack.c.0.s8 %v1964
      %v1966 = vlaneseq
      %v1967 = vshrl.u32 %v1966, 7
      %v1968 = vsub.s32 %v1965, %v1967
      %v1969 = vrot.slane %v1962, %v1968
      %v1971 = vunpack.c.l.s4 1983009808
      %v1972 = vunpack.c.0.s8 %v1971
      %v1973 = vlaneseq
      %v1974 = vshrl.u32 %v1973, 7
      %v1975 = vsub.s32 %v1972, %v1974
      %v1976 = vrot.slane %v1958, %v1975
      %v1977 = vcombine.high %v1969, %v1969
      %v1978 = vcombine.high %v1976, %v1976
      %v1979 = vcombine.low %v1959, %v1959
      %v1981 = vunpack.c.l.s4 1983009808
      %v1982 = vunpack.c.0.s8 %v1981
      %v1983 = vlaneseq
      %v1984 = vshrl.u32 %v1983, 7
      %v1985 = vsub.s32 %v1982, %v1984
      %v1986 = vrot.slane %v1979, %v1985
      %v1987 = vcombine.high %v1986, %v1986
      %1988 = vrot.lane.b32.xlu0 %v1969, 18
      %v1989 = vpop.permute.xlu0 %1988
      %1990 = vrot.lane.b32.xlu0 %v1977, 18
      %v1991 = vpop.permute.xlu0 %1990
      %1992 = vrot.lane.b32.xlu0 %v1976, 18
      %v1993 = vpop.permute.xlu0 %1992
      %1994 = vrot.lane.b32.xlu0 %v1978, 18
      %v1995 = vpop.permute.xlu0 %1994
      %1996 = vrot.lane.b32.xlu0 %v1986, 18
      %v1997 = vpop.permute.xlu0 %1996
      %1998 = vrot.lane.b32.xlu0 %v1987, 18
      %v1999 = vpop.permute.xlu0 %1998
      %vm2000 = vcmask 146432
      %v2001 = vsel %vm2000, %v1989, %v1991
      %v2002 = vsel %vm2000, %v1991, %v1993
      %v2003 = vsel %vm2000, %v1993, %v1995
      %v2004 = vsel %vm2000, %v1995, %v1997
      %v2005 = vsel %vm2000, %v1997, %v1999
      %2011 = vst [vmem:[#allocation3 + $0xf0] sm:$0xc] %v2001
      %2012 = vst [vmem:[#allocation3 + $0xf8] sm:$0xc] %v2002
      %2013 = vst [vmem:[#allocation3 + $0x100] sm:$0xc] %v2003
      %2014 = vst [vmem:[#allocation3 + $0x108] sm:$0xc] %v2004
      %2015 = vst [vmem:[#allocation3 + $0x110] sm:$0xc] %v2005
      %v2016 = vld [vmem:[#allocation2 + $0x2] sm:$0xff]
      %v2017 = vld [vmem:[#allocation2 + $0xa] sm:$0xf]
      %v2020 = vcombine.high %v2016, %v2016
      %v2022 = vunpack.c.l.s4 1983009808
      %v2023 = vunpack.c.0.s8 %v2022
      %v2024 = vlaneseq
      %v2025 = vshrl.u32 %v2024, 7
      %v2026 = vsub.s32 %v2023, %v2025
      %v2027 = vrot.slane %v2016, %v2026
      %v2029 = vunpack.c.l.s4 1983009808
      %v2030 = vunpack.c.0.s8 %v2029
      %v2031 = vlaneseq
      %v2032 = vshrl.u32 %v2031, 7
      %v2033 = vsub.s32 %v2030, %v2032
      %v2034 = vrot.slane %v2020, %v2033
      %v2035 = vcombine.low %v2027, %v2027
      %v2036 = vcombine.low %v2034, %v2034
      %v2038 = vunpack.c.l.s4 1983009808
      %v2039 = vunpack.c.0.s8 %v2038
      %v2040 = vlaneseq
      %v2041 = vshrl.u32 %v2040, 7
      %v2042 = vsub.s32 %v2039, %v2041
      %v2043 = vrot.slane %v2017, %v2042
      %v2044 = vcombine.low %v2043, %v2043
      %2045 = vrot.lane.b32.xlu0 %v2035, 17
      %v2046 = vpop.permute.xlu0 %2045
      %2047 = vrot.lane.b32.xlu0 %v2027, 17
      %v2048 = vpop.permute.xlu0 %2047
      %2049 = vrot.lane.b32.xlu0 %v2036, 17
      %v2050 = vpop.permute.xlu0 %2049
      %2051 = vrot.lane.b32.xlu0 %v2034, 17
      %v2052 = vpop.permute.xlu0 %2051
      %2053 = vrot.lane.b32.xlu0 %v2044, 17
      %v2054 = vpop.permute.xlu0 %2053
      %2055 = vrot.lane.b32.xlu0 %v2043, 17
      %v2056 = vpop.permute.xlu0 %2055
      %vm2057 = vcmask 138240
      %v2058 = vsel %vm2057, %v2046, %v2048
      %v2059 = vsel %vm2057, %v2048, %v2050
      %v2060 = vsel %vm2057, %v2050, %v2052
      %v2061 = vsel %vm2057, %v2052, %v2054
      %v2062 = vsel %vm2057, %v2054, %v2056
      %2068 = vst [vmem:[#allocation3 + $0xf0] sm:$0x30] %v2058
      %2069 = vst [vmem:[#allocation3 + $0xf8] sm:$0x30] %v2059
      %2070 = vst [vmem:[#allocation3 + $0x100] sm:$0x30] %v2060
      %2071 = vst [vmem:[#allocation3 + $0x108] sm:$0x30] %v2061
      %2072 = vst [vmem:[#allocation3 + $0x110] sm:$0x30] %v2062
      %2073 = vst [vmem:[#allocation3 + $0xf0] sm:$0xc0] 0
      %2074 = vst [vmem:[#allocation3 + $0xf8] sm:$0xc0] 0
      %2075 = vst [vmem:[#allocation3 + $0x100] sm:$0xc0] 0
      %2076 = vst [vmem:[#allocation3 + $0x108] sm:$0xc0] 0
      %2077 = vst [vmem:[#allocation3 + $0x110] sm:$0xc0] 0
      %v2078 = vld [vmem:[%s1] sm:$0xf]
      %v2079 = vld [vmem:[#allocation3] sm:$0xff]
      %v2080 = vld [vmem:[#allocation3 + $0x8] sm:$0xff]
      %v2081 = vld [vmem:[#allocation3 + $0x10] sm:$0xff]
      %v2082 = vld [vmem:[#allocation3 + $0x18] sm:$0xff]
      %v2083 = vld [vmem:[#allocation3 + $0x20] sm:$0xff]
      %v2084 = vld [vmem:[#allocation3 + $0x28] sm:$0xff]
      %v2085 = vld [vmem:[#allocation3 + $0x30] sm:$0xff]
      %v2086 = vld [vmem:[#allocation3 + $0x38] sm:$0xff]
      %v2087 = vld [vmem:[#allocation3 + $0x40] sm:$0xff]
      %v2088 = vld [vmem:[#allocation3 + $0x48] sm:$0xff]
      %v2089 = vld [vmem:[#allocation3 + $0x50] sm:$0xff]
      %v2090 = vld [vmem:[#allocation3 + $0x58] sm:$0xff]
      %v2091 = vld [vmem:[#allocation3 + $0x60] sm:$0xff]
      %v2092 = vld [vmem:[#allocation3 + $0x68] sm:$0xff]
      %v2093 = vld [vmem:[#allocation3 + $0x70] sm:$0xff]
      %v2094 = vld [vmem:[#allocation3 + $0x78] sm:$0xff]
      %v2095 = vld [vmem:[#allocation3 + $0x80] sm:$0xff]
      %v2096 = vld [vmem:[#allocation3 + $0x88] sm:$0xff]
      %v2097 = vld [vmem:[#allocation3 + $0x90] sm:$0xff]
      %v2098 = vld [vmem:[#allocation3 + $0x98] sm:$0xff]
      %v2099 = vld [vmem:[#allocation3 + $0xa0] sm:$0xff]
      %v2100 = vld [vmem:[#allocation3 + $0xa8] sm:$0xff]
      %v2101 = vld [vmem:[#allocation3 + $0xb0] sm:$0xff]
      %v2102 = vld [vmem:[#allocation3 + $0xb8] sm:$0xff]
      %v2103 = vld [vmem:[#allocation3 + $0xc0] sm:$0xff]
      %v2104 = vld [vmem:[#allocation3 + $0xc8] sm:$0xff]
      %v2105 = vld [vmem:[#allocation3 + $0xd0] sm:$0xff]
      %v2106 = vld [vmem:[#allocation3 + $0xd8] sm:$0xff]
      %v2107 = vld [vmem:[#allocation3 + $0xe0] sm:$0xff]
      %v2108 = vld [vmem:[#allocation3 + $0xe8] sm:$0xff]
      %v2109 = vld [vmem:[#allocation3 + $0xf0] sm:$0xff]
      %v2110 = vld [vmem:[#allocation3 + $0xf8] sm:$0xff]
      %v2111 = vld [vmem:[#allocation3 + $0x100] sm:$0xff]
      %v2112 = vld [vmem:[#allocation3 + $0x108] sm:$0xff]
      %v2113 = vld [vmem:[#allocation3 + $0x110] sm:$0xff]
      %v2114 = vld [vmem:[%s2] sm:$0xff]
      %2116 = vset.pattern.permute.xlu0 0
      %2117 = vperm.xlu0 %2116, %v2114
      %v2118 = vpop.permute.xlu0 %2117
      %vm2120 = vcmask 916480
      %v2122 = vsel %vm2120, %v2078, 0
      %2124 = vmatprep.subr.bf16.mxu0 %v2080
      %2125 = vmatpush1.bf16.msra.mxu0 %v2079
      %2126 = vmatprep.subr.bf16.mxu0 %v2085
      %2127 = vmatpush1.bf16.msra.mxu0 %v2084
      %2128 = vmatprep.subr.bf16.mxu0 %v2090
      %2129 = vmatpush1.bf16.msra.mxu0 %v2089
      %2130 = vmatprep.subr.bf16.mxu0 %v2095
      %2131 = vmatpush1.bf16.msra.mxu0 %v2094
      %2132 = vmatprep.subr.bf16.mxu0 %v2100
      %2133 = vmatpush1.bf16.msra.mxu0 %v2099
      %2134 = vmatprep.subr.bf16.mxu0 %v2105
      %2135 = vmatpush1.bf16.msra.mxu0 %v2104
      %2136 = vmatprep.subr.bf16.mxu0 %v2110
      %2137 = vmatpush1.bf16.msra.mxu0 %v2109
      %2138 = vmatprep.subr.bf16.mxu0 0
      %2139 = vmatpush1.bf16.msra.mxu0 0
      %2140 = vmatprep.subr.bf16.mxu0 0
      %2141 = vmatpush1.bf16.msra.mxu0 0
      %2142 = vmatprep.subr.bf16.mxu0 0
      %2143 = vmatpush1.bf16.msra.mxu0 0
      %2144 = vmatprep.subr.bf16.mxu0 0
      %2145 = vmatpush1.bf16.msra.mxu0 0
      %2146 = vmatprep.subr.bf16.mxu0 0
      %2147 = vmatpush1.bf16.msra.mxu0 0
      %2148 = vmatprep.subr.bf16.mxu0 0
      %2149 = vmatpush1.bf16.msra.mxu0 0
      %2150 = vmatprep.subr.bf16.mxu0 0
      %2151 = vmatpush1.bf16.msra.mxu0 0
      %2152 = vmatprep.subr.bf16.mxu0 0
      %2153 = vmatpush1.bf16.msra.mxu0 0
      %2154 = vmatprep.subr.bf16.mxu0 0
      %2155 = vmatpush1.bf16.msra.mxu0 0
      %2156 = vmatprep.mubr.bf16.mxu0 0
      %2157 = vmatmul.mubr.bf16.gmra.mrb[0].mxu0 %v2122
      %v2158 = vpop.f32.mrb[0].mxu0
      %v2159 = vadd.f32 %v2118, %v2158
      %v2160 = vpop.f32.mrb[0].mxu0
      %v2161 = vadd.f32 %v2118, %v2160
      %v2162 = vpop.f32.mrb[0].mxu0
      %v2163 = vpop.f32.mrb[0].mxu0
      %2164 = vdwg.mxu0
      %2165 = vmatprep.subr.bf16.mxu0 %v2082
      %2166 = vmatpush1.bf16.msra.mxu0 %v2081
      %2167 = vmatprep.subr.bf16.mxu0 %v2087
      %2168 = vmatpush1.bf16.msra.mxu0 %v2086
      %2169 = vmatprep.subr.bf16.mxu0 %v2092
      %2170 = vmatpush1.bf16.msra.mxu0 %v2091
      %2171 = vmatprep.subr.bf16.mxu0 %v2097
      %2172 = vmatpush1.bf16.msra.mxu0 %v2096
      %2173 = vmatprep.subr.bf16.mxu0 %v2102
      %2174 = vmatpush1.bf16.msra.mxu0 %v2101
      %2175 = vmatprep.subr.bf16.mxu0 %v2107
      %2176 = vmatpush1.bf16.msra.mxu0 %v2106
      %2177 = vmatprep.subr.bf16.mxu0 %v2112
      %2178 = vmatpush1.bf16.msra.mxu0 %v2111
      %2179 = vmatprep.subr.bf16.mxu0 0
      %2180 = vmatpush1.bf16.msra.mxu0 0
      %2181 = vmatprep.subr.bf16.mxu0 0
      %2182 = vmatpush1.bf16.msra.mxu0 0
      %2183 = vmatprep.subr.bf16.mxu0 0
      %2184 = vmatpush1.bf16.msra.mxu0 0
      %2185 = vmatprep.subr.bf16.mxu0 0
      %2186 = vmatpush1.bf16.msra.mxu0 0
      %2187 = vmatprep.subr.bf16.mxu0 0
      %2188 = vmatpush1.bf16.msra.mxu0 0
      %2189 = vmatprep.subr.bf16.mxu0 0
      %2190 = vmatpush1.bf16.msra.mxu0 0
      %2191 = vmatprep.subr.bf16.mxu0 0
      %2192 = vmatpush1.bf16.msra.mxu0 0
      %2193 = vmatprep.subr.bf16.mxu0 0
      %2194 = vmatpush1.bf16.msra.mxu0 0
      %2195 = vmatprep.subr.bf16.mxu0 0
      %2196 = vmatpush1.bf16.msra.mxu0 0
      %2197 = vmatprep.mubr.bf16.mxu0 0
      %2198 = vmatmul.mubr.bf16.gmra.mrb[0].mxu0 %v2122
      %v2199 = vpop.f32.mrb[0].mxu0
      %v2200 = vadd.f32 %v2118, %v2199
      %v2201 = vpop.f32.mrb[0].mxu0
      %v2202 = vadd.f32 %v2118, %v2201
      %v2203 = vpop.f32.mrb[0].mxu0
      %v2204 = vpop.f32.mrb[0].mxu0
      %2205 = vdwg.mxu0
      %2206 = vmatprep.subr.bf16.mxu0 0
      %2207 = vmatpush1.bf16.msra.mxu0 %v2083
      %2208 = vmatprep.subr.bf16.mxu0 0
      %2209 = vmatpush1.bf16.msra.mxu0 %v2088
      %2210 = vmatprep.subr.bf16.mxu0 0
      %2211 = vmatpush1.bf16.msra.mxu0 %v2093
      %2212 = vmatprep.subr.bf16.mxu0 0
      %2213 = vmatpush1.bf16.msra.mxu0 %v2098
      %2214 = vmatprep.subr.bf16.mxu0 0
      %2215 = vmatpush1.bf16.msra.mxu0 %v2103
      %2216 = vmatprep.subr.bf16.mxu0 0
      %2217 = vmatpush1.bf16.msra.mxu0 %v2108
      %2218 = vmatprep.subr.bf16.mxu0 0
      %2219 = vmatpush1.bf16.msra.mxu0 %v2113
      %2220 = vmatprep.subr.bf16.mxu0 0
      %2221 = vmatpush1.bf16.msra.mxu0 0
      %2222 = vmatprep.subr.bf16.mxu0 0
      %2223 = vmatpush1.bf16.msra.mxu0 0
      %2224 = vmatprep.subr.bf16.mxu0 0
      %2225 = vmatpush1.bf16.msra.mxu0 0
      %2226 = vmatprep.subr.bf16.mxu0 0
      %2227 = vmatpush1.bf16.msra.mxu0 0
      %2228 = vmatprep.subr.bf16.mxu0 0
      %2229 = vmatpush1.bf16.msra.mxu0 0
      %2230 = vmatprep.subr.bf16.mxu0 0
      %2231 = vmatpush1.bf16.msra.mxu0 0
      %2232 = vmatprep.subr.bf16.mxu0 0
      %2233 = vmatpush1.bf16.msra.mxu0 0
      %2234 = vmatprep.subr.bf16.mxu0 0
      %2235 = vmatpush1.bf16.msra.mxu0 0
      %2236 = vmatprep.subr.bf16.mxu0 0
      %2237 = vmatpush1.bf16.msra.mxu0 0
      %2238 = vmatprep.mubr.bf16.mxu0 0
      %2239 = vmatmul.mubr.bf16.gmra.mrb[0].mxu0 %v2122
      %v2240 = vpop.f32.mrb[0].mxu0
      %v2241 = vadd.f32 %v2118, %v2240
      %v2242 = vpop.f32.mrb[0].mxu0
      %v2243 = vpop.f32.mrb[0].mxu0
      %v2244 = vpop.f32.mrb[0].mxu0
      %2245 = vdwg.mxu0
      %2246 = vst [vmem:[%s276] sm:$0xff] %v2159
      %2247 = vst [vmem:[%s276 + $0x8] sm:$0xff] %v2161
      %2248 = vst [vmem:[%s276 + $0x10] sm:$0xff] %v2200
      %2249 = vst [vmem:[%s276 + $0x18] sm:$0xff] %v2202
      %2250 = vst [vmem:[%s276 + $0x20] sm:$0xff] %v2241
      %v2251 = vsel %vm447, %v2159, 0.0
      %v2252 = vsel %vm448, %v2161, 0.0
      %v2253 = vsel %vm449, %v2200, 0.0
      %v2254 = vsel %vm450, %v2202, 0.0
      %v2255 = vsel %vm451, %v2241, 0.0
      %v2256 = vld [vmem:[%s7] sm:$0xff]
      %v2257 = vadd.f32 %v2251, %v2252
      %v2258 = vadd.f32 %v2257, %v2253
      %v2259 = vadd.f32 %v2258, %v2254
      %v2260 = vadd.f32 %v2259, %v2255
      %2261 = vadd.xlane.f32.xlu0 %v2260
      %v2262 = vpop.xlane.xlu0 %2261
      %v2263 = vadd.f32 %v2256, %v2262
      %vm2264 = vcmask 7168
      %2265 = vst.msk [vmem:[%s7] sm:$0xff] %vm2264, %v2263
      %v2266 = vld [vmem:[%s7] sm:$0xff]
      %v2267 = vmul.f32 %v2251, %v2251
      %v2268 = vmul.f32 %v2252, %v2252
      %v2269 = vmul.f32 %v2253, %v2253
      %v2270 = vmul.f32 %v2254, %v2254
      %v2271 = vmul.f32 %v2255, %v2255
      %v2272 = vadd.f32 %v2267, %v2268
      %v2273 = vadd.f32 %v2272, %v2269
      %v2274 = vadd.f32 %v2273, %v2270
      %v2275 = vadd.f32 %v2274, %v2271
      %2276 = vadd.xlane.f32.xlu0 %v2275
      %v2277 = vpop.xlane.xlu0 %2276
      %v2278 = vadd.f32 %v2266, %v2277
      %vm2279 = vcmask 15368
      %2280 = vst.msk [vmem:[%s7] sm:$0xff] %vm2279, %v2278
      %p2281 = scmp.lt.s32.totalorder %s19, 1
      %s2282 = scalar_select %p2281, %s19, 1
      %s2283 = smul.addr %s2282, 5
      %s2284 = smul.addr %s2283, 8
      %s2285 = scalar_lea.vmem %s6, %s2284
      // Predicated region
      $region49: #{down_forward.3} parent=43 // pred_check
        %p2286 = pneg %p168
      $region50: #{down_forward.3} parent=43 // pred_check_branch
        %2288 = sbr.rel (%p2286) target = $region52
      $region51: #{down_forward.3} parent=43 // pred_region
        _
      $region52: #{down_forward.3} parent=43 // pred_fallthru
        _
      // Predicated region
      $region53: #{down_forward.3} parent=43 // pred_check
        %p2289 = pneg %p189
      $region54: #{down_forward.3} parent=43 // pred_check_branch
        %2291 = sbr.rel (%p2289) target = $region56
      $region55: #{down_forward.3} parent=43 // pred_region
        _
      $region56: #{down_forward.3} parent=43 // pred_fallthru
        _
      // Predicated region
      $region57: #{down_forward.3} parent=43 // pred_check
        %p2292 = pneg %p189
      $region58: #{down_forward.3} parent=43 // pred_check_branch
        %2294 = sbr.rel (%p2292) target = $region60
      $region59: #{down_forward.3} parent=43 // pred_region
        _
      $region60: #{down_forward.3} parent=43 // pred_fallthru
        _
    $region44: #{down_forward.3} parent=5 // pred_fallthru
      _
    %p2295 = scmp.le.s32.totalorder 2, %s14
    // Predicated region
    $region61: #{down_forward.3} parent=5 // pred_check
      %p2296 = pneg %p2295
    $region62: #{down_forward.3} parent=5 // pred_check_branch
      %2298 = sbr.rel (%p2296) target = $region64
    $region63: #{down_forward.3} parent=5 // pred_region
      %s2299 = ssub.s32 %s14, 2
      // Predicated region
      $region65: #{down_forward.3} parent=63 // pred_check
        %p2300 = pneg %p174
      $region66: #{down_forward.3} parent=63 // pred_check_branch
        %2302 = sbr.rel (%p2300) target = $region68
      $region67: #{down_forward.3} parent=63 // pred_region
        %p2303 = scmp.lt.s32.totalorder %s20, 1
        %s2304 = scalar_select %p2303, %s20, 1
        %s2305 = smul.addr %s2304, 5
        %s2306 = smul.addr %s2305, 8
        %s2307 = scalar_lea.vmem %s6, %s2306
      $region68: #{down_forward.3} parent=63 // pred_fallthru
        _
    $region64: #{down_forward.3} parent=5 // pred_fallthru
      _
  $region6: #{down_forward.3} parent=0 // loop_footer
    %s18 = sadd.s32 1, %s14
  $region7: #{down_forward.3} parent=0 // loop_footer_branch
    %13 = sbr.rel target = $region3
  $region8: #{down_forward.3} parent=0 // loop_exit
    _

// kernel: down_forward.5
$region0: #{down_forward.5}
  #allocation0 [shape = 'u32[]', space=smem, size = 0x4, offset = 0x4, fixed_abs, tag = 'smem constant byte address 0x4 - core index']
  #allocation1 [shape = 'u32[144,128]{1,0:T(1,128)}', space=vmem, size = 0x12000, scoped, tag = 'internal scratch']
  %s0 = inlined_call_operand.vmem [shape: f32[2,8,640], index: 0, kind: input, shape index: {}]
  %s1 = inlined_call_operand.vmem [shape: f32[8,1], index: 1, kind: input, shape index: {}]
  %s2 = inlined_call_operand.vmem [shape: f32[8,1], index: 2, kind: input, shape index: {}]
  %s3 = inlined_call_operand.vmem [shape: f32[2,8,640], index: 3, kind: output, shape index: {}]
  %s4 = sld [smem:[#allocation0]]
  $region45: #{down_forward.5} parent=0
    _
  %s6 = ssub.s32 1, %s4
  %s7 = scalar_select 0, %s6, %s4
  loop: start=0, step=1, limit=4
  $region2: #{down_forward.5} parent=0 // loop_pre_header
    _
  $region3: #{down_forward.5} parent=0 // loop_header
    %s9 = sphi 0, %s13
    %p10 = scmp.ge.s32.totalorder %s9, 4
    %s19 = sphi 0, %s21
    %s22 = sphi 0, %s19
    %s23 = sphi 0, %s22
    %s39 = sphi 0, %s23
    %s43 = sphi 0, %s43
    %s45 = sphi 0, %s43
    %s46 = sphi 0, %s45
    %s60 = sphi 0, %s46
    %s64 = sphi 0, %s64
    %s66 = sphi 0, %s64
    %s67 = sphi 0, %s66
    %s81 = sphi 0, %s67
    %s87 = sphi 0, %s89
    %s90 = sphi 0, %s87
    %s91 = sphi 0, %s90
    %s107 = sphi 0, %s91
  $region4: #{down_forward.5} parent=0 // loop_header_branch
    %12 = sbr.rel (%p10) target = $region8
  $region5: #{down_forward.5} parent=0 // loop_body
    %s14 = ssub.s32 %s9, 1
    %s15 = ssub.s32 %s9, 2
    %s16 = sadd.s32 %s9, 1
    %s17 = ssub.s32 %s9, %s16
    %p18 = scmp.eq.s32.totalorder %s17, 0
    %s20 = sadd.s32 %s19, 1
    %s21 = scalar_select %p18, %s19, %s20
    %p24 = pneg %p18
    %p25 = scmp.eq.s32.totalorder %s9, 1
    %p26 = por %p24, %p25
    %p27 = scmp.ne.s32.totalorder %s19, %s22
    %p28 = scmp.eq.s32.totalorder %s9, 0
    %p29 = por %p27, %p28
    %p30 = scmp.ne.s32.totalorder %s19, %s22
    %p31 = scmp.eq.s32.totalorder %s14, 1
    %p32 = por %p30, %p31
    %p33 = scmp.ne.s32.totalorder %s22, %s23
    %p34 = scmp.eq.s32.totalorder %s14, 0
    %p35 = por %p33, %p34
    %p36 = scmp.ne.s32.totalorder %s22, %s23
    %p37 = scmp.eq.s32.totalorder %s15, 1
    %p38 = por %p36, %p37
    %p40 = scmp.ne.s32.totalorder %s23, %s39
    %p41 = scmp.eq.s32.totalorder %s15, 0
    %p42 = por %p40, %p41
    %s44 = sadd.s32 %s43, 1
    %p47 = scmp.eq.s32.totalorder %s9, 1
    %p48 = scmp.ne.s32.totalorder %s43, %s45
    %p49 = scmp.eq.s32.totalorder %s9, 0
    %p50 = por %p48, %p49
    %p51 = scmp.ne.s32.totalorder %s43, %s45
    %p52 = scmp.eq.s32.totalorder %s14, 1
    %p53 = por %p51, %p52
    %p54 = scmp.ne.s32.totalorder %s45, %s46
    %p55 = scmp.eq.s32.totalorder %s14, 0
    %p56 = por %p54, %p55
    %p57 = scmp.ne.s32.totalorder %s45, %s46
    %p58 = scmp.eq.s32.totalorder %s15, 1
    %p59 = por %p57, %p58
    %p61 = scmp.ne.s32.totalorder %s46, %s60
    %p62 = scmp.eq.s32.totalorder %s15, 0
    %p63 = por %p61, %p62
    %s65 = sadd.s32 %s64, 1
    %p68 = scmp.eq.s32.totalorder %s9, 1
    %p69 = scmp.ne.s32.totalorder %s64, %s66
    %p70 = scmp.eq.s32.totalorder %s9, 0
    %p71 = por %p69, %p70
    %p72 = scmp.ne.s32.totalorder %s64, %s66
    %p73 = scmp.eq.s32.totalorder %s14, 1
    %p74 = por %p72, %p73
    %p75 = scmp.ne.s32.totalorder %s66, %s67
    %p76 = scmp.eq.s32.totalorder %s14, 0
    %p77 = por %p75, %p76
    %p78 = scmp.ne.s32.totalorder %s66, %s67
    %p79 = scmp.eq.s32.totalorder %s15, 1
    %p80 = por %p78, %p79
    %p82 = scmp.ne.s32.totalorder %s67, %s81
    %p83 = scmp.eq.s32.totalorder %s15, 0
    %p84 = por %p82, %p83
    %s85 = ssub.s32 %s9, %s16
    %p86 = scmp.eq.s32.totalorder %s85, 0
    %s88 = sadd.s32 %s87, 1
    %s89 = scalar_select %p86, %s87, %s88
    %p92 = pneg %p86
    %p93 = scmp.eq.s32.totalorder %s9, 1
    %p94 = por %p92, %p93
    %p95 = scmp.ne.s32.totalorder %s87, %s90
    %p96 = scmp.eq.s32.totalorder %s9, 0
    %p97 = por %p95, %p96
    %p98 = scmp.ne.s32.totalorder %s87, %s90
    %p99 = scmp.eq.s32.totalorder %s14, 1
    %p100 = por %p98, %p99
    %p101 = scmp.ne.s32.totalorder %s90, %s91
    %p102 = scmp.eq.s32.totalorder %s14, 0
    %p103 = por %p101, %p102
    %p104 = scmp.ne.s32.totalorder %s90, %s91
    %p105 = scmp.eq.s32.totalorder %s15, 1
    %p106 = por %p104, %p105
    %p108 = scmp.ne.s32.totalorder %s91, %s107
    %p109 = scmp.eq.s32.totalorder %s15, 0
    %p110 = por %p108, %p109
    %p111 = scmp.le.s32.totalorder 1, %s9
    %p112 = scmp.lt.s32.totalorder %s9, 3
    %p113 = pnand %p111, %p112
    %p114 = pneg %p113
    // Predicated region
    $region9: #{down_forward.5} parent=5 // pred_check
      _
    $region10: #{down_forward.5} parent=5 // pred_check_branch
      %116 = sbr.rel (%p113) target = $region12
    $region11: #{down_forward.5} parent=5 // pred_region
      %s117 = ssub.s32 %s9, 1
      // Predicated region
      $region13: #{down_forward.5} parent=11 // pred_check
        %p118 = pneg %p56
      $region14: #{down_forward.5} parent=11 // pred_check_branch
        %120 = sbr.rel (%p118) target = $region16
      $region15: #{down_forward.5} parent=11 // pred_region
        _
      $region16: #{down_forward.5} parent=11 // pred_fallthru
        _
      // Predicated region
      $region17: #{down_forward.5} parent=11 // pred_check
        %p121 = pneg %p77
      $region18: #{down_forward.5} parent=11 // pred_check_branch
        %123 = sbr.rel (%p121) target = $region20
      $region19: #{down_forward.5} parent=11 // pred_region
        _
      $region20: #{down_forward.5} parent=11 // pred_fallthru
        _
    $region12: #{down_forward.5} parent=5 // pred_fallthru
      _
    %p124 = scmp.lt.s32.totalorder %s9, 2
    // Predicated region
    $region21: #{down_forward.5} parent=5 // pred_check
      %p125 = pneg %p124
    $region22: #{down_forward.5} parent=5 // pred_check_branch
      %127 = sbr.rel (%p125) target = $region24
    $region23: #{down_forward.5} parent=5 // pred_region
      // Predicated region
      $region25: #{down_forward.5} parent=23 // pred_check
        %p128 = pneg %p29
      $region26: #{down_forward.5} parent=23 // pred_check_branch
        %130 = sbr.rel (%p128) target = $region28
      $region27: #{down_forward.5} parent=23 // pred_region
        %p131 = scmp.lt.s32.totalorder %s9, 1
        %s132 = scalar_select %p131, %s9, 1
        %s133 = smul.addr %s132, 5
        %s134 = smul.addr %s133, 8
        %s135 = scalar_lea.vmem %s0, %s134
      $region28: #{down_forward.5} parent=23 // pred_fallthru
        _
    $region24: #{down_forward.5} parent=5 // pred_fallthru
      _
    %p136 = scmp.le.s32.totalorder 1, %s9
    %p137 = scmp.lt.s32.totalorder %s9, 3
    %p138 = pnand %p136, %p137
    %p139 = pneg %p138
    // Predicated region
    $region29: #{down_forward.5} parent=5 // pred_check
      _
    $region30: #{down_forward.5} parent=5 // pred_check_branch
      %141 = sbr.rel (%p138) target = $region32
    $region31: #{down_forward.5} parent=5 // pred_region
      %s142 = ssub.s32 %s9, 1
      %p143 = scmp.lt.s32.totalorder %s14, 1
      %s144 = scalar_select %p143, %s14, 1
      %s145 = smul.addr %s144, 5
      %s146 = smul.addr %s145, 8
      %s147 = scalar_lea.vmem %s0, %s146
      %p148 = pneg %p35
      %p149 = pneg %p32
      %p150 = pneg %p56
      %p151 = pneg %p53
      %p152 = pneg %p77
      %p153 = pneg %p74
      %p154 = pneg %p103
      %p155 = pneg %p100
      %p156 = scmp.lt.s32.totalorder %s14, 1
      %s157 = scalar_select %p156, %s14, 1
      %s158 = smul.addr %s157, 5
      %s159 = smul.addr %s158, 8
      %s160 = scalar_lea.vmem %s3, %s159
      %p161 = scmp.lt.s32.totalorder %s14, 1
      %s162 = scalar_select %p161, %s14, 1
      %s163 = smul.addr %s162, 5
      %s164 = smul.addr %s163, 8
      %s165 = scalar_lea.vmem %s0, %s164
      %p166 = scmp.lt.s32.totalorder %s14, 1
      %s167 = scalar_select %p166, %s14, 1
      %s168 = smul.addr %s167, 5
      %s169 = smul.addr %s168, 8
      %s170 = scalar_lea.vmem %s3, %s169
      %v171 = vld [vmem:[%s165] sm:$0xff]
      %v172 = vld [vmem:[%s165 + $0x8] sm:$0xff]
      %v173 = vld [vmem:[%s165 + $0x10] sm:$0xff]
      %v174 = vld [vmem:[%s165 + $0x18] sm:$0xff]
      %v175 = vld [vmem:[%s165 + $0x20] sm:$0xff]
      %v176 = vld [vmem:[%s1] sm:$0xff]
      %178 = vset.pattern.permute.xlu0 0
      %179 = vperm.xlu0 %178, %v176
      %v180 = vpop.permute.xlu0 %179
      %v182 = vmul.f32 %v171, %v180
      %v183 = vmul.f32 %v172, %v180
      %v184 = vmul.f32 %v173, %v180
      %v185 = vmul.f32 %v174, %v180
      %v186 = vmul.f32 %v175, %v180
      %v187 = vld [vmem:[%s2] sm:$0xff]
      %189 = vset.pattern.permute.xlu0 0
      %190 = vperm.xlu0 %189, %v187
      %v191 = vpop.permute.xlu0 %190
      %v193 = vadd.f32 %v182, %v191
      %v194 = vadd.f32 %v183, %v191
      %v195 = vadd.f32 %v184, %v191
      %v196 = vadd.f32 %v185, %v191
      %v197 = vadd.f32 %v186, %v191
      %v198 = vmax.f32 %v193, 0.0
      %v199 = vmax.f32 %v194, 0.0
      %v200 = vmax.f32 %v195, 0.0
      %v201 = vmax.f32 %v196, 0.0
      %v202 = vmax.f32 %v197, 0.0
      %203 = vst [vmem:[%s170] sm:$0xff] %v198
      %204 = vst [vmem:[%s170 + $0x8] sm:$0xff] %v199
      %205 = vst [vmem:[%s170 + $0x10] sm:$0xff] %v200
      %206 = vst [vmem:[%s170 + $0x18] sm:$0xff] %v201
      %207 = vst [vmem:[%s170 + $0x20] sm:$0xff] %v202
      %p208 = scmp.lt.s32.totalorder %s14, 1
      %s209 = scalar_select %p208, %s14, 1
      %s210 = smul.addr %s209, 5
      %s211 = smul.addr %s210, 8
      %s212 = scalar_lea.vmem %s3, %s211
      // Predicated region
      $region33: #{down_forward.5} parent=31 // pred_check
        %p213 = pneg %p100
      $region34: #{down_forward.5} parent=31 // pred_check_branch
        %215 = sbr.rel (%p213) target = $region36
      $region35: #{down_forward.5} parent=31 // pred_region
        _
      $region36: #{down_forward.5} parent=31 // pred_fallthru
        _
    $region32: #{down_forward.5} parent=5 // pred_fallthru
      _
    %p216 = scmp.le.s32.totalorder 2, %s9
    // Predicated region
    $region37: #{down_forward.5} parent=5 // pred_check
      %p217 = pneg %p216
    $region38: #{down_forward.5} parent=5 // pred_check_branch
      %219 = sbr.rel (%p217) target = $region40
    $region39: #{down_forward.5} parent=5 // pred_region
      %s220 = ssub.s32 %s9, 2
      // Predicated region
      $region41: #{down_forward.5} parent=39 // pred_check
        %p221 = pneg %p106
      $region42: #{down_forward.5} parent=39 // pred_check_branch
        %223 = sbr.rel (%p221) target = $region44
      $region43: #{down_forward.5} parent=39 // pred_region
        %p224 = scmp.lt.s32.totalorder %s15, 1
        %s225 = scalar_select %p224, %s15, 1
        %s226 = smul.addr %s225, 5
        %s227 = smul.addr %s226, 8
        %s228 = scalar_lea.vmem %s3, %s227
      $region44: #{down_forward.5} parent=39 // pred_fallthru
        _
    $region40: #{down_forward.5} parent=5 // pred_fallthru
      _
  $region6: #{down_forward.5} parent=0 // loop_footer
    %s13 = sadd.s32 1, %s9
  $region7: #{down_forward.5} parent=0 // loop_footer_branch
    %8 = sbr.rel target = $region3
  $region8: #{down_forward.5} parent=0 // loop_exit
    _

// kernel: down_forward.4
$region0: #{down_forward.4}
  #allocation0 [shape = 'u32[]', space=smem, size = 0x4, offset = 0x4, fixed_abs, tag = 'smem constant byte address 0x4 - core index']
  #allocation1 [shape = 'u32[144,128]{1,0:T(1,128)}', space=vmem, size = 0x12000, scoped, tag = 'internal scratch']
  #allocation2 [shape = 'bf16[8,896]{1,0:T(8,128)(2,1)}', space=vmem, size = 0x3800, scoped, tag = 'scratch operand']
  #allocation3 [shape = 'bf16[216,640]{1,0:T(8,128)(2,1)}', space=vmem, size = 0x43800, scoped, tag = 'scratch operand']
  %s0 = inlined_call_operand.vmem [shape: f32[2,8,1,640], index: 0, kind: input, shape index: {}]
  %s1 = inlined_call_operand.vmem [shape: bf16[8,216], index: 1, kind: input, shape index: {}]
  %s2 = inlined_call_operand.vmem [shape: f32[8,1], index: 2, kind: input, shape index: {}]
  %s3 = inlined_call_operand.vmem [shape: f32[8,1], index: 3, kind: input, shape index: {}]
  %s4 = inlined_call_operand.vmem [shape: f32[8,1], index: 4, kind: input, shape index: {}]
  %s5 = inlined_call_operand.vmem [shape: f32[1,640], index: 5, kind: input, shape index: {}]
  %s6 = inlined_call_operand.vmem [shape: f32[2,8,640], index: 6, kind: output, shape index: {0}]
  %s7 = inlined_call_operand.vmem [shape: f32[8,2], index: 7, kind: output, shape index: {1}]
  %8 = xla_tuple %s6, %s7
  %s9 = sld [smem:[#allocation0]]
  $region69: #{down_forward.4} parent=0
    _
  %s11 = ssub.s32 1, %s9
  %s12 = scalar_select 0, %s11, %s9
  loop: start=0, step=1, limit=4
  $region2: #{down_forward.4} parent=0 // loop_pre_header
    _
  $region3: #{down_forward.4} parent=0 // loop_header
    %s14 = sphi 0, %s18
    %p15 = scmp.ge.s32.totalorder %s14, 4
    %s24 = sphi 0, %s26
    %s27 = sphi 0, %s24
    %s28 = sphi 0, %s27
    %s44 = sphi 0, %s28
    %s48 = sphi 0, %s48
    %s50 = sphi 0, %s48
    %s51 = sphi 0, %s50
    %s65 = sphi 0, %s51
    %s69 = sphi 0, %s69
    %s71 = sphi 0, %s69
    %s72 = sphi 0, %s71
    %s86 = sphi 0, %s72
    %s90 = sphi 0, %s90
    %s92 = sphi 0, %s90
    %s93 = sphi 0, %s92
    %s107 = sphi 0, %s93
    %s111 = sphi 0, %s111
    %s113 = sphi 0, %s111
    %s114 = sphi 0, %s113
    %s128 = sphi 0, %s114
    %s132 = sphi 0, %s132
    %s134 = sphi 0, %s132
    %s135 = sphi 0, %s134
    %s149 = sphi 0, %s135
    %s155 = sphi 0, %s157
    %s158 = sphi 0, %s155
    %s159 = sphi 0, %s158
    %s175 = sphi 0, %s159
    %s179 = sphi 0, %s179
    %s181 = sphi 0, %s179
    %s182 = sphi 0, %s181
    %s196 = sphi 0, %s182
  $region4: #{down_forward.4} parent=0 // loop_header_branch
    %17 = sbr.rel (%p15) target = $region8
  $region5: #{down_forward.4} parent=0 // loop_body
    %s19 = ssub.s32 %s14, 1
    %s20 = ssub.s32 %s14, 2
    %s21 = sadd.s32 %s14, 1
    %s22 = ssub.s32 %s14, %s21
    %p23 = scmp.eq.s32.totalorder %s22, 0
    %s25 = sadd.s32 %s24, 1
    %s26 = scalar_select %p23, %s24, %s25
    %p29 = pneg %p23
    %p30 = scmp.eq.s32.totalorder %s14, 1
    %p31 = por %p29, %p30
    %p32 = scmp.ne.s32.totalorder %s24, %s27
    %p33 = scmp.eq.s32.totalorder %s14, 0
    %p34 = por %p32, %p33
    %p35 = scmp.ne.s32.totalorder %s24, %s27
    %p36 = scmp.eq.s32.totalorder %s19, 1
    %p37 = por %p35, %p36
    %p38 = scmp.ne.s32.totalorder %s27, %s28
    %p39 = scmp.eq.s32.totalorder %s19, 0
    %p40 = por %p38, %p39
    %p41 = scmp.ne.s32.totalorder %s27, %s28
    %p42 = scmp.eq.s32.totalorder %s20, 1
    %p43 = por %p41, %p42
    %p45 = scmp.ne.s32.totalorder %s28, %s44
    %p46 = scmp.eq.s32.totalorder %s20, 0
    %p47 = por %p45, %p46
    %s49 = sadd.s32 %s48, 1
    %p52 = scmp.eq.s32.totalorder %s14, 1
    %p53 = scmp.ne.s32.totalorder %s48, %s50
    %p54 = scmp.eq.s32.totalorder %s14, 0
    %p55 = por %p53, %p54
    %p56 = scmp.ne.s32.totalorder %s48, %s50
    %p57 = scmp.eq.s32.totalorder %s19, 1
    %p58 = por %p56, %p57
    %p59 = scmp.ne.s32.totalorder %s50, %s51
    %p60 = scmp.eq.s32.totalorder %s19, 0
    %p61 = por %p59, %p60
    %p62 = scmp.ne.s32.totalorder %s50, %s51
    %p63 = scmp.eq.s32.totalorder %s20, 1
    %p64 = por %p62, %p63
    %p66 = scmp.ne.s32.totalorder %s51, %s65
    %p67 = scmp.eq.s32.totalorder %s20, 0
    %p68 = por %p66, %p67
    %s70 = sadd.s32 %s69, 1
    %p73 = scmp.eq.s32.totalorder %s14, 1
    %p74 = scmp.ne.s32.totalorder %s69, %s71
    %p75 = scmp.eq.s32.totalorder %s14, 0
    %p76 = por %p74, %p75
    %p77 = scmp.ne.s32.totalorder %s69, %s71
    %p78 = scmp.eq.s32.totalorder %s19, 1
    %p79 = por %p77, %p78
    %p80 = scmp.ne.s32.totalorder %s71, %s72
    %p81 = scmp.eq.s32.totalorder %s19, 0
    %p82 = por %p80, %p81
    %p83 = scmp.ne.s32.totalorder %s71, %s72
    %p84 = scmp.eq.s32.totalorder %s20, 1
    %p85 = por %p83, %p84
    %p87 = scmp.ne.s32.totalorder %s72, %s86
    %p88 = scmp.eq.s32.totalorder %s20, 0
    %p89 = por %p87, %p88
    %s91 = sadd.s32 %s90, 1
    %p94 = scmp.eq.s32.totalorder %s14, 1
    %p95 = scmp.ne.s32.totalorder %s90, %s92
    %p96 = scmp.eq.s32.totalorder %s14, 0
    %p97 = por %p95, %p96
    %p98 = scmp.ne.s32.totalorder %s90, %s92
    %p99 = scmp.eq.s32.totalorder %s19, 1
    %p100 = por %p98, %p99
    %p101 = scmp.ne.s32.totalorder %s92, %s93
    %p102 = scmp.eq.s32.totalorder %s19, 0
    %p103 = por %p101, %p102
    %p104 = scmp.ne.s32.totalorder %s92, %s93
    %p105 = scmp.eq.s32.totalorder %s20, 1
    %p106 = por %p104, %p105
    %p108 = scmp.ne.s32.totalorder %s93, %s107
    %p109 = scmp.eq.s32.totalorder %s20, 0
    %p110 = por %p108, %p109
    %s112 = sadd.s32 %s111, 1
    %p115 = scmp.eq.s32.totalorder %s14, 1
    %p116 = scmp.ne.s32.totalorder %s111, %s113
    %p117 = scmp.eq.s32.totalorder %s14, 0
    %p118 = por %p116, %p117
    %p119 = scmp.ne.s32.totalorder %s111, %s113
    %p120 = scmp.eq.s32.totalorder %s19, 1
    %p121 = por %p119, %p120
    %p122 = scmp.ne.s32.totalorder %s113, %s114
    %p123 = scmp.eq.s32.totalorder %s19, 0
    %p124 = por %p122, %p123
    %p125 = scmp.ne.s32.totalorder %s113, %s114
    %p126 = scmp.eq.s32.totalorder %s20, 1
    %p127 = por %p125, %p126
    %p129 = scmp.ne.s32.totalorder %s114, %s128
    %p130 = scmp.eq.s32.totalorder %s20, 0
    %p131 = por %p129, %p130
    %s133 = sadd.s32 %s132, 1
    %p136 = scmp.eq.s32.totalorder %s14, 1
    %p137 = scmp.ne.s32.totalorder %s132, %s134
    %p138 = scmp.eq.s32.totalorder %s14, 0
    %p139 = por %p137, %p138
    %p140 = scmp.ne.s32.totalorder %s132, %s134
    %p141 = scmp.eq.s32.totalorder %s19, 1
    %p142 = por %p140, %p141
    %p143 = scmp.ne.s32.totalorder %s134, %s135
    %p144 = scmp.eq.s32.totalorder %s19, 0
    %p145 = por %p143, %p144
    %p146 = scmp.ne.s32.totalorder %s134, %s135
    %p147 = scmp.eq.s32.totalorder %s20, 1
    %p148 = por %p146, %p147
    %p150 = scmp.ne.s32.totalorder %s135, %s149
    %p151 = scmp.eq.s32.totalorder %s20, 0
    %p152 = por %p150, %p151
    %s153 = ssub.s32 %s14, %s21
    %p154 = scmp.eq.s32.totalorder %s153, 0
    %s156 = sadd.s32 %s155, 1
    %s157 = scalar_select %p154, %s155, %s156
    %p160 = pneg %p154
    %p161 = scmp.eq.s32.totalorder %s14, 1
    %p162 = por %p160, %p161
    %p163 = scmp.ne.s32.totalorder %s155, %s158
    %p164 = scmp.eq.s32.totalorder %s14, 0
    %p165 = por %p163, %p164
    %p166 = scmp.ne.s32.totalorder %s155, %s158
    %p167 = scmp.eq.s32.totalorder %s19, 1
    %p168 = por %p166, %p167
    %p169 = scmp.ne.s32.totalorder %s158, %s159
    %p170 = scmp.eq.s32.totalorder %s19, 0
    %p171 = por %p169, %p170
    %p172 = scmp.ne.s32.totalorder %s158, %s159
    %p173 = scmp.eq.s32.totalorder %s20, 1
    %p174 = por %p172, %p173
    %p176 = scmp.ne.s32.totalorder %s159, %s175
    %p177 = scmp.eq.s32.totalorder %s20, 0
    %p178 = por %p176, %p177
    %s180 = sadd.s32 %s179, 1
    %p183 = scmp.eq.s32.totalorder %s14, 1
    %p184 = scmp.ne.s32.totalorder %s179, %s181
    %p185 = scmp.eq.s32.totalorder %s14, 0
    %p186 = por %p184, %p185
    %p187 = scmp.ne.s32.totalorder %s179, %s181
    %p188 = scmp.eq.s32.totalorder %s19, 1
    %p189 = por %p187, %p188
    %p190 = scmp.ne.s32.totalorder %s181, %s182
    %p191 = scmp.eq.s32.totalorder %s19, 0
    %p192 = por %p190, %p191
    %p193 = scmp.ne.s32.totalorder %s181, %s182
    %p194 = scmp.eq.s32.totalorder %s20, 1
    %p195 = por %p193, %p194
    %p197 = scmp.ne.s32.totalorder %s182, %s196
    %p198 = scmp.eq.s32.totalorder %s20, 0
    %p199 = por %p197, %p198
    %p200 = scmp.le.s32.totalorder 1, %s14
    %p201 = scmp.lt.s32.totalorder %s14, 3
    %p202 = pnand %p200, %p201
    %p203 = pneg %p202
    // Predicated region
    $region9: #{down_forward.4} parent=5 // pred_check
      _
    $region10: #{down_forward.4} parent=5 // pred_check_branch
      %205 = sbr.rel (%p202) target = $region12
    $region11: #{down_forward.4} parent=5 // pred_region
      %s206 = ssub.s32 %s14, 1
      // Predicated region
      $region13: #{down_forward.4} parent=11 // pred_check
        %p207 = pneg %p61
      $region14: #{down_forward.4} parent=11 // pred_check_branch
        %209 = sbr.rel (%p207) target = $region16
      $region15: #{down_forward.4} parent=11 // pred_region
        _
      $region16: #{down_forward.4} parent=11 // pred_fallthru
        _
      // Predicated region
      $region17: #{down_forward.4} parent=11 // pred_check
        %p210 = pneg %p82
      $region18: #{down_forward.4} parent=11 // pred_check_branch
        %212 = sbr.rel (%p210) target = $region20
      $region19: #{down_forward.4} parent=11 // pred_region
        _
      $region20: #{down_forward.4} parent=11 // pred_fallthru
        _
      // Predicated region
      $region21: #{down_forward.4} parent=11 // pred_check
        %p213 = pneg %p103
      $region22: #{down_forward.4} parent=11 // pred_check_branch
        %215 = sbr.rel (%p213) target = $region24
      $region23: #{down_forward.4} parent=11 // pred_region
        _
      $region24: #{down_forward.4} parent=11 // pred_fallthru
        _
      // Predicated region
      $region25: #{down_forward.4} parent=11 // pred_check
        %p216 = pneg %p124
      $region26: #{down_forward.4} parent=11 // pred_check_branch
        %218 = sbr.rel (%p216) target = $region28
      $region27: #{down_forward.4} parent=11 // pred_region
        _
      $region28: #{down_forward.4} parent=11 // pred_fallthru
        _
      // Predicated region
      $region29: #{down_forward.4} parent=11 // pred_check
        %p219 = pneg %p145
      $region30: #{down_forward.4} parent=11 // pred_check_branch
        %221 = sbr.rel (%p219) target = $region32
      $region31: #{down_forward.4} parent=11 // pred_region
        _
      $region32: #{down_forward.4} parent=11 // pred_fallthru
        _
    $region12: #{down_forward.4} parent=5 // pred_fallthru
      _
    %p222 = scmp.lt.s32.totalorder %s14, 2
    // Predicated region
    $region33: #{down_forward.4} parent=5 // pred_check
      %p223 = pneg %p222
    $region34: #{down_forward.4} parent=5 // pred_check_branch
      %225 = sbr.rel (%p223) target = $region36
    $region35: #{down_forward.4} parent=5 // pred_region
      // Predicated region
      $region37: #{down_forward.4} parent=35 // pred_check
        %p226 = pneg %p34
      $region38: #{down_forward.4} parent=35 // pred_check_branch
        %228 = sbr.rel (%p226) target = $region40
      $region39: #{down_forward.4} parent=35 // pred_region
        %p229 = scmp.lt.s32.totalorder %s14, 1
        %s230 = scalar_select %p229, %s14, 1
        %s231 = smul.addr %s230, 40
        %s232 = scalar_lea.vmem %s0, %s231
      $region40: #{down_forward.4} parent=35 // pred_fallthru
        _
    $region36: #{down_forward.4} parent=5 // pred_fallthru
      _
    %p233 = scmp.le.s32.totalorder 1, %s14
    %p234 = scmp.lt.s32.totalorder %s14, 3
    %p235 = pnand %p233, %p234
    %p236 = pneg %p235
    // Predicated region
    $region41: #{down_forward.4} parent=5 // pred_check
      _
    $region42: #{down_forward.4} parent=5 // pred_check_branch
      %238 = sbr.rel (%p235) target = $region44
    $region43: #{down_forward.4} parent=5 // pred_region
      %s239 = ssub.s32 %s14, 1
      %p240 = scmp.lt.s32.totalorder %s19, 1
      %s241 = scalar_select %p240, %s19, 1
      %s242 = smul.addr %s241, 40
      %s243 = scalar_lea.vmem %s0, %s242
      %p244 = pneg %p40
      %p245 = pneg %p37
      %p246 = pneg %p61
      %p247 = pneg %p58
      %p248 = pneg %p82
      %p249 = pneg %p79
      %p250 = pneg %p103
      %p251 = pneg %p100
      %p252 = pneg %p124
      %p253 = pneg %p121
      %p254 = pneg %p145
      %p255 = pneg %p142
      %p256 = pneg %p171
      %p257 = pneg %p168
      %p258 = scmp.lt.s32.totalorder %s19, 1
      %s259 = scalar_select %p258, %s19, 1
      %s260 = smul.addr %s259, 5
      %s261 = smul.addr %s260, 8
      %s262 = scalar_lea.vmem %s6, %s261
      %p263 = pneg %p192
      %p264 = pneg %p189
      %p265 = scmp.lt.s32.totalorder %s19, 1
      %s266 = scalar_select %p265, %s19, 1
      %s267 = smul.addr %s266, 40
      %s268 = scalar_lea.vmem %s0, %s267
      %p269 = scmp.lt.s32.totalorder %s19, 1
      %s270 = scalar_select %p269, %s19, 1
      %s271 = smul.addr %s270, 5
      %s272 = smul.addr %s271, 8
      %s273 = scalar_lea.vmem %s6, %s272
      %p275 = scmp.eq.s32.totalorder %s19, 0
      // Predicated region
      $region45: #{down_forward.4} parent=43 // pred_check
        %p276 = pneg %p275
      $region46: #{down_forward.4} parent=43 // pred_check_branch
        %278 = sbr.rel (%p276) target = $region48
      $region47: #{down_forward.4} parent=43 // pred_region
        %vm279 = vcmask 15360
        %280 = vst.msk [vmem:[%s7] sm:$0xff] %vm279, 0.0
      $region48: #{down_forward.4} parent=43 // pred_fallthru
        _
      %v281 = vld [vmem:[%s268] sm:$0x1f]
      %v282 = vld [vmem:[%s268 + $0x5] sm:$0x1f]
      %v283 = vld [vmem:[%s268 + $0xa] sm:$0x1f]
      %v284 = vld [vmem:[%s268 + $0xf] sm:$0x1f]
      %v285 = vld [vmem:[%s268 + $0x14] sm:$0x1f]
      %v286 = vld [vmem:[%s268 + $0x19] sm:$0x1f]
      %v287 = vld [vmem:[%s268 + $0x1e] sm:$0x1f]
      %v288 = vld [vmem:[%s268 + $0x23] sm:$0x1f]
      %v289 = vld [vmem:[%s3] sm:$0xff]
      %291 = vset.pattern.permute.xlu0 0
      %292 = vperm.xlu0 %291, %v289
      %v293 = vpop.permute.xlu0 %292
      %v294 = vlaneseq
      %v295 = vshrl.u32 %v294, 7
      %v296 = vsub.s32 0, %v295
      %v297 = vrot.slane %v293, %v296
      %v298 = vlaneseq
      %v299 = vshrl.u32 %v298, 7
      %v300 = vsub.s32 1, %v299
      %v301 = vrot.slane %v293, %v300
      %v302 = vlaneseq
      %v303 = vshrl.u32 %v302, 7
      %v304 = vsub.s32 2, %v303
      %v305 = vrot.slane %v293, %v304
      %v306 = vlaneseq
      %v307 = vshrl.u32 %v306, 7
      %v308 = vsub.s32 3, %v307
      %v309 = vrot.slane %v293, %v308
      %v310 = vlaneseq
      %v311 = vshrl.u32 %v310, 7
      %v312 = vsub.s32 4, %v311
      %v313 = vrot.slane %v293, %v312
      %v314 = vlaneseq
      %v315 = vshrl.u32 %v314, 7
      %v316 = vsub.s32 5, %v315
      %v317 = vrot.slane %v293, %v316
      %v318 = vlaneseq
      %v319 = vshrl.u32 %v318, 7
      %v320 = vsub.s32 6, %v319
      %v321 = vrot.slane %v293, %v320
      %v322 = vlaneseq
      %v323 = vshrl.u32 %v322, 7
      %v324 = vsub.s32 7, %v323
      %v325 = vrot.slane %v293, %v324
      %v334 = vmul.f32 %v281, %v297
      %v335 = vmul.f32 %v282, %v301
      %v336 = vmul.f32 %v283, %v305
      %v337 = vmul.f32 %v284, %v309
      %v338 = vmul.f32 %v285, %v313
      %v339 = vmul.f32 %v286, %v317
      %v340 = vmul.f32 %v287, %v321
      %v341 = vmul.f32 %v288, %v325
      %v342 = vld [vmem:[%s4] sm:$0xff]
      %344 = vset.pattern.permute.xlu0 0
      %345 = vperm.xlu0 %344, %v342
      %v346 = vpop.permute.xlu0 %345
      %v347 = vlaneseq
      %v348 = vshrl.u32 %v347, 7
      %v349 = vsub.s32 0, %v348
      %v350 = vrot.slane %v346, %v349
      %v351 = vlaneseq
      %v352 = vshrl.u32 %v351, 7
      %v353 = vsub.s32 1, %v352
      %v354 = vrot.slane %v346, %v353
      %v355 = vlaneseq
      %v356 = vshrl.u32 %v355, 7
      %v357 = vsub.s32 2, %v356
      %v358 = vrot.slane %v346, %v357
      %v359 = vlaneseq
      %v360 = vshrl.u32 %v359, 7
      %v361 = vsub.s32 3, %v360
      %v362 = vrot.slane %v346, %v361
      %v363 = vlaneseq
      %v364 = vshrl.u32 %v363, 7
      %v365 = vsub.s32 4, %v364
      %v366 = vrot.slane %v346, %v365
      %v367 = vlaneseq
      %v368 = vshrl.u32 %v367, 7
      %v369 = vsub.s32 5, %v368
      %v370 = vrot.slane %v346, %v369
      %v371 = vlaneseq
      %v372 = vshrl.u32 %v371, 7
      %v373 = vsub.s32 6, %v372
      %v374 = vrot.slane %v346, %v373
      %v375 = vlaneseq
      %v376 = vshrl.u32 %v375, 7
      %v377 = vsub.s32 7, %v376
      %v378 = vrot.slane %v346, %v377
      %v387 = vadd.f32 %v334, %v350
      %v388 = vadd.f32 %v335, %v354
      %v389 = vadd.f32 %v336, %v358
      %v390 = vadd.f32 %v337, %v362
      %v391 = vadd.f32 %v338, %v366
      %v392 = vadd.f32 %v339, %v370
      %v393 = vadd.f32 %v340, %v374
      %v394 = vadd.f32 %v341, %v378
      %v395 = vmax.f32 %v387, 0.0
      %v396 = vmax.f32 %v388, 0.0
      %v397 = vmax.f32 %v389, 0.0
      %v398 = vmax.f32 %v390, 0.0
      %v399 = vmax.f32 %v391, 0.0
      %v400 = vmax.f32 %v392, 0.0
      %v401 = vmax.f32 %v393, 0.0
      %v402 = vmax.f32 %v394, 0.0
      %v403 = vld [vmem:[%s5] sm:$0x1f]
      %vm404 = vcmp.gt.f32.partialorder %v403, 0.0
      %v405 = vsel %vm404, 1, 0
      %v406 = vlaneseq
      %v407 = vshrl.u32 %v406, 7
      %v408 = vsub.s32 0, %v407
      %v409 = vrot.slane %v405, %v408
      %v410 = vlaneseq
      %v411 = vshrl.u32 %v410, 7
      %v412 = vsub.s32 1, %v411
      %v413 = vrot.slane %v405, %v412
      %v414 = vlaneseq
      %v415 = vshrl.u32 %v414, 7
      %v416 = vsub.s32 2, %v415
      %v417 = vrot.slane %v405, %v416
      %v418 = vlaneseq
      %v419 = vshrl.u32 %v418, 7
      %v420 = vsub.s32 3, %v419
      %v421 = vrot.slane %v405, %v420
      %v422 = vlaneseq
      %v423 = vshrl.u32 %v422, 7
      %v424 = vsub.s32 4, %v423
      %v425 = vrot.slane %v405, %v424
      %vm426 = vcmp.eq.s32.totalorder %v409, 1
      %vm427 = vcmp.eq.s32.totalorder %v413, 1
      %vm428 = vcmp.eq.s32.totalorder %v417, 1
      %vm429 = vcmp.eq.s32.totalorder %v421, 1
      %vm430 = vcmp.eq.s32.totalorder %v425, 1
      %v439 = vcombine.low %v395, %v396
      %v440 = vcombine.high %v395, %v396
      %v441 = vcombine.low %v397, %v398
      %v442 = vcombine.high %v397, %v398
      %v443 = vcombine.low %v399, %v400
      %v444 = vcombine.high %v399, %v400
      %v445 = vcombine.low %v401, %v402
      %v446 = vcombine.high %v401, %v402
      %v448 = vunpack.c.l.s4 1966171168
      %v449 = vunpack.c.0.s8 %v448
      %v450 = vlaneseq
      %v451 = vshrl.u32 %v450, 7
      %v452 = vsub.s32 %v449, %v451
      %v453 = vrot.slane %v439, %v452
      %v455 = vunpack.c.l.s4 1966171168
      %v456 = vunpack.c.0.s8 %v455
      %v457 = vlaneseq
      %v458 = vshrl.u32 %v457, 7
      %v459 = vsub.s32 %v456, %v458
      %v460 = vrot.slane %v440, %v459
      %v462 = vunpack.c.l.s4 1966171168
      %v463 = vunpack.c.0.s8 %v462
      %v464 = vlaneseq
      %v465 = vshrl.u32 %v464, 7
      %v466 = vsub.s32 %v463, %v465
      %v467 = vrot.slane %v441, %v466
      %v469 = vunpack.c.l.s4 1966171168
      %v470 = vunpack.c.0.s8 %v469
      %v471 = vlaneseq
      %v472 = vshrl.u32 %v471, 7
      %v473 = vsub.s32 %v470, %v472
      %v474 = vrot.slane %v442, %v473
      %v476 = vunpack.c.l.s4 1966171168
      %v477 = vunpack.c.0.s8 %v476
      %v478 = vlaneseq
      %v479 = vshrl.u32 %v478, 7
      %v480 = vsub.s32 %v477, %v479
      %v481 = vrot.slane %v443, %v480
      %v483 = vunpack.c.l.s4 1966171168
      %v484 = vunpack.c.0.s8 %v483
      %v485 = vlaneseq
      %v486 = vshrl.u32 %v485, 7
      %v487 = vsub.s32 %v484, %v486
      %v488 = vrot.slane %v444, %v487
      %v490 = vunpack.c.l.s4 1966171168
      %v491 = vunpack.c.0.s8 %v490
      %v492 = vlaneseq
      %v493 = vshrl.u32 %v492, 7
      %v494 = vsub.s32 %v491, %v493
      %v495 = vrot.slane %v445, %v494
      %v497 = vunpack.c.l.s4 1966171168
      %v498 = vunpack.c.0.s8 %v497
      %v499 = vlaneseq
      %v500 = vshrl.u32 %v499, 7
      %v501 = vsub.s32 %v498, %v500
      %v502 = vrot.slane %v446, %v501
      %v503 = vcombine.low %v453, %v467
      %v504 = vcombine.high %v453, %v467
      %v505 = vcombine.low %v460, %v474
      %v506 = vcombine.low %v481, %v495
      %v507 = vcombine.high %v481, %v495
      %v508 = vcombine.low %v488, %v502
      %v510 = vunpack.c.l.s4 1966171168
      %v511 = vunpack.c.0.s8 %v510
      %v512 = vlaneseq
      %v513 = vshrl.u32 %v512, 7
      %v514 = vsub.s32 %v511, %v513
      %v515 = vrot.slane %v503, %v514
      %v517 = vunpack.c.l.s4 1966171168
      %v518 = vunpack.c.0.s8 %v517
      %v519 = vlaneseq
      %v520 = vshrl.u32 %v519, 7
      %v521 = vsub.s32 %v518, %v520
      %v522 = vrot.slane %v505, %v521
      %v524 = vunpack.c.l.s4 1966171168
      %v525 = vunpack.c.0.s8 %v524
      %v526 = vlaneseq
      %v527 = vshrl.u32 %v526, 7
      %v528 = vsub.s32 %v525, %v527
      %v529 = vrot.slane %v504, %v528
      %v531 = vunpack.c.l.s4 1966171168
      %v532 = vunpack.c.0.s8 %v531
      %v533 = vlaneseq
      %v534 = vshrl.u32 %v533, 7
      %v535 = vsub.s32 %v532, %v534
      %v536 = vrot.slane %v506, %v535
      %v538 = vunpack.c.l.s4 1966171168
      %v539 = vunpack.c.0.s8 %v538
      %v540 = vlaneseq
      %v541 = vshrl.u32 %v540, 7
      %v542 = vsub.s32 %v539, %v541
      %v543 = vrot.slane %v508, %v542
      %v545 = vunpack.c.l.s4 1966171168
      %v546 = vunpack.c.0.s8 %v545
      %v547 = vlaneseq
      %v548 = vshrl.u32 %v547, 7
      %v549 = vsub.s32 %v546, %v548
      %v550 = vrot.slane %v507, %v549
      %v551 = vcombine.low %v515, %v536
      %v552 = vcombine.high %v515, %v536
      %v553 = vcombine.low %v522, %v543
      %v554 = vcombine.low %v529, %v550
      %v555 = vcombine.high %v529, %v550
      %v561 = vsel %vm426, %v551, 0.0
      %v562 = vsel %vm427, %v554, 0.0
      %v563 = vsel %vm428, %v552, 0.0
      %v564 = vsel %vm429, %v555, 0.0
      %v565 = vsel %vm430, %v553, 0.0
      %566 = vst [vmem:[#allocation2] sm:$0xff] 0
      %567 = vst [vmem:[#allocation2 + $0x8] sm:$0xff] 0
      %568 = vst [vmem:[#allocation2 + $0x10] sm:$0xff] 0
      %569 = vst [vmem:[#allocation2 + $0x18] sm:$0xf] 0
      %v570 = vpack.c.bf16 %v561, %v561
      %v571 = vpack.c.bf16 %v562, %v562
      %v572 = vpack.c.bf16 %v563, %v563
      %v573 = vpack.c.bf16 %v564, %v564
      %v574 = vpack.c.bf16 %v565, %v565
      %v580 = vunpack.c.l.b16 %v570
      %v581 = vunpack.c.l.b16 %v571
      %v582 = vunpack.c.l.b16 %v572
      %v583 = vunpack.c.l.b16 %v573
      %v584 = vunpack.c.l.b16 %v574
      %v585 = vpack.c.b16 %v581, %v580
      %v586 = vpack.c.b16 %v583, %v582
      %v587 = vpack.c.b16 %v584, %v584
      %591 = vst [vmem:[#allocation2 + $0x4] sm:$0xff] %v585
      %592 = vst [vmem:[#allocation2 + $0xc] sm:$0xff] %v586
      %593 = vst [vmem:[#allocation2 + $0x14] sm:$0xf] %v587
      %v594 = vld [vmem:[#allocation2] sm:$0xff]
      %v595 = vld [vmem:[#allocation2 + $0x8] sm:$0xff]
      %v596 = vld [vmem:[#allocation2 + $0x10] sm:$0xff]
      %600 = vrot.lane.b32.xlu0 %v594, 111
      %v601 = vpop.permute.xlu0 %600
      %602 = vrot.lane.b32.xlu0 %v595, 111
      %v603 = vpop.permute.xlu0 %602
      %604 = vrot.lane.b32.xlu0 %v596, 111
      %v605 = vpop.permute.xlu0 %604
      %v606 = vrot.slane %v601, 4
      %v607 = vrot.slane %v603, 4
      %v608 = vrot.slane %v605, 4
      %vm609 = vcmask 1043456
      %v610 = vsel %vm609, %v606, %v607
      %vm611 = vcmask 908288
      %v612 = vsel %vm611, %v601, %v610
      %v613 = vsel %vm609, %v607, %v608
      %v614 = vsel %vm611, %v603, %v613
      %v615 = vsel %vm611, %v605, %v608
      %619 = vst [vmem:[#allocation3] sm:$0xff] %v612
      %620 = vst [vmem:[#allocation3 + $0x8] sm:$0xff] %v614
      %621 = vst [vmem:[#allocation3 + $0x10] sm:$0xf] %v615
      %v622 = vld [vmem:[#allocation2] sm:$0xff]
      %v623 = vld [vmem:[#allocation2 + $0x8] sm:$0xff]
      %v624 = vld [vmem:[#allocation2 + $0x10] sm:$0xff]
      %628 = vrot.lane.b32.xlu0 %v622, 110
      %v629 = vpop.permute.xlu0 %628
      %630 = vrot.lane.b32.xlu0 %v623, 110
      %v631 = vpop.permute.xlu0 %630
      %632 = vrot.lane.b32.xlu0 %v624, 110
      %v633 = vpop.permute.xlu0 %632
      %v634 = vrot.slane %v629, 4
      %v635 = vrot.slane %v631, 4
      %v636 = vrot.slane %v633, 4
      %v637 = vsel %vm609, %v634, %v635
      %vm638 = vcmask 900096
      %v639 = vsel %vm638, %v629, %v637
      %v640 = vsel %vm609, %v635, %v636
      %v641 = vsel %vm638, %v631, %v640
      %v642 = vsel %vm638, %v633, %v636
      %646 = vst [vmem:[#allocation3 + $0x14] sm:$0xff] %v639
      %647 = vst [vmem:[#allocation3 + $0x1c] sm:$0xff] %v641
      %648 = vst [vmem:[#allocation3 + $0x24] sm:$0xf] %v642
      %v649 = vld [vmem:[#allocation2] sm:$0xff]
      %v650 = vld [vmem:[#allocation2 + $0x8] sm:$0xff]
      %v651 = vld [vmem:[#allocation2 + $0x10] sm:$0xff]
      %655 = vrot.lane.b32.xlu0 %v649, 109
      %v656 = vpop.permute.xlu0 %655
      %657 = vrot.lane.b32.xlu0 %v650, 109
      %v658 = vpop.permute.xlu0 %657
      %659 = vrot.lane.b32.xlu0 %v651, 109
      %v660 = vpop.permute.xlu0 %659
      %v661 = vrot.slane %v656, 4
      %v662 = vrot.slane %v658, 4
      %v663 = vrot.slane %v660, 4
      %v664 = vsel %vm609, %v661, %v662
      %vm665 = vcmask 891904
      %v666 = vsel %vm665, %v656, %v664
      %v667 = vsel %vm609, %v662, %v663
      %v668 = vsel %vm665, %v658, %v667
      %v669 = vsel %vm665, %v660, %v663
      %673 = vst [vmem:[#allocation3 + $0x28] sm:$0xff] %v666
      %674 = vst [vmem:[#allocation3 + $0x30] sm:$0xff] %v668
      %675 = vst [vmem:[#allocation3 + $0x38] sm:$0xf] %v669
      %v676 = vld [vmem:[#allocation2] sm:$0xff]
      %v677 = vld [vmem:[#allocation2 + $0x8] sm:$0xff]
      %v678 = vld [vmem:[#allocation2 + $0x10] sm:$0xff]
      %682 = vrot.lane.b32.xlu0 %v676, 101
      %v683 = vpop.permute.xlu0 %682
      %684 = vrot.lane.b32.xlu0 %v677, 101
      %v685 = vpop.permute.xlu0 %684
      %686 = vrot.lane.b32.xlu0 %v678, 101
      %v687 = vpop.permute.xlu0 %686
      %v688 = vrot.slane %v683, 4
      %v689 = vrot.slane %v685, 4
      %v690 = vrot.slane %v687, 4
      %v691 = vsel %vm609, %v688, %v689
      %vm692 = vcmask 826368
      %v693 = vsel %vm692, %v683, %v691
      %v694 = vsel %vm609, %v689, %v690
      %v695 = vsel %vm692, %v685, %v694
      %v696 = vsel %vm692, %v687, %v690
      %700 = vst [vmem:[#allocation3 + $0x3c] sm:$0xff] %v693
      %701 = vst [vmem:[#allocation3 + $0x44] sm:$0xff] %v695
      %702 = vst [vmem:[#allocation3 + $0x4c] sm:$0xf] %v696
      %v703 = vld [vmem:[#allocation2] sm:$0xff]
      %v704 = vld [vmem:[#allocation2 + $0x8] sm:$0xff]
      %v705 = vld [vmem:[#allocation2 + $0x10] sm:$0xff]
      %709 = vrot.lane.b32.xlu0 %v703, 100
      %v710 = vpop.permute.xlu0 %709
      %711 = vrot.lane.b32.xlu0 %v704, 100
      %v712 = vpop.permute.xlu0 %711
      %713 = vrot.lane.b32.xlu0 %v705, 100
      %v714 = vpop.permute.xlu0 %713
      %v715 = vrot.slane %v710, 4
      %v716 = vrot.slane %v712, 4
      %v717 = vrot.slane %v714, 4
      %v718 = vsel %vm609, %v715, %v716
      %vm719 = vcmask 818176
      %v720 = vsel %vm719, %v710, %v718
      %v721 = vsel %vm609, %v716, %v717
      %v722 = vsel %vm719, %v712, %v721
      %v723 = vsel %vm719, %v714, %v717
      %727 = vst [vmem:[#allocation3 + $0x50] sm:$0xff] %v720
      %728 = vst [vmem:[#allocation3 + $0x58] sm:$0xff] %v722
      %729 = vst [vmem:[#allocation3 + $0x60] sm:$0xf] %v723
      %v730 = vld [vmem:[#allocation2] sm:$0xff]
      %v731 = vld [vmem:[#allocation2 + $0x8] sm:$0xff]
      %v732 = vld [vmem:[#allocation2 + $0x10] sm:$0xff]
      %736 = vrot.lane.b32.xlu0 %v730, 99
      %v737 = vpop.permute.xlu0 %736
      %738 = vrot.lane.b32.xlu0 %v731, 99
      %v739 = vpop.permute.xlu0 %738
      %740 = vrot.lane.b32.xlu0 %v732, 99
      %v741 = vpop.permute.xlu0 %740
      %v742 = vrot.slane %v737, 4
      %v743 = vrot.slane %v739, 4
      %v744 = vrot.slane %v741, 4
      %v745 = vsel %vm609, %v742, %v743
      %vm746 = vcmask 809984
      %v747 = vsel %vm746, %v737, %v745
      %v748 = vsel %vm609, %v743, %v744
      %v749 = vsel %vm746, %v739, %v748
      %v750 = vsel %vm746, %v741, %v744
      %754 = vst [vmem:[#allocation3 + $0x64] sm:$0xff] %v747
      %755 = vst [vmem:[#allocation3 + $0x6c] sm:$0xff] %v749
      %756 = vst [vmem:[#allocation3 + $0x74] sm:$0xf] %v750
      %v757 = vld [vmem:[#allocation2] sm:$0xff]
      %v758 = vld [vmem:[#allocation2 + $0x8] sm:$0xff]
      %v759 = vld [vmem:[#allocation2 + $0x10] sm:$0xff]
      %763 = vrot.lane.b32.xlu0 %v757, 91
      %v764 = vpop.permute.xlu0 %763
      %765 = vrot.lane.b32.xlu0 %v758, 91
      %v766 = vpop.permute.xlu0 %765
      %767 = vrot.lane.b32.xlu0 %v759, 91
      %v768 = vpop.permute.xlu0 %767
      %v769 = vrot.slane %v764, 4
      %v770 = vrot.slane %v766, 4
      %v771 = vrot.slane %v768, 4
      %v772 = vsel %vm609, %v769, %v770
      %vm773 = vcmask 744448
      %v774 = vsel %vm773, %v764, %v772
      %v775 = vsel %vm609, %v770, %v771
      %v776 = vsel %vm773, %v766, %v775
      %v777 = vsel %vm773, %v768, %v771
      %781 = vst [vmem:[#allocation3 + $0x78] sm:$0xff] %v774
      %782 = vst [vmem:[#allocation3 + $0x80] sm:$0xff] %v776
      %783 = vst [vmem:[#allocation3 + $0x88] sm:$0xf] %v777
      %v784 = vld [vmem:[#allocation2] sm:$0xff]
      %v785 = vld [vmem:[#allocation2 + $0x8] sm:$0xff]
      %v786 = vld [vmem:[#allocation2 + $0x10] sm:$0xff]
      %790 = vrot.lane.b32.xlu0 %v784, 90
      %v791 = vpop.permute.xlu0 %790
      %792 = vrot.lane.b32.xlu0 %v785, 90
      %v793 = vpop.permute.xlu0 %792
      %794 = vrot.lane.b32.xlu0 %v786, 90
      %v795 = vpop.permute.xlu0 %794
      %v796 = vrot.slane %v791, 4
      %v797 = vrot.slane %v793, 4
      %v798 = vrot.slane %v795, 4
      %v799 = vsel %vm609, %v796, %v797
      %vm800 = vcmask 736256
      %v801 = vsel %vm800, %v791, %v799
      %v802 = vsel %vm609, %v797, %v798
      %v803 = vsel %vm800, %v793, %v802
      %v804 = vsel %vm800, %v795, %v798
      %808 = vst [vmem:[#allocation3 + $0x8c] sm:$0xff] %v801
      %809 = vst [vmem:[#allocation3 + $0x94] sm:$0xff] %v803
      %810 = vst [vmem:[#allocation3 + $0x9c] sm:$0xf] %v804
      %v811 = vld [vmem:[#allocation2] sm:$0xff]
      %v812 = vld [vmem:[#allocation2 + $0x8] sm:$0xff]
      %v813 = vld [vmem:[#allocation2 + $0x10] sm:$0xff]
      %817 = vrot.lane.b32.xlu0 %v811, 89
      %v818 = vpop.permute.xlu0 %817
      %819 = vrot.lane.b32.xlu0 %v812, 89
      %v820 = vpop.permute.xlu0 %819
      %821 = vrot.lane.b32.xlu0 %v813, 89
      %v822 = vpop.permute.xlu0 %821
      %v823 = vrot.slane %v818, 4
      %v824 = vrot.slane %v820, 4
      %v825 = vrot.slane %v822, 4
      %v826 = vsel %vm609, %v823, %v824
      %vm827 = vcmask 728064
      %v828 = vsel %vm827, %v818, %v826
      %v829 = vsel %vm609, %v824, %v825
      %v830 = vsel %vm827, %v820, %v829
      %v831 = vsel %vm827, %v822, %v825
      %835 = vst [vmem:[#allocation3 + $0xa0] sm:$0xff] %v828
      %836 = vst [vmem:[#allocation3 + $0xa8] sm:$0xff] %v830
      %837 = vst [vmem:[#allocation3 + $0xb0] sm:$0xf] %v831
      %v838 = vld [vmem:[#allocation2] sm:$0xff]
      %v839 = vld [vmem:[#allocation2 + $0x8] sm:$0xff]
      %v840 = vld [vmem:[#allocation2 + $0x10] sm:$0xff]
      %844 = vrot.lane.b32.xlu0 %v838, 11
      %v845 = vpop.permute.xlu0 %844
      %846 = vrot.lane.b32.xlu0 %v839, 11
      %v847 = vpop.permute.xlu0 %846
      %848 = vrot.lane.b32.xlu0 %v840, 11
      %v849 = vpop.permute.xlu0 %848
      %v850 = vrot.slane %v845, 4
      %v851 = vrot.slane %v847, 4
      %v852 = vrot.slane %v849, 4
      %v853 = vsel %vm609, %v850, %v851
      %vm854 = vcmask 89088
      %v855 = vsel %vm854, %v845, %v853
      %v856 = vsel %vm609, %v851, %v852
      %v857 = vsel %vm854, %v847, %v856
      %v858 = vsel %vm854, %v849, %v852
      %862 = vst [vmem:[#allocation3 + $0xb4] sm:$0xff] %v855
      %863 = vst [vmem:[#allocation3 + $0xbc] sm:$0xff] %v857
      %864 = vst [vmem:[#allocation3 + $0xc4] sm:$0xf] %v858
      %v865 = vld [vmem:[#allocation2] sm:$0xff]
      %v866 = vld [vmem:[#allocation2 + $0x8] sm:$0xff]
      %v867 = vld [vmem:[#allocation2 + $0x10] sm:$0xff]
      %871 = vrot.lane.b32.xlu0 %v865, 10
      %v872 = vpop.permute.xlu0 %871
      %873 = vrot.lane.b32.xlu0 %v866, 10
      %v874 = vpop.permute.xlu0 %873
      %875 = vrot.lane.b32.xlu0 %v867, 10
      %v876 = vpop.permute.xlu0 %875
      %v877 = vrot.slane %v872, 4
      %v878 = vrot.slane %v874, 4
      %v879 = vrot.slane %v876, 4
      %v880 = vsel %vm609, %v877, %v878
      %vm881 = vcmask 80896
      %v882 = vsel %vm881, %v872, %v880
      %v883 = vsel %vm609, %v878, %v879
      %v884 = vsel %vm881, %v874, %v883
      %v885 = vsel %vm881, %v876, %v879
      %889 = vst [vmem:[#allocation3 + $0xc8] sm:$0xff] %v882
      %890 = vst [vmem:[#allocation3 + $0xd0] sm:$0xff] %v884
      %891 = vst [vmem:[#allocation3 + $0xd8] sm:$0xf] %v885
      %v892 = vld [vmem:[#allocation2] sm:$0xff]
      %v893 = vld [vmem:[#allocation2 + $0x8] sm:$0xff]
      %v894 = vld [vmem:[#allocation2 + $0x10] sm:$0xff]
      %898 = vrot.lane.b32.xlu0 %v892, 9
      %v899 = vpop.permute.xlu0 %898
      %900 = vrot.lane.b32.xlu0 %v893, 9
      %v901 = vpop.permute.xlu0 %900
      %902 = vrot.lane.b32.xlu0 %v894, 9
      %v903 = vpop.permute.xlu0 %902
      %v904 = vrot.slane %v899, 4
      %v905 = vrot.slane %v901, 4
      %v906 = vrot.slane %v903, 4
      %v907 = vsel %vm609, %v904, %v905
      %vm908 = vcmask 72704
      %v909 = vsel %vm908, %v899, %v907
      %v910 = vsel %vm609, %v905, %v906
      %v911 = vsel %vm908, %v901, %v910
      %v912 = vsel %vm908, %v903, %v906
      %916 = vst [vmem:[#allocation3 + $0xdc] sm:$0xff] %v909
      %917 = vst [vmem:[#allocation3 + $0xe4] sm:$0xff] %v911
      %918 = vst [vmem:[#allocation3 + $0xec] sm:$0xf] %v912
      %v919 = vld [vmem:[#allocation2] sm:$0xff]
      %v920 = vld [vmem:[#allocation2 + $0x8] sm:$0xff]
      %v921 = vld [vmem:[#allocation2 + $0x10] sm:$0xff]
      %925 = vrot.lane.b32.xlu0 %v919, 1
      %v926 = vpop.permute.xlu0 %925
      %927 = vrot.lane.b32.xlu0 %v920, 1
      %v928 = vpop.permute.xlu0 %927
      %929 = vrot.lane.b32.xlu0 %v921, 1
      %v930 = vpop.permute.xlu0 %929
      %v931 = vrot.slane %v926, 4
      %v932 = vrot.slane %v928, 4
      %v933 = vrot.slane %v930, 4
      %v934 = vsel %vm609, %v931, %v932
      %vm935 = vcmask 7168
      %v936 = vsel %vm935, %v926, %v934
      %v937 = vsel %vm609, %v932, %v933
      %v938 = vsel %vm935, %v928, %v937
      %v939 = vsel %vm935, %v930, %v933
      %943 = vst [vmem:[#allocation3 + $0xf0] sm:$0xff] %v936
      %944 = vst [vmem:[#allocation3 + $0xf8] sm:$0xff] %v938
      %945 = vst [vmem:[#allocation3 + $0x100] sm:$0xf] %v939
      %v946 = vld [vmem:[#allocation2 + $0x4] sm:$0xff]
      %v947 = vld [vmem:[#allocation2 + $0xc] sm:$0xff]
      %v948 = vld [vmem:[#allocation2 + $0x14] sm:$0xf]
      %949 = vst [vmem:[#allocation3 + $0x104] sm:$0xff] %v946
      %950 = vst [vmem:[#allocation3 + $0x10c] sm:$0xff] %v947
      %951 = vst [vmem:[#allocation3 + $0x114] sm:$0xf] %v948
      %v952 = vld [vmem:[#allocation2 + $0x4] sm:$0xff]
      %v953 = vld [vmem:[#allocation2 + $0xc] sm:$0xff]
      %v954 = vld [vmem:[#allocation2 + $0x14] sm:$0xff]
      %958 = vrot.lane.b32.xlu0 %v952, 127
      %v959 = vpop.permute.xlu0 %958
      %960 = vrot.lane.b32.xlu0 %v953, 127
      %v961 = vpop.permute.xlu0 %960
      %962 = vrot.lane.b32.xlu0 %v954, 127
      %v963 = vpop.permute.xlu0 %962
      %v964 = vrot.slane %v959, 4
      %v965 = vrot.slane %v961, 4
      %v966 = vrot.slane %v963, 4
      %v967 = vsel %vm609, %v964, %v965
      %vm968 = vcmask 1039360
      %v969 = vsel %vm968, %v959, %v967
      %v970 = vsel %vm609, %v965, %v966
      %v971 = vsel %vm968, %v961, %v970
      %v972 = vsel %vm968, %v963, %v966
      %976 = vst [vmem:[#allocation3 + $0x118] sm:$0xff] %v969
      %977 = vst [vmem:[#allocation3 + $0x120] sm:$0xff] %v971
      %978 = vst [vmem:[#allocation3 + $0x128] sm:$0xf] %v972
      %v979 = vld [vmem:[#allocation2 + $0x4] sm:$0xff]
      %v980 = vld [vmem:[#allocation2 + $0xc] sm:$0xff]
      %v981 = vld [vmem:[#allocation2 + $0x14] sm:$0xff]
      %985 = vrot.lane.b32.xlu0 %v979, 119
      %v986 = vpop.permute.xlu0 %985
      %987 = vrot.lane.b32.xlu0 %v980, 119
      %v988 = vpop.permute.xlu0 %987
      %989 = vrot.lane.b32.xlu0 %v981, 119
      %v990 = vpop.permute.xlu0 %989
      %v991 = vrot.slane %v986, 4
      %v992 = vrot.slane %v988, 4
      %v993 = vrot.slane %v990, 4
      %v994 = vsel %vm609, %v991, %v992
      %vm995 = vcmask 973824
      %v996 = vsel %vm995, %v986, %v994
      %v997 = vsel %vm609, %v992, %v993
      %v998 = vsel %vm995, %v988, %v997
      %v999 = vsel %vm995, %v990, %v993
      %1003 = vst [vmem:[#allocation3 + $0x12c] sm:$0xff] %v996
      %1004 = vst [vmem:[#allocation3 + $0x134] sm:$0xff] %v998
      %1005 = vst [vmem:[#allocation3 + $0x13c] sm:$0xf] %v999
      %v1006 = vld [vmem:[#allocation2 + $0x4] sm:$0xff]
      %v1007 = vld [vmem:[#allocation2 + $0xc] sm:$0xff]
      %v1008 = vld [vmem:[#allocation2 + $0x14] sm:$0xff]
      %1012 = vrot.lane.b32.xlu0 %v1006, 118
      %v1013 = vpop.permute.xlu0 %1012
      %1014 = vrot.lane.b32.xlu0 %v1007, 118
      %v1015 = vpop.permute.xlu0 %1014
      %1016 = vrot.lane.b32.xlu0 %v1008, 118
      %v1017 = vpop.permute.xlu0 %1016
      %v1018 = vrot.slane %v1013, 4
      %v1019 = vrot.slane %v1015, 4
      %v1020 = vrot.slane %v1017, 4
      %v1021 = vsel %vm609, %v1018, %v1019
      %vm1022 = vcmask 965632
      %v1023 = vsel %vm1022, %v1013, %v1021
      %v1024 = vsel %vm609, %v1019, %v1020
      %v1025 = vsel %vm1022, %v1015, %v1024
      %v1026 = vsel %vm1022, %v1017, %v1020
      %1030 = vst [vmem:[#allocation3 + $0x140] sm:$0xff] %v1023
      %1031 = vst [vmem:[#allocation3 + $0x148] sm:$0xff] %v1025
      %1032 = vst [vmem:[#allocation3 + $0x150] sm:$0xf] %v1026
      %v1033 = vld [vmem:[#allocation2 + $0x4] sm:$0xff]
      %v1034 = vld [vmem:[#allocation2 + $0xc] sm:$0xff]
      %v1035 = vld [vmem:[#allocation2 + $0x14] sm:$0xff]
      %1039 = vrot.lane.b32.xlu0 %v1033, 117
      %v1040 = vpop.permute.xlu0 %1039
      %1041 = vrot.lane.b32.xlu0 %v1034, 117
      %v1042 = vpop.permute.xlu0 %1041
      %1043 = vrot.lane.b32.xlu0 %v1035, 117
      %v1044 = vpop.permute.xlu0 %1043
      %v1045 = vrot.slane %v1040, 4
      %v1046 = vrot.slane %v1042, 4
      %v1047 = vrot.slane %v1044, 4
      %v1048 = vsel %vm609, %v1045, %v1046
      %vm1049 = vcmask 957440
      %v1050 = vsel %vm1049, %v1040, %v1048
      %v1051 = vsel %vm609, %v1046, %v1047
      %v1052 = vsel %vm1049, %v1042, %v1051
      %v1053 = vsel %vm1049, %v1044, %v1047
      %1057 = vst [vmem:[#allocation3 + $0x154] sm:$0xff] %v1050
      %1058 = vst [vmem:[#allocation3 + $0x15c] sm:$0xff] %v1052
      %1059 = vst [vmem:[#allocation3 + $0x164] sm:$0xf] %v1053
      %v1060 = vld [vmem:[#allocation2 + $0x4] sm:$0xff]
      %v1061 = vld [vmem:[#allocation2 + $0xc] sm:$0xff]
      %v1062 = vld [vmem:[#allocation2 + $0x14] sm:$0xff]
      %1066 = vrot.lane.b32.xlu0 %v1060, 39
      %v1067 = vpop.permute.xlu0 %1066
      %1068 = vrot.lane.b32.xlu0 %v1061, 39
      %v1069 = vpop.permute.xlu0 %1068
      %1070 = vrot.lane.b32.xlu0 %v1062, 39
      %v1071 = vpop.permute.xlu0 %1070
      %v1072 = vrot.slane %v1067, 4
      %v1073 = vrot.slane %v1069, 4
      %v1074 = vrot.slane %v1071, 4
      %v1075 = vsel %vm609, %v1072, %v1073
      %vm1076 = vcmask 318464
      %v1077 = vsel %vm1076, %v1067, %v1075
      %v1078 = vsel %vm609, %v1073, %v1074
      %v1079 = vsel %vm1076, %v1069, %v1078
      %v1080 = vsel %vm1076, %v1071, %v1074
      %1084 = vst [vmem:[#allocation3 + $0x168] sm:$0xff] %v1077
      %1085 = vst [vmem:[#allocation3 + $0x170] sm:$0xff] %v1079
      %1086 = vst [vmem:[#allocation3 + $0x178] sm:$0xf] %v1080
      %v1087 = vld [vmem:[#allocation2 + $0x4] sm:$0xff]
      %v1088 = vld [vmem:[#allocation2 + $0xc] sm:$0xff]
      %v1089 = vld [vmem:[#allocation2 + $0x14] sm:$0xff]
      %1093 = vrot.lane.b32.xlu0 %v1087, 38
      %v1094 = vpop.permute.xlu0 %1093
      %1095 = vrot.lane.b32.xlu0 %v1088, 38
      %v1096 = vpop.permute.xlu0 %1095
      %1097 = vrot.lane.b32.xlu0 %v1089, 38
      %v1098 = vpop.permute.xlu0 %1097
      %v1099 = vrot.slane %v1094, 4
      %v1100 = vrot.slane %v1096, 4
      %v1101 = vrot.slane %v1098, 4
      %v1102 = vsel %vm609, %v1099, %v1100
      %vm1103 = vcmask 310272
      %v1104 = vsel %vm1103, %v1094, %v1102
      %v1105 = vsel %vm609, %v1100, %v1101
      %v1106 = vsel %vm1103, %v1096, %v1105
      %v1107 = vsel %vm1103, %v1098, %v1101
      %1111 = vst [vmem:[#allocation3 + $0x17c] sm:$0xff] %v1104
      %1112 = vst [vmem:[#allocation3 + $0x184] sm:$0xff] %v1106
      %1113 = vst [vmem:[#allocation3 + $0x18c] sm:$0xf] %v1107
      %v1114 = vld [vmem:[#allocation2 + $0x4] sm:$0xff]
      %v1115 = vld [vmem:[#allocation2 + $0xc] sm:$0xff]
      %v1116 = vld [vmem:[#allocation2 + $0x14] sm:$0xff]
      %1120 = vrot.lane.b32.xlu0 %v1114, 37
      %v1121 = vpop.permute.xlu0 %1120
      %1122 = vrot.lane.b32.xlu0 %v1115, 37
      %v1123 = vpop.permute.xlu0 %1122
      %1124 = vrot.lane.b32.xlu0 %v1116, 37
      %v1125 = vpop.permute.xlu0 %1124
      %v1126 = vrot.slane %v1121, 4
      %v1127 = vrot.slane %v1123, 4
      %v1128 = vrot.slane %v1125, 4
      %v1129 = vsel %vm609, %v1126, %v1127
      %vm1130 = vcmask 302080
      %v1131 = vsel %vm1130, %v1121, %v1129
      %v1132 = vsel %vm609, %v1127, %v1128
      %v1133 = vsel %vm1130, %v1123, %v1132
      %v1134 = vsel %vm1130, %v1125, %v1128
      %1138 = vst [vmem:[#allocation3 + $0x190] sm:$0xff] %v1131
      %1139 = vst [vmem:[#allocation3 + $0x198] sm:$0xff] %v1133
      %1140 = vst [vmem:[#allocation3 + $0x1a0] sm:$0xf] %v1134
      %v1141 = vld [vmem:[#allocation2 + $0x4] sm:$0xff]
      %v1142 = vld [vmem:[#allocation2 + $0xc] sm:$0xff]
      %v1143 = vld [vmem:[#allocation2 + $0x14] sm:$0xff]
      %1147 = vrot.lane.b32.xlu0 %v1141, 29
      %v1148 = vpop.permute.xlu0 %1147
      %1149 = vrot.lane.b32.xlu0 %v1142, 29
      %v1150 = vpop.permute.xlu0 %1149
      %1151 = vrot.lane.b32.xlu0 %v1143, 29
      %v1152 = vpop.permute.xlu0 %1151
      %v1153 = vrot.slane %v1148, 4
      %v1154 = vrot.slane %v1150, 4
      %v1155 = vrot.slane %v1152, 4
      %v1156 = vsel %vm609, %v1153, %v1154
      %vm1157 = vcmask 236544
      %v1158 = vsel %vm1157, %v1148, %v1156
      %v1159 = vsel %vm609, %v1154, %v1155
      %v1160 = vsel %vm1157, %v1150, %v1159
      %v1161 = vsel %vm1157, %v1152, %v1155
      %1165 = vst [vmem:[#allocation3 + $0x1a4] sm:$0xff] %v1158
      %1166 = vst [vmem:[#allocation3 + $0x1ac] sm:$0xff] %v1160
      %1167 = vst [vmem:[#allocation3 + $0x1b4] sm:$0xf] %v1161
      %v1168 = vld [vmem:[#allocation2 + $0x4] sm:$0xff]
      %v1169 = vld [vmem:[#allocation2 + $0xc] sm:$0xff]
      %v1170 = vld [vmem:[#allocation2 + $0x14] sm:$0xff]
      %1174 = vrot.lane.b32.xlu0 %v1168, 28
      %v1175 = vpop.permute.xlu0 %1174
      %1176 = vrot.lane.b32.xlu0 %v1169, 28
      %v1177 = vpop.permute.xlu0 %1176
      %1178 = vrot.lane.b32.xlu0 %v1170, 28
      %v1179 = vpop.permute.xlu0 %1178
      %v1180 = vrot.slane %v1175, 4
      %v1181 = vrot.slane %v1177, 4
      %v1182 = vrot.slane %v1179, 4
      %v1183 = vsel %vm609, %v1180, %v1181
      %vm1184 = vcmask 228352
      %v1185 = vsel %vm1184, %v1175, %v1183
      %v1186 = vsel %vm609, %v1181, %v1182
      %v1187 = vsel %vm1184, %v1177, %v1186
      %v1188 = vsel %vm1184, %v1179, %v1182
      %1192 = vst [vmem:[#allocation3 + $0x1b8] sm:$0xff] %v1185
      %1193 = vst [vmem:[#allocation3 + $0x1c0] sm:$0xff] %v1187
      %1194 = vst [vmem:[#allocation3 + $0x1c8] sm:$0xf] %v1188
      %v1195 = vld [vmem:[#allocation2 + $0x4] sm:$0xff]
      %v1196 = vld [vmem:[#allocation2 + $0xc] sm:$0xff]
      %v1197 = vld [vmem:[#allocation2 + $0x14] sm:$0xff]
      %1201 = vrot.lane.b32.xlu0 %v1195, 27
      %v1202 = vpop.permute.xlu0 %1201
      %1203 = vrot.lane.b32.xlu0 %v1196, 27
      %v1204 = vpop.permute.xlu0 %1203
      %1205 = vrot.lane.b32.xlu0 %v1197, 27
      %v1206 = vpop.permute.xlu0 %1205
      %v1207 = vrot.slane %v1202, 4
      %v1208 = vrot.slane %v1204, 4
      %v1209 = vrot.slane %v1206, 4
      %v1210 = vsel %vm609, %v1207, %v1208
      %vm1211 = vcmask 220160
      %v1212 = vsel %vm1211, %v1202, %v1210
      %v1213 = vsel %vm609, %v1208, %v1209
      %v1214 = vsel %vm1211, %v1204, %v1213
      %v1215 = vsel %vm1211, %v1206, %v1209
      %1219 = vst [vmem:[#allocation3 + $0x1cc] sm:$0xff] %v1212
      %1220 = vst [vmem:[#allocation3 + $0x1d4] sm:$0xff] %v1214
      %1221 = vst [vmem:[#allocation3 + $0x1dc] sm:$0xf] %v1215
      %v1222 = vld [vmem:[#allocation2 + $0x4] sm:$0xff]
      %v1223 = vld [vmem:[#allocation2 + $0xc] sm:$0xff]
      %v1224 = vld [vmem:[#allocation2 + $0x14] sm:$0xff]
      %1228 = vrot.lane.b32.xlu0 %v1222, 19
      %v1229 = vpop.permute.xlu0 %1228
      %1230 = vrot.lane.b32.xlu0 %v1223, 19
      %v1231 = vpop.permute.xlu0 %1230
      %1232 = vrot.lane.b32.xlu0 %v1224, 19
      %v1233 = vpop.permute.xlu0 %1232
      %v1234 = vrot.slane %v1229, 4
      %v1235 = vrot.slane %v1231, 4
      %v1236 = vrot.slane %v1233, 4
      %v1237 = vsel %vm609, %v1234, %v1235
      %vm1238 = vcmask 154624
      %v1239 = vsel %vm1238, %v1229, %v1237
      %v1240 = vsel %vm609, %v1235, %v1236
      %v1241 = vsel %vm1238, %v1231, %v1240
      %v1242 = vsel %vm1238, %v1233, %v1236
      %1246 = vst [vmem:[#allocation3 + $0x1e0] sm:$0xff] %v1239
      %1247 = vst [vmem:[#allocation3 + $0x1e8] sm:$0xff] %v1241
      %1248 = vst [vmem:[#allocation3 + $0x1f0] sm:$0xf] %v1242
      %v1249 = vld [vmem:[#allocation2 + $0x4] sm:$0xff]
      %v1250 = vld [vmem:[#allocation2 + $0xc] sm:$0xff]
      %v1251 = vld [vmem:[#allocation2 + $0x14] sm:$0xff]
      %1255 = vrot.lane.b32.xlu0 %v1249, 18
      %v1256 = vpop.permute.xlu0 %1255
      %1257 = vrot.lane.b32.xlu0 %v1250, 18
      %v1258 = vpop.permute.xlu0 %1257
      %1259 = vrot.lane.b32.xlu0 %v1251, 18
      %v1260 = vpop.permute.xlu0 %1259
      %v1261 = vrot.slane %v1256, 4
      %v1262 = vrot.slane %v1258, 4
      %v1263 = vrot.slane %v1260, 4
      %v1264 = vsel %vm609, %v1261, %v1262
      %vm1265 = vcmask 146432
      %v1266 = vsel %vm1265, %v1256, %v1264
      %v1267 = vsel %vm609, %v1262, %v1263
      %v1268 = vsel %vm1265, %v1258, %v1267
      %v1269 = vsel %vm1265, %v1260, %v1263
      %1273 = vst [vmem:[#allocation3 + $0x1f4] sm:$0xff] %v1266
      %1274 = vst [vmem:[#allocation3 + $0x1fc] sm:$0xff] %v1268
      %1275 = vst [vmem:[#allocation3 + $0x204] sm:$0xf] %v1269
      %v1276 = vld [vmem:[#allocation2 + $0x4] sm:$0xff]
      %v1277 = vld [vmem:[#allocation2 + $0xc] sm:$0xff]
      %v1278 = vld [vmem:[#allocation2 + $0x14] sm:$0xff]
      %1282 = vrot.lane.b32.xlu0 %v1276, 17
      %v1283 = vpop.permute.xlu0 %1282
      %1284 = vrot.lane.b32.xlu0 %v1277, 17
      %v1285 = vpop.permute.xlu0 %1284
      %1286 = vrot.lane.b32.xlu0 %v1278, 17
      %v1287 = vpop.permute.xlu0 %1286
      %v1288 = vrot.slane %v1283, 4
      %v1289 = vrot.slane %v1285, 4
      %v1290 = vrot.slane %v1287, 4
      %v1291 = vsel %vm609, %v1288, %v1289
      %vm1292 = vcmask 138240
      %v1293 = vsel %vm1292, %v1283, %v1291
      %v1294 = vsel %vm609, %v1289, %v1290
      %v1295 = vsel %vm1292, %v1285, %v1294
      %v1296 = vsel %vm1292, %v1287, %v1290
      %1300 = vst [vmem:[#allocation3 + $0x208] sm:$0xff] %v1293
      %1301 = vst [vmem:[#allocation3 + $0x210] sm:$0xff] %v1295
      %1302 = vst [vmem:[#allocation3 + $0x218] sm:$0xf] %v1296
      %v1303 = vld [vmem:[%s1] sm:$0xff]
      %v1304 = vld [vmem:[#allocation3] sm:$0xff]
      %v1305 = vld [vmem:[#allocation3 + $0x8] sm:$0xff]
      %v1306 = vld [vmem:[#allocation3 + $0x10] sm:$0xf]
      %v1307 = vld [vmem:[#allocation3 + $0x14] sm:$0xff]
      %v1308 = vld [vmem:[#allocation3 + $0x1c] sm:$0xff]
      %v1309 = vld [vmem:[#allocation3 + $0x24] sm:$0xf]
      %v1310 = vld [vmem:[#allocation3 + $0x28] sm:$0xff]
      %v1311 = vld [vmem:[#allocation3 + $0x30] sm:$0xff]
      %v1312 = vld [vmem:[#allocation3 + $0x38] sm:$0xf]
      %v1313 = vld [vmem:[#allocation3 + $0x3c] sm:$0xff]
      %v1314 = vld [vmem:[#allocation3 + $0x44] sm:$0xff]
      %v1315 = vld [vmem:[#allocation3 + $0x4c] sm:$0xf]
      %v1316 = vld [vmem:[#allocation3 + $0x50] sm:$0xff]
      %v1317 = vld [vmem:[#allocation3 + $0x58] sm:$0xff]
      %v1318 = vld [vmem:[#allocation3 + $0x60] sm:$0xf]
      %v1319 = vld [vmem:[#allocation3 + $0x64] sm:$0xff]
      %v1320 = vld [vmem:[#allocation3 + $0x6c] sm:$0xff]
      %v1321 = vld [vmem:[#allocation3 + $0x74] sm:$0xf]
      %v1322 = vld [vmem:[#allocation3 + $0x78] sm:$0xff]
      %v1323 = vld [vmem:[#allocation3 + $0x80] sm:$0xff]
      %v1324 = vld [vmem:[#allocation3 + $0x88] sm:$0xf]
      %v1325 = vld [vmem:[#allocation3 + $0x8c] sm:$0xff]
      %v1326 = vld [vmem:[#allocation3 + $0x94] sm:$0xff]
      %v1327 = vld [vmem:[#allocation3 + $0x9c] sm:$0xf]
      %v1328 = vld [vmem:[#allocation3 + $0xa0] sm:$0xff]
      %v1329 = vld [vmem:[#allocation3 + $0xa8] sm:$0xff]
      %v1330 = vld [vmem:[#allocation3 + $0xb0] sm:$0xf]
      %v1331 = vld [vmem:[#allocation3 + $0xb4] sm:$0xff]
      %v1332 = vld [vmem:[#allocation3 + $0xbc] sm:$0xff]
      %v1333 = vld [vmem:[#allocation3 + $0xc4] sm:$0xf]
      %v1334 = vld [vmem:[#allocation3 + $0xc8] sm:$0xff]
      %v1335 = vld [vmem:[#allocation3 + $0xd0] sm:$0xff]
      %v1336 = vld [vmem:[#allocation3 + $0xd8] sm:$0xf]
      %v1337 = vld [vmem:[#allocation3 + $0xdc] sm:$0xff]
      %v1338 = vld [vmem:[#allocation3 + $0xe4] sm:$0xff]
      %v1339 = vld [vmem:[#allocation3 + $0xec] sm:$0xf]
      %v1340 = vld [vmem:[#allocation3 + $0xf0] sm:$0xff]
      %v1341 = vld [vmem:[#allocation3 + $0xf8] sm:$0xff]
      %v1342 = vld [vmem:[#allocation3 + $0x100] sm:$0xf]
      %v1343 = vld [vmem:[#allocation3 + $0x104] sm:$0xff]
      %v1344 = vld [vmem:[#allocation3 + $0x10c] sm:$0xff]
      %v1345 = vld [vmem:[#allocation3 + $0x114] sm:$0xf]
      %v1346 = vld [vmem:[#allocation3 + $0x118] sm:$0xff]
      %v1347 = vld [vmem:[#allocation3 + $0x120] sm:$0xff]
      %v1348 = vld [vmem:[#allocation3 + $0x128] sm:$0xf]
      %v1349 = vld [vmem:[#allocation3 + $0x12c] sm:$0xff]
      %v1350 = vld [vmem:[#allocation3 + $0x134] sm:$0xff]
      %v1351 = vld [vmem:[#allocation3 + $0x13c] sm:$0xf]
      %v1352 = vld [vmem:[#allocation3 + $0x140] sm:$0xff]
      %v1353 = vld [vmem:[#allocation3 + $0x148] sm:$0xff]
      %v1354 = vld [vmem:[#allocation3 + $0x150] sm:$0xf]
      %v1355 = vld [vmem:[#allocation3 + $0x154] sm:$0xff]
      %v1356 = vld [vmem:[#allocation3 + $0x15c] sm:$0xff]
      %v1357 = vld [vmem:[#allocation3 + $0x164] sm:$0xf]
      %v1358 = vld [vmem:[#allocation3 + $0x168] sm:$0xff]
      %v1359 = vld [vmem:[#allocation3 + $0x170] sm:$0xff]
      %v1360 = vld [vmem:[#allocation3 + $0x178] sm:$0xf]
      %v1361 = vld [vmem:[#allocation3 + $0x17c] sm:$0xff]
      %v1362 = vld [vmem:[#allocation3 + $0x184] sm:$0xff]
      %v1363 = vld [vmem:[#allocation3 + $0x18c] sm:$0xf]
      %v1364 = vld [vmem:[#allocation3 + $0x190] sm:$0xff]
      %v1365 = vld [vmem:[#allocation3 + $0x198] sm:$0xff]
      %v1366 = vld [vmem:[#allocation3 + $0x1a0] sm:$0xf]
      %v1367 = vld [vmem:[#allocation3 + $0x1a4] sm:$0xff]
      %v1368 = vld [vmem:[#allocation3 + $0x1ac] sm:$0xff]
      %v1369 = vld [vmem:[#allocation3 + $0x1b4] sm:$0xf]
      %v1370 = vld [vmem:[#allocation3 + $0x1b8] sm:$0xff]
      %v1371 = vld [vmem:[#allocation3 + $0x1c0] sm:$0xff]
      %v1372 = vld [vmem:[#allocation3 + $0x1c8] sm:$0xf]
      %v1373 = vld [vmem:[#allocation3 + $0x1cc] sm:$0xff]
      %v1374 = vld [vmem:[#allocation3 + $0x1d4] sm:$0xff]
      %v1375 = vld [vmem:[#allocation3 + $0x1dc] sm:$0xf]
      %v1376 = vld [vmem:[#allocation3 + $0x1e0] sm:$0xff]
      %v1377 = vld [vmem:[#allocation3 + $0x1e8] sm:$0xff]
      %v1378 = vld [vmem:[#allocation3 + $0x1f0] sm:$0xf]
      %v1379 = vld [vmem:[#allocation3 + $0x1f4] sm:$0xff]
      %v1380 = vld [vmem:[#allocation3 + $0x1fc] sm:$0xff]
      %v1381 = vld [vmem:[#allocation3 + $0x204] sm:$0xf]
      %v1382 = vld [vmem:[#allocation3 + $0x208] sm:$0xff]
      %v1383 = vld [vmem:[#allocation3 + $0x210] sm:$0xff]
      %v1384 = vld [vmem:[#allocation3 + $0x218] sm:$0xf]
      %v1385 = vld [vmem:[%s2] sm:$0xff]
      %1387 = vset.pattern.permute.xlu0 0
      %1388 = vperm.xlu0 %1387, %v1385
      %v1389 = vpop.permute.xlu0 %1388
      %v1392 = vunpack.c.l.b16 %v1303
      %v1393 = vunpack.c.h.b16 %v1303
      %v1394 = vpack.c.b16 %v1392, %v1392
      %v1395 = vpack.c.b16 %v1393, %v1393
      %v1478 = vunpack.c.l.b16 %v1304
      %v1479 = vunpack.c.h.b16 %v1304
      %v1480 = vunpack.c.l.b16 %v1305
      %v1481 = vunpack.c.h.b16 %v1305
      %v1482 = vunpack.c.l.b16 %v1306
      %v1483 = vunpack.c.l.b16 %v1307
      %v1484 = vunpack.c.h.b16 %v1307
      %v1485 = vunpack.c.l.b16 %v1308
      %v1486 = vunpack.c.h.b16 %v1308
      %v1487 = vunpack.c.l.b16 %v1309
      %v1488 = vunpack.c.l.b16 %v1310
      %v1489 = vunpack.c.h.b16 %v1310
      %v1490 = vunpack.c.l.b16 %v1311
      %v1491 = vunpack.c.h.b16 %v1311
      %v1492 = vunpack.c.l.b16 %v1312
      %v1493 = vunpack.c.l.b16 %v1313
      %v1494 = vunpack.c.h.b16 %v1313
      %v1495 = vunpack.c.l.b16 %v1314
      %v1496 = vunpack.c.h.b16 %v1314
      %v1497 = vunpack.c.l.b16 %v1315
      %v1498 = vunpack.c.l.b16 %v1316
      %v1499 = vunpack.c.h.b16 %v1316
      %v1500 = vunpack.c.l.b16 %v1317
      %v1501 = vunpack.c.h.b16 %v1317
      %v1502 = vunpack.c.l.b16 %v1318
      %v1503 = vunpack.c.l.b16 %v1319
      %v1504 = vunpack.c.h.b16 %v1319
      %v1505 = vunpack.c.l.b16 %v1320
      %v1506 = vunpack.c.h.b16 %v1320
      %v1507 = vunpack.c.l.b16 %v1321
      %v1508 = vunpack.c.l.b16 %v1322
      %v1509 = vunpack.c.h.b16 %v1322
      %v1510 = vunpack.c.l.b16 %v1323
      %v1511 = vunpack.c.h.b16 %v1323
      %v1512 = vunpack.c.l.b16 %v1324
      %v1513 = vunpack.c.l.b16 %v1325
      %v1514 = vunpack.c.h.b16 %v1325
      %v1515 = vunpack.c.l.b16 %v1326
      %v1516 = vunpack.c.h.b16 %v1326
      %v1517 = vunpack.c.l.b16 %v1327
      %v1518 = vunpack.c.l.b16 %v1328
      %v1519 = vunpack.c.h.b16 %v1328
      %v1520 = vunpack.c.l.b16 %v1329
      %v1521 = vunpack.c.h.b16 %v1329
      %v1522 = vunpack.c.l.b16 %v1330
      %v1523 = vunpack.c.l.b16 %v1331
      %v1524 = vunpack.c.h.b16 %v1331
      %v1525 = vunpack.c.l.b16 %v1332
      %v1526 = vunpack.c.h.b16 %v1332
      %v1527 = vunpack.c.l.b16 %v1333
      %v1528 = vunpack.c.l.b16 %v1334
      %v1529 = vunpack.c.h.b16 %v1334
      %v1530 = vunpack.c.l.b16 %v1335
      %v1531 = vunpack.c.h.b16 %v1335
      %v1532 = vunpack.c.l.b16 %v1336
      %v1533 = vunpack.c.l.b16 %v1337
      %v1534 = vunpack.c.h.b16 %v1337
      %v1535 = vunpack.c.l.b16 %v1338
      %v1536 = vunpack.c.h.b16 %v1338
      %v1537 = vunpack.c.l.b16 %v1339
      %v1538 = vunpack.c.l.b16 %v1340
      %v1539 = vunpack.c.h.b16 %v1340
      %v1540 = vunpack.c.l.b16 %v1341
      %v1541 = vunpack.c.h.b16 %v1341
      %v1542 = vunpack.c.l.b16 %v1342
      %v1543 = vunpack.c.l.b16 %v1343
      %v1544 = vunpack.c.h.b16 %v1343
      %v1545 = vunpack.c.l.b16 %v1344
      %v1546 = vunpack.c.h.b16 %v1344
      %v1547 = vunpack.c.l.b16 %v1345
      %v1548 = vunpack.c.l.b16 %v1346
      %v1549 = vunpack.c.h.b16 %v1346
      %v1550 = vunpack.c.l.b16 %v1347
      %v1551 = vunpack.c.h.b16 %v1347
      %v1552 = vunpack.c.l.b16 %v1348
      %v1553 = vunpack.c.l.b16 %v1349
      %v1554 = vunpack.c.h.b16 %v1349
      %v1555 = vunpack.c.l.b16 %v1350
      %v1556 = vunpack.c.h.b16 %v1350
      %v1557 = vunpack.c.l.b16 %v1351
      %v1558 = vunpack.c.l.b16 %v1352
      %v1559 = vunpack.c.h.b16 %v1352
      %v1560 = vunpack.c.l.b16 %v1353
      %v1561 = vunpack.c.h.b16 %v1353
      %v1562 = vunpack.c.l.b16 %v1354
      %v1563 = vunpack.c.l.b16 %v1355
      %v1564 = vunpack.c.h.b16 %v1355
      %v1565 = vunpack.c.l.b16 %v1356
      %v1566 = vunpack.c.h.b16 %v1356
      %v1567 = vunpack.c.l.b16 %v1357
      %v1568 = vunpack.c.l.b16 %v1358
      %v1569 = vunpack.c.h.b16 %v1358
      %v1570 = vunpack.c.l.b16 %v1359
      %v1571 = vunpack.c.h.b16 %v1359
      %v1572 = vunpack.c.l.b16 %v1360
      %v1573 = vunpack.c.l.b16 %v1361
      %v1574 = vunpack.c.h.b16 %v1361
      %v1575 = vunpack.c.l.b16 %v1362
      %v1576 = vunpack.c.h.b16 %v1362
      %v1577 = vunpack.c.l.b16 %v1363
      %v1578 = vunpack.c.l.b16 %v1364
      %v1579 = vunpack.c.h.b16 %v1364
      %v1580 = vunpack.c.l.b16 %v1365
      %v1581 = vunpack.c.h.b16 %v1365
      %v1582 = vunpack.c.l.b16 %v1366
      %v1583 = vunpack.c.l.b16 %v1367
      %v1584 = vunpack.c.h.b16 %v1367
      %v1585 = vunpack.c.l.b16 %v1368
      %v1586 = vunpack.c.h.b16 %v1368
      %v1587 = vunpack.c.l.b16 %v1369
      %v1588 = vunpack.c.l.b16 %v1370
      %v1589 = vunpack.c.h.b16 %v1370
      %v1590 = vunpack.c.l.b16 %v1371
      %v1591 = vunpack.c.h.b16 %v1371
      %v1592 = vunpack.c.l.b16 %v1372
      %v1593 = vunpack.c.l.b16 %v1373
      %v1594 = vunpack.c.h.b16 %v1373
      %v1595 = vunpack.c.l.b16 %v1374
      %v1596 = vunpack.c.h.b16 %v1374
      %v1597 = vunpack.c.l.b16 %v1375
      %v1598 = vunpack.c.l.b16 %v1376
      %v1599 = vunpack.c.h.b16 %v1376
      %v1600 = vunpack.c.l.b16 %v1377
      %v1601 = vunpack.c.h.b16 %v1377
      %v1602 = vunpack.c.l.b16 %v1378
      %v1603 = vunpack.c.l.b16 %v1379
      %v1604 = vunpack.c.h.b16 %v1379
      %v1605 = vunpack.c.l.b16 %v1380
      %v1606 = vunpack.c.h.b16 %v1380
      %v1607 = vunpack.c.l.b16 %v1381
      %v1608 = vunpack.c.l.b16 %v1382
      %v1609 = vunpack.c.h.b16 %v1382
      %v1610 = vunpack.c.l.b16 %v1383
      %v1611 = vunpack.c.h.b16 %v1383
      %v1612 = vunpack.c.l.b16 %v1384
      %v1613 = vpack.c.b16 %v1483, %v1478
      %v1614 = vpack.c.b16 %v1484, %v1479
      %v1615 = vpack.c.b16 %v1485, %v1480
      %v1616 = vpack.c.b16 %v1486, %v1481
      %v1617 = vpack.c.b16 %v1487, %v1482
      %v1618 = vpack.c.b16 %v1493, %v1488
      %v1619 = vpack.c.b16 %v1494, %v1489
      %v1620 = vpack.c.b16 %v1495, %v1490
      %v1621 = vpack.c.b16 %v1496, %v1491
      %v1622 = vpack.c.b16 %v1497, %v1492
      %v1623 = vpack.c.b16 %v1503, %v1498
      %v1624 = vpack.c.b16 %v1504, %v1499
      %v1625 = vpack.c.b16 %v1505, %v1500
      %v1626 = vpack.c.b16 %v1506, %v1501
      %v1627 = vpack.c.b16 %v1507, %v1502
      %v1628 = vpack.c.b16 %v1513, %v1508
      %v1629 = vpack.c.b16 %v1514, %v1509
      %v1630 = vpack.c.b16 %v1515, %v1510
      %v1631 = vpack.c.b16 %v1516, %v1511
      %v1632 = vpack.c.b16 %v1517, %v1512
      %v1633 = vpack.c.b16 %v1523, %v1518
      %v1634 = vpack.c.b16 %v1524, %v1519
      %v1635 = vpack.c.b16 %v1525, %v1520
      %v1636 = vpack.c.b16 %v1526, %v1521
      %v1637 = vpack.c.b16 %v1527, %v1522
      %v1638 = vpack.c.b16 %v1533, %v1528
      %v1639 = vpack.c.b16 %v1534, %v1529
      %v1640 = vpack.c.b16 %v1535, %v1530
      %v1641 = vpack.c.b16 %v1536, %v1531
      %v1642 = vpack.c.b16 %v1537, %v1532
      %v1643 = vpack.c.b16 %v1543, %v1538
      %v1644 = vpack.c.b16 %v1544, %v1539
      %v1645 = vpack.c.b16 %v1545, %v1540
      %v1646 = vpack.c.b16 %v1546, %v1541
      %v1647 = vpack.c.b16 %v1547, %v1542
      %v1648 = vpack.c.b16 %v1553, %v1548
      %v1649 = vpack.c.b16 %v1554, %v1549
      %v1650 = vpack.c.b16 %v1555, %v1550
      %v1651 = vpack.c.b16 %v1556, %v1551
      %v1652 = vpack.c.b16 %v1557, %v1552
      %v1653 = vpack.c.b16 %v1563, %v1558
      %v1654 = vpack.c.b16 %v1564, %v1559
      %v1655 = vpack.c.b16 %v1565, %v1560
      %v1656 = vpack.c.b16 %v1566, %v1561
      %v1657 = vpack.c.b16 %v1567, %v1562
      %v1658 = vpack.c.b16 %v1573, %v1568
      %v1659 = vpack.c.b16 %v1574, %v1569
      %v1660 = vpack.c.b16 %v1575, %v1570
      %v1661 = vpack.c.b16 %v1576, %v1571
      %v1662 = vpack.c.b16 %v1577, %v1572
      %v1663 = vpack.c.b16 %v1583, %v1578
      %v1664 = vpack.c.b16 %v1584, %v1579
      %v1665 = vpack.c.b16 %v1585, %v1580
      %v1666 = vpack.c.b16 %v1586, %v1581
      %v1667 = vpack.c.b16 %v1587, %v1582
      %v1668 = vpack.c.b16 %v1593, %v1588
      %v1669 = vpack.c.b16 %v1594, %v1589
      %v1670 = vpack.c.b16 %v1595, %v1590
      %v1671 = vpack.c.b16 %v1596, %v1591
      %v1672 = vpack.c.b16 %v1597, %v1592
      %v1673 = vpack.c.b16 %v1603, %v1598
      %v1674 = vpack.c.b16 %v1604, %v1599
      %v1675 = vpack.c.b16 %v1605, %v1600
      %v1676 = vpack.c.b16 %v1606, %v1601
      %v1677 = vpack.c.b16 %v1607, %v1602
      %v1678 = vpack.c.b16 %v1608, %v1608
      %v1679 = vpack.c.b16 %v1609, %v1609
      %v1680 = vpack.c.b16 %v1610, %v1610
      %v1681 = vpack.c.b16 %v1611, %v1611
      %v1682 = vpack.c.b16 %v1612, %v1612
      %vm1748 = vcmask 719872
      %v1750 = vsel %vm1748, %v1395, 0
      %vm1752 = vcmask 1043456
      %v1754 = vsel %vm1752, %v1678, 0
      %v1757 = vsel %vm1752, %v1679, 0
      %v1760 = vsel %vm1752, %v1680, 0
      %v1763 = vsel %vm1752, %v1681, 0
      %v1766 = vsel %vm1752, %v1682, 0
      %1768 = vmatprep.subr.bf16.mxu0 %v1614
      %1769 = vmatpush1.bf16.msra.mxu0 %v1613
      %1770 = vmatprep.subr.bf16.mxu0 %v1619
      %1771 = vmatpush1.bf16.msra.mxu0 %v1618
      %1772 = vmatprep.subr.bf16.mxu0 %v1624
      %1773 = vmatpush1.bf16.msra.mxu0 %v1623
      %1774 = vmatprep.subr.bf16.mxu0 %v1629
      %1775 = vmatpush1.bf16.msra.mxu0 %v1628
      %1776 = vmatprep.subr.bf16.mxu0 %v1634
      %1777 = vmatpush1.bf16.msra.mxu0 %v1633
      %1778 = vmatprep.subr.bf16.mxu0 %v1639
      %1779 = vmatpush1.bf16.msra.mxu0 %v1638
      %1780 = vmatprep.subr.bf16.mxu0 %v1644
      %1781 = vmatpush1.bf16.msra.mxu0 %v1643
      %1782 = vmatprep.subr.bf16.mxu0 %v1649
      %1783 = vmatpush1.bf16.msra.mxu0 %v1648
      %1784 = vmatprep.subr.bf16.mxu0 %v1654
      %1785 = vmatpush1.bf16.msra.mxu0 %v1653
      %1786 = vmatprep.subr.bf16.mxu0 %v1659
      %1787 = vmatpush1.bf16.msra.mxu0 %v1658
      %1788 = vmatprep.subr.bf16.mxu0 %v1664
      %1789 = vmatpush1.bf16.msra.mxu0 %v1663
      %1790 = vmatprep.subr.bf16.mxu0 %v1669
      %1791 = vmatpush1.bf16.msra.mxu0 %v1668
      %1792 = vmatprep.subr.bf16.mxu0 %v1674
      %1793 = vmatpush1.bf16.msra.mxu0 %v1673
      %1794 = vmatprep.subr.bf16.mxu0 %v1757
      %1795 = vmatpush1.bf16.msra.mxu0 %v1754
      %1796 = vmatprep.subr.bf16.mxu0 0
      %1797 = vmatpush1.bf16.msra.mxu0 0
      %1798 = vmatprep.subr.bf16.mxu0 0
      %1799 = vmatpush1.bf16.msra.mxu0 0
      %1800 = vmatprep.mubr.bf16.mxu0 %v1750
      %1801 = vmatmul.mubr.bf16.gmra.mrb[0].mxu0 %v1394
      %v1802 = vpop.f32.mrb[0].mxu0
      %v1803 = vadd.f32 %v1389, %v1802
      %v1804 = vpop.f32.mrb[0].mxu0
      %v1805 = vadd.f32 %v1389, %v1804
      %v1806 = vpop.f32.mrb[0].mxu0
      %v1807 = vpop.f32.mrb[0].mxu0
      %1808 = vdwg.mxu0
      %1809 = vmatprep.subr.bf16.mxu0 %v1616
      %1810 = vmatpush1.bf16.msra.mxu0 %v1615
      %1811 = vmatprep.subr.bf16.mxu0 %v1621
      %1812 = vmatpush1.bf16.msra.mxu0 %v1620
      %1813 = vmatprep.subr.bf16.mxu0 %v1626
      %1814 = vmatpush1.bf16.msra.mxu0 %v1625
      %1815 = vmatprep.subr.bf16.mxu0 %v1631
      %1816 = vmatpush1.bf16.msra.mxu0 %v1630
      %1817 = vmatprep.subr.bf16.mxu0 %v1636
      %1818 = vmatpush1.bf16.msra.mxu0 %v1635
      %1819 = vmatprep.subr.bf16.mxu0 %v1641
      %1820 = vmatpush1.bf16.msra.mxu0 %v1640
      %1821 = vmatprep.subr.bf16.mxu0 %v1646
      %1822 = vmatpush1.bf16.msra.mxu0 %v1645
      %1823 = vmatprep.subr.bf16.mxu0 %v1651
      %1824 = vmatpush1.bf16.msra.mxu0 %v1650
      %1825 = vmatprep.subr.bf16.mxu0 %v1656
      %1826 = vmatpush1.bf16.msra.mxu0 %v1655
      %1827 = vmatprep.subr.bf16.mxu0 %v1661
      %1828 = vmatpush1.bf16.msra.mxu0 %v1660
      %1829 = vmatprep.subr.bf16.mxu0 %v1666
      %1830 = vmatpush1.bf16.msra.mxu0 %v1665
      %1831 = vmatprep.subr.bf16.mxu0 %v1671
      %1832 = vmatpush1.bf16.msra.mxu0 %v1670
      %1833 = vmatprep.subr.bf16.mxu0 %v1676
      %1834 = vmatpush1.bf16.msra.mxu0 %v1675
      %1835 = vmatprep.subr.bf16.mxu0 %v1763
      %1836 = vmatpush1.bf16.msra.mxu0 %v1760
      %1837 = vmatprep.subr.bf16.mxu0 0
      %1838 = vmatpush1.bf16.msra.mxu0 0
      %1839 = vmatprep.subr.bf16.mxu0 0
      %1840 = vmatpush1.bf16.msra.mxu0 0
      %1841 = vmatprep.mubr.bf16.mxu0 %v1750
      %1842 = vmatmul.mubr.bf16.gmra.mrb[0].mxu0 %v1394
      %v1843 = vpop.f32.mrb[0].mxu0
      %v1844 = vadd.f32 %v1389, %v1843
      %v1845 = vpop.f32.mrb[0].mxu0
      %v1846 = vadd.f32 %v1389, %v1845
      %v1847 = vpop.f32.mrb[0].mxu0
      %v1848 = vpop.f32.mrb[0].mxu0
      %1849 = vdwg.mxu0
      %1850 = vmatprep.subr.bf16.mxu0 0
      %1851 = vmatpush1.bf16.msra.mxu0 %v1617
      %1852 = vmatprep.subr.bf16.mxu0 0
      %1853 = vmatpush1.bf16.msra.mxu0 %v1622
      %1854 = vmatprep.subr.bf16.mxu0 0
      %1855 = vmatpush1.bf16.msra.mxu0 %v1627
      %1856 = vmatprep.subr.bf16.mxu0 0
      %1857 = vmatpush1.bf16.msra.mxu0 %v1632
      %1858 = vmatprep.subr.bf16.mxu0 0
      %1859 = vmatpush1.bf16.msra.mxu0 %v1637
      %1860 = vmatprep.subr.bf16.mxu0 0
      %1861 = vmatpush1.bf16.msra.mxu0 %v1642
      %1862 = vmatprep.subr.bf16.mxu0 0
      %1863 = vmatpush1.bf16.msra.mxu0 %v1647
      %1864 = vmatprep.subr.bf16.mxu0 0
      %1865 = vmatpush1.bf16.msra.mxu0 %v1652
      %1866 = vmatprep.subr.bf16.mxu0 0
      %1867 = vmatpush1.bf16.msra.mxu0 %v1657
      %1868 = vmatprep.subr.bf16.mxu0 0
      %1869 = vmatpush1.bf16.msra.mxu0 %v1662
      %1870 = vmatprep.subr.bf16.mxu0 0
      %1871 = vmatpush1.bf16.msra.mxu0 %v1667
      %1872 = vmatprep.subr.bf16.mxu0 0
      %1873 = vmatpush1.bf16.msra.mxu0 %v1672
      %1874 = vmatprep.subr.bf16.mxu0 0
      %1875 = vmatpush1.bf16.msra.mxu0 %v1677
      %1876 = vmatprep.subr.bf16.mxu0 0
      %1877 = vmatpush1.bf16.msra.mxu0 %v1766
      %1878 = vmatprep.subr.bf16.mxu0 0
      %1879 = vmatpush1.bf16.msra.mxu0 0
      %1880 = vmatprep.subr.bf16.mxu0 0
      %1881 = vmatpush1.bf16.msra.mxu0 0
      %1882 = vmatprep.mubr.bf16.mxu0 %v1750
      %1883 = vmatmul.mubr.bf16.gmra.mrb[0].mxu0 %v1394
      %v1884 = vpop.f32.mrb[0].mxu0
      %v1885 = vadd.f32 %v1389, %v1884
      %v1886 = vpop.f32.mrb[0].mxu0
      %v1887 = vpop.f32.mrb[0].mxu0
      %v1888 = vpop.f32.mrb[0].mxu0
      %1889 = vdwg.mxu0
      %1890 = vst [vmem:[%s273] sm:$0xff] %v1803
      %1891 = vst [vmem:[%s273 + $0x8] sm:$0xff] %v1805
      %1892 = vst [vmem:[%s273 + $0x10] sm:$0xff] %v1844
      %1893 = vst [vmem:[%s273 + $0x18] sm:$0xff] %v1846
      %1894 = vst [vmem:[%s273 + $0x20] sm:$0xff] %v1885
      %v1895 = vsel %vm426, %v1803, 0.0
      %v1896 = vsel %vm427, %v1805, 0.0
      %v1897 = vsel %vm428, %v1844, 0.0
      %v1898 = vsel %vm429, %v1846, 0.0
      %v1899 = vsel %vm430, %v1885, 0.0
      %v1900 = vld [vmem:[%s7] sm:$0xff]
      %v1901 = vadd.f32 %v1895, %v1896
      %v1902 = vadd.f32 %v1901, %v1897
      %v1903 = vadd.f32 %v1902, %v1898
      %v1904 = vadd.f32 %v1903, %v1899
      %1905 = vadd.xlane.f32.xlu0 %v1904
      %v1906 = vpop.xlane.xlu0 %1905
      %v1907 = vadd.f32 %v1900, %v1906
      %vm1908 = vcmask 7168
      %1909 = vst.msk [vmem:[%s7] sm:$0xff] %vm1908, %v1907
      %v1910 = vld [vmem:[%s7] sm:$0xff]
      %v1911 = vmul.f32 %v1895, %v1895
      %v1912 = vmul.f32 %v1896, %v1896
      %v1913 = vmul.f32 %v1897, %v1897
      %v1914 = vmul.f32 %v1898, %v1898
      %v1915 = vmul.f32 %v1899, %v1899
      %v1916 = vadd.f32 %v1911, %v1912
      %v1917 = vadd.f32 %v1916, %v1913
      %v1918 = vadd.f32 %v1917, %v1914
      %v1919 = vadd.f32 %v1918, %v1915
      %1920 = vadd.xlane.f32.xlu0 %v1919
      %v1921 = vpop.xlane.xlu0 %1920
      %v1922 = vadd.f32 %v1910, %v1921
      %vm1923 = vcmask 15368
      %1924 = vst.msk [vmem:[%s7] sm:$0xff] %vm1923, %v1922
      %p1925 = scmp.lt.s32.totalorder %s19, 1
      %s1926 = scalar_select %p1925, %s19, 1
      %s1927 = smul.addr %s1926, 5
      %s1928 = smul.addr %s1927, 8
      %s1929 = scalar_lea.vmem %s6, %s1928
      // Predicated region
      $region49: #{down_forward.4} parent=43 // pred_check
        %p1930 = pneg %p168
      $region50: #{down_forward.4} parent=43 // pred_check_branch
        %1932 = sbr.rel (%p1930) target = $region52
      $region51: #{down_forward.4} parent=43 // pred_region
        _
      $region52: #{down_forward.4} parent=43 // pred_fallthru
        _
      // Predicated region
      $region53: #{down_forward.4} parent=43 // pred_check
        %p1933 = pneg %p189
      $region54: #{down_forward.4} parent=43 // pred_check_branch
        %1935 = sbr.rel (%p1933) target = $region56
      $region55: #{down_forward.4} parent=43 // pred_region
        _
      $region56: #{down_forward.4} parent=43 // pred_fallthru
        _
      // Predicated region
      $region57: #{down_forward.4} parent=43 // pred_check
        %p1936 = pneg %p189
      $region58: #{down_forward.4} parent=43 // pred_check_branch
        %1938 = sbr.rel (%p1936) target = $region60
      $region59: #{down_forward.4} parent=43 // pred_region
        _
      $region60: #{down_forward.4} parent=43 // pred_fallthru
        _
    $region44: #{down_forward.4} parent=5 // pred_fallthru
      _
    %p1939 = scmp.le.s32.totalorder 2, %s14
    // Predicated region
    $region61: #{down_forward.4} parent=5 // pred_check
      %p1940 = pneg %p1939
    $region62: #{down_forward.4} parent=5 // pred_check_branch
      %1942 = sbr.rel (%p1940) target = $region64
    $region63: #{down_forward.4} parent=5 // pred_region
      %s1943 = ssub.s32 %s14, 2
      // Predicated region
      $region65: #{down_forward.4} parent=63 // pred_check
        %p1944 = pneg %p174
      $region66: #{down_forward.4} parent=63 // pred_check_branch
        %1946 = sbr.rel (%p1944) target = $region68
      $region67: #{down_forward.4} parent=63 // pred_region
        %p1947 = scmp.lt.s32.totalorder %s20, 1
        %s1948 = scalar_select %p1947, %s20, 1
        %s1949 = smul.addr %s1948, 5
        %s1950 = smul.addr %s1949, 8
        %s1951 = scalar_lea.vmem %s6, %s1950
      $region68: #{down_forward.4} parent=63 // pred_fallthru
        _
    $region64: #{down_forward.4} parent=5 // pred_fallthru
      _
  $region6: #{down_forward.4} parent=0 // loop_footer
    %s18 = sadd.s32 1, %s14
  $region7: #{down_forward.4} parent=0 // loop_footer_branch
    %13 = sbr.rel target = $region3
  $region8: #{down_forward.4} parent=0 // loop_exit
    _

</llo_original>
